<compile_context>
chip_gen: v6e
topology: v6e:2x2x1
jax: 0.10.0
libtpu: 0.0.40
codegen_flags: <defaults>
</compile_context>

<pallas_src>
import functools

import numpy as np

import jax
import jax.numpy as jnp
from jax.experimental import pallas as pl
from jax.experimental.pallas import tpu as pltpu

LANE = 128


# ----------------------------- small helpers -------------------------------

def _round_up(x, m):
    return (x + m - 1) // m * m


def _pad_last(a, target):
    pad = target - a.shape[-1]
    if pad == 0:
        return a
    cfg = [(0, 0)] * (a.ndim - 1) + [(0, pad)]
    return jnp.pad(a, cfg)


def _pad2(a, rows, cols):
    return jnp.pad(a, ((0, rows - a.shape[0]), (0, cols - a.shape[1])))


def _avg_pool2x2(x_nhwc):
    n, h, w, c = x_nhwc.shape
    return x_nhwc.reshape(n, h // 2, 2, w // 2, 2, c).mean(axis=(2, 4))


def _conv3x3_weight_taps(w, cin_p, cout_p, dtype):
    """PyTorch (O, I, 3, 3) -> (9, cin_p, cout_p), tap index = dh*3 + dw."""
    o, i, _, _ = w.shape
    wt = jnp.transpose(w, (2, 3, 1, 0)).reshape(9, i, o)
    wt = jnp.pad(wt, ((0, 0), (0, cin_p - i), (0, cout_p - o)))
    return wt.astype(dtype)


def _pick_band_rows(h, w, cin_p, itemsize, max_bytes=2 << 20):
    """Even divisor of H (prefer <= H/2 so there are >= 2 bands) with a bounded x-slab block."""
    cand = [d for d in range(2, h + 1, 2) if h % d == 0]
    small = [d for d in cand if d <= max(2, h // 2)] or cand

    def bytes_for(th):
        return ((th + 4) * (w + 2) + 16) * cin_p * itemsize

    ok = [d for d in small if bytes_for(d) <= max_bytes]
    return max(ok) if ok else min(small)


def _pick_chunk(total, wp, cap_rows=384):
    """Largest divisor of `total` whose chunk (divisor * wp rows) keeps the f32 acc small."""
    cand = [d for d in range(1, total + 1) if total % d == 0 and d * wp <= cap_rows]
    return max(cand) if cand else 1


def _pick_rc(th, wp, cap_rows=384):
    cand = [d for d in range(2, th + 1, 2) if th % d == 0 and d * wp <= cap_rows]
    return max(cand) if cand else 2


def _col_mask(c0, w):
    """(c0*(W+2), 1) f32: 1 on real columns (j in [1, W]), 0 on the built-in pad columns."""
    per = np.zeros((w + 2, 1), np.float32)
    per[1:w + 1] = 1.0
    return jnp.asarray(np.tile(per, (c0, 1)))


def _pool_matrix(rc, w):
    """(m2, m1) f32 matrix doing 2x2 average pooling of a (rc, W+2)-laid-out y1 chunk,
    dropping the 2 junk columns per row."""
    wp, w2 = w + 2, w // 2
    m1, m2 = rc * wp, (rc // 2) * w2
    p = np.zeros((m2, m1), np.float32)
    for c in range(m1):
        h, j = divmod(c, wp)
        if j >= w:
            continue
        p[(h // 2) * w2 + (j // 2), c] = 0.25
    return jnp.asarray(p)


# ------------------------------ fused kernel --------------------------------

def _fused_kernel(xsh_ref, px_ref, w0_ref, w1_ref, wres_ref, b0_ref, bout_ref,
                  cmask_ref, pool_ref, o_ref, y0_scr, *, th, width, c0, rc, guard):
    """Per (image, row-band):  relu(x) -> conv0 -> relu -> conv1 -> avgpool  + residual."""
    wp = width + 2
    w2 = width // 2
    cout_p = o_ref.shape[-1]
    b = pl.program_id(1)
    nb = pl.num_programs(1)

    # Guard rows at the end of the scratch may be read (into discarded junk columns);
    # keep them finite so 0*garbage in the pooling matmul can't produce NaNs.
    y0_scr[pl.ds((th + 2) * wp, 8), :] = jnp.zeros((8, cout_p), y0_scr.dtype)

    # --------- phase 1: conv0 (+b0) -> relu -> y0 scratch ((W+2)-stride layout) ---------
    mask = cmask_ref[...]                                   # (c0*wp, 1) 0/1
    for j in range((th + 2) // c0):
        g0 = j * c0 * wp
        rows = c0 * wp
        acc = jnp.zeros((rows, cout_p), jnp.float32)
        for dh in range(3):
            for dw in range(3):
                a = xsh_ref[0, 0, pl.ds(guard + g0 + dh * wp + dw - 1, rows), :]
                acc = acc + jnp.dot(a, w0_ref[dh * 3 + dw],
                                    preferred_element_type=jnp.float32)
        y = jnp.maximum(acc + b0_ref[...], 0.0) * mask      # relu once; zero pad columns
        y0_scr[pl.ds(g0, rows), :] = y.astype(y0_scr.dtype)

    # y0 halo rows that fall outside the image must be zero (conv1's H zero-padding).
    @pl.when(b == 0)
    def _():
        y0_scr[pl.ds(0, wp), :] = jnp.zeros((wp, cout_p), y0_scr.dtype)

    @pl.when(b == nb - 1)
    def _():
        y0_scr[pl.ds((th + 1) * wp, wp), :] = jnp.zeros((wp, cout_p), y0_scr.dtype)

    # --------- phase 2: conv1 -> 2x2 avg-pool -> + (pooled_x @ Wres) + (b1 + bres) ---------
    pool = pool_ref[...]                                    # (m2, m1) f32
    m1 = rc * wp
    m2 = (rc // 2) * w2
    for hc in range(0, th, rc):
        acc = jnp.zeros((m1, cout_p), jnp.float32)
        for dh in range(3):
            for dw in range(3):
                a = y0_scr[pl.ds((hc + dh) * wp + dw, m1), :]
                acc = acc + jnp.dot(a, w1_ref[dh * 3 + dw],
                                    preferred_element_type=jnp.float32)
        pooled = jnp.dot(pool, acc, preferred_element_type=jnp.float32)   # (m2, cout_p)
        p0 = (hc // 2) * w2
        res = jnp.dot(px_ref[0, pl.ds(p0, m2), :], wres_ref[...],
                      preferred_element_type=jnp.float32)
        o_ref[0, pl.ds(p0, m2), :] = (pooled + res + bout_ref[...]).astype(o_ref.dtype)


# ------------------------------ forward pass --------------------------------

def basic_block_discriminator_forward(x_nchw, params, compute_dtype=jnp.bfloat16):
    n, cin, h, w = x_nchw.shape
    cout = params["w0"].shape[0]
    assert h % 2 == 0 and w % 2 == 0, "downsample path assumes even H and W"
    cin_p, cout_p = _round_up(cin, LANE), _round_up(cout, LANE)
    h2, w2 = h // 2, w // 2
    wp = w + 2
    itemsize = jnp.dtype(compute_dtype).itemsize

    th = _pick_band_rows(h, w, cin_p, itemsize)     # conv1-output rows per band (even, | H)
    nb = h // th
    tp = th // 2                                    # pooled rows per band
    rc = _pick_rc(th, wp)                           # conv1 rows per accumulation chunk
    c0 = _pick_chunk(th + 2, wp)                    # y0 rows per conv0 accumulation chunk
    guard = 8
    rslab = (th + 4) * wp + 2 * guard

    x = jnp.transpose(x_nchw, (0, 2, 3, 1)).astype(jnp.float32)          # NHWC, f32

    # Main-path input: relu(x), zero-padded by (2 rows, 1 col) per side, channel-padded,
    # then split into self-contained halo'ed row bands (+ zero guard rows for offset reads).
    xr = jnp.pad(jnp.maximum(x, 0.0), ((0, 0), (2, 2), (1, 1), (0, cin_p - cin)))
    bands = jnp.stack([xr[:, b * th: b * th + th + 4] for b in range(nb)], axis=1)
    bands = bands.reshape(n, nb, (th + 4) * wp, cin_p)
    gz = jnp.zeros((n, nb, guard, cin_p), jnp.float32)
    xslab = jnp.concatenate([gz, bands, gz], axis=2).astype(compute_dtype)

    # Residual-path input: avg-pool first (pooling commutes with 1x1 conv + constant bias).
    px = jnp.pad(_avg_pool2x2(x), ((0, 0), (0, 0), (0, 0), (0, cin_p - cin)))
    px = px.reshape(n, h2 * w2, cin_p).astype(compute_dtype)

    w0t = _conv3x3_weight_taps(params["w0"], cin_p, cout_p, compute_dtype)
    w1t = _conv3x3_weight_taps(params["w1"], cout_p, cout_p, compute_dtype)
    wres = _pad2(params["w_res"][:, :, 0, 0].T, cin_p, cout_p).astype(compute_dtype)
    b0 = _pad_last(params["b0"], cout_p)[None, :].astype(jnp.float32)
    bout = _pad_last(params["b1"] + params["b_res"], cout_p)[None, :].astype(jnp.float32)

    cmask = _col_mask(c0, w)
    pmat = _pool_matrix(rc, w)
    m1, m2 = rc * wp, (rc // 2) * w2

    kernel = functools.partial(_fused_kernel, th=th, width=w, c0=c0, rc=rc, guard=guard)

    # VMEM budget from the real block sizes (double-buffered) + scratch + headroom.
    blk_bytes = (rslab * cin_p + tp * w2 * (cin_p + cout_p)) * itemsize \
        + (9 * cin_p * cout_p + 9 * cout_p * cout_p + cin_p * cout_p) * itemsize \
        + (m1 * m2 + c0 * wp + 2 * cout_p) * 4
    scr_bytes = ((th + 2) * wp + 8) * cout_p * itemsize
    vmem_limit = int(min(max(2 * blk_bytes + scr_bytes + (8 << 20), 24 << 20), 48 << 20))

    out = pl.pallas_call(
        kernel,
        out_shape=jax.ShapeDtypeStruct((n, h2 * w2, cout_p), compute_dtype),
        grid=(n, nb),
        in_specs=[
            pl.BlockSpec((1, 1, rslab, cin_p), lambda i, b: (i, b, 0, 0)),
            pl.BlockSpec((1, tp * w2, cin_p), lambda i, b: (i, b, 0)),
            pl.BlockSpec((9, cin_p, cout_p), lambda i, b: (0, 0, 0)),
            pl.BlockSpec((9, cout_p, cout_p), lambda i, b: (0, 0, 0)),
            pl.BlockSpec((cin_p, cout_p), lambda i, b: (0, 0)),
            pl.BlockSpec((1, cout_p), lambda i, b: (0, 0)),
            pl.BlockSpec((1, cout_p), lambda i, b: (0, 0)),
            pl.BlockSpec((c0 * wp, 1), lambda i, b: (0, 0)),
            pl.BlockSpec((m2, m1), lambda i, b: (0, 0)),
        ],
        out_specs=pl.BlockSpec((1, tp * w2, cout_p), lambda i, b: (i, b, 0)),
        scratch_shapes=[pltpu.VMEM(((th + 2) * wp + 8, cout_p), compute_dtype)],
        compiler_params=pltpu.CompilerParams(
            dimension_semantics=("parallel", "parallel"),
            vmem_limit_bytes=vmem_limit),
    )(xslab, px, w0t, w1t, wres, b0, bout, cmask, pmat)

    out = out.reshape(n, h2, w2, cout_p)[:, :, :, :cout]
    return jnp.transpose(out, (0, 3, 1, 2))                              # back to NCHW


# --------------------------- pure-JAX reference -----------------------------

def ref_forward(x_nchw, params):
    x = jnp.transpose(x_nchw, (0, 2, 3, 1)).astype(jnp.float32)

    def conv(v, wt, b, k):
        wh = jnp.transpose(wt, (2, 3, 1, 0))
        pad = (k - 1) // 2
        out = jax.lax.conv_general_dilated(
            v, wh, (1, 1), [(pad, pad), (pad, pad)],
            dimension_numbers=("NHWC", "HWIO", "NHWC"),
            precision=jax.lax.Precision.HIGHEST)
        return out + b

    res = _avg_pool2x2(conv(x, params["w_res"], params["b_res"], 1))
    out = jnp.maximum(x, 0.0)
    out = conv(out, params["w0"], params["b0"], 3)
    out = jnp.maximum(out, 0.0)
    out = conv(out, params["w1"], params["b1"], 3)
    out = _avg_pool2x2(out) + res
    return jnp.transpose(out, (0, 3, 1, 2))


# ---------------------------------- main ------------------------------------

if __name__ == "__main__":
    key = jax.random.PRNGKey(0)
    ks = jax.random.split(key, 7)
    N, Cin, H, W = 2, 4, 16, 16
    Cout = 8

    x = jax.random.normal(ks[0], (N, Cin, H, W), jnp.float32)
    params = dict(
        w_res=0.1 * jax.random.normal(ks[1], (Cout, Cin, 1, 1), jnp.float32),
        b_res=0.1 * jax.random.normal(ks[2], (Cout,), jnp.float32),
        w0=0.1 * jax.random.normal(ks[3], (Cout, Cin, 3, 3), jnp.float32),
        b0=0.1 * jax.random.normal(ks[4], (Cout,), jnp.float32),
        w1=0.1 * jax.random.normal(ks[5], (Cout, Cout, 3, 3), jnp.float32),
        b1=0.1 * jax.random.normal(ks[6], (Cout,), jnp.float32),
    )

    ref = ref_forward(x, params)

    # Exact-semantics check (f32 MXU inputs).
    fwd_f32 = jax.jit(functools.partial(
        basic_block_discriminator_forward, compute_dtype=jnp.float32))
    out32 = jax.block_until_ready(fwd_f32(x, params))
    assert out32.shape == (N, Cout, H // 2, W // 2), out32.shape
    err32 = float(jnp.max(jnp.abs(out32 - ref)))
    assert err32 < 2e-3, f"f32 path max abs err {err32}"

    # Perf path: bf16 MXU inputs, f32 accumulation.
    fwd_bf16 = jax.jit(functools.partial(
        basic_block_discriminator_forward, compute_dtype=jnp.bfloat16))
    out16 = jax.block_until_ready(fwd_bf16(x, params))
    err16 = float(jnp.max(jnp.abs(out16 - ref)))
    assert err16 < 5e-2, f"bf16 path max abs err {err16}"

    print("KERNEL_OK")
</pallas_src>

<mosaic_0001>
module attributes {stable_mosaic.version = 11 : i64} {
  func.func @_fused_kernel(%arg0: i32, %arg1: i32, %arg2: memref<1x1x232x128xf32, #tpu.memory_space<vmem>>, %arg3: memref<1x32x128xf32, #tpu.memory_space<vmem>>, %arg4: memref<9x128x128xf32, #tpu.memory_space<vmem>>, %arg5: memref<9x128x128xf32, #tpu.memory_space<vmem>>, %arg6: memref<128x128xf32, #tpu.memory_space<vmem>>, %arg7: memref<1x128xf32, #tpu.memory_space<vmem>>, %arg8: memref<1x128xf32, #tpu.memory_space<vmem>>, %arg9: memref<180x1xf32, #tpu.memory_space<vmem>>, %arg10: memref<32x144xf32, #tpu.memory_space<vmem>>, %arg11: memref<1x32x128xf32, #tpu.memory_space<vmem>>, %arg12: memref<188x128xf32, #tpu.memory_space<vmem>>) attributes {dimension_semantics = [#tpu.dimension_semantics<parallel>, #tpu.dimension_semantics<parallel>], iteration_bounds = array<i64: 2, 2>, scalar_prefetch = 0 : i64, scratch_operands = 1 : i64, tpu.core_type = #tpu.core_type<tc>, window_params = [{transform_indices = @transform_0, window_bounds = array<i64: 1, 1, 232, 128>}, {transform_indices = @transform_1, window_bounds = array<i64: 1, 32, 128>}, {pipeline_mode = #tpu.pipeline_mode<synchronous>, transform_indices = @transform_2, window_bounds = array<i64: 9, 128, 128>}, {pipeline_mode = #tpu.pipeline_mode<synchronous>, transform_indices = @transform_3, window_bounds = array<i64: 9, 128, 128>}, {pipeline_mode = #tpu.pipeline_mode<synchronous>, transform_indices = @transform_4, window_bounds = array<i64: 128, 128>}, {pipeline_mode = #tpu.pipeline_mode<synchronous>, transform_indices = @transform_5, window_bounds = array<i64: 1, 128>}, {pipeline_mode = #tpu.pipeline_mode<synchronous>, transform_indices = @transform_6, window_bounds = array<i64: 1, 128>}, {pipeline_mode = #tpu.pipeline_mode<synchronous>, transform_indices = @transform_7, window_bounds = array<i64: 180, 1>}, {pipeline_mode = #tpu.pipeline_mode<synchronous>, transform_indices = @transform_8, window_bounds = array<i64: 32, 144>}, {transform_indices = @transform_9, window_bounds = array<i64: 1, 32, 128>}]} {
    %cst = arith.constant 0.000000e+00 : f32
    %0 = vector.broadcast %cst : f32 to vector<8x128xf32>
    %c180 = arith.constant 180 : index
    %c0 = arith.constant 0 : index
    %1 = vector.load %arg12[%c180, %c0] : memref<188x128xf32, #tpu.memory_space<vmem>>, vector<8x128xf32>
    tpu.vector_store %arg12[%c180, %c0], %0 {strides = array<i32>} : memref<188x128xf32, #tpu.memory_space<vmem>>, vector<8x128xf32>,
    %c0_0 = arith.constant 0 : index
    %c0_1 = arith.constant 0 : index
    %2 = vector.load %arg9[%c0_0, %c0_1] : memref<180x1xf32, #tpu.memory_space<vmem>>, vector<180x1xf32>
    %cst_2 = arith.constant 0.000000e+00 : f32
    %3 = vector.broadcast %cst_2 : f32 to vector<180x128xf32>
    %c0_3 = arith.constant 0 : index
    %c0_4 = arith.constant 0 : index
    %c7 = arith.constant 7 : index
    %c0_5 = arith.constant 0 : index
    %4 = vector.load %arg2[%c0_3, %c0_4, %c7, %c0_5] : memref<1x1x232x128xf32, #tpu.memory_space<vmem>>, vector<1x1x180x128xf32>
    %5 = vector.shape_cast %4 : vector<1x1x180x128xf32> to vector<180x128xf32>
    %c0_6 = arith.constant 0 : index
    %c0_7 = arith.constant 0 : index
    %c0_8 = arith.constant 0 : index
    %6 = vector.load %arg4[%c0_6, %c0_7, %c0_8] : memref<9x128x128xf32, #tpu.memory_space<vmem>>, vector<1x128x128xf32>
    %7 = vector.shape_cast %6 : vector<1x128x128xf32> to vector<128x128xf32>
    %cst_9 = arith.constant dense<0.000000e+00> : vector<180x128xf32>
    %8 = tpu.matmul %5, %7, %cst_9 {dimension_numbers = #tpu.dot_dimension_numbers<[1], [0], [0], [1], [0, 0, 1, 1], [], []>} : vector<180x128xf32>, vector<128x128xf32>, vector<180x128xf32> -> vector<180x128xf32>
    %9 = arith.addf %3, %8 : vector<180x128xf32>
    %c0_10 = arith.constant 0 : index
    %c0_11 = arith.constant 0 : index
    %c8 = arith.constant 8 : index
    %c0_12 = arith.constant 0 : index
    %10 = vector.load %arg2[%c0_10, %c0_11, %c8, %c0_12] : memref<1x1x232x128xf32, #tpu.memory_space<vmem>>, vector<1x1x180x128xf32>
    %11 = vector.shape_cast %10 : vector<1x1x180x128xf32> to vector<180x128xf32>
    %c1 = arith.constant 1 : index
    %c0_13 = arith.constant 0 : index
    %c0_14 = arith.constant 0 : index
    %12 = vector.load %arg4[%c1, %c0_13, %c0_14] : memref<9x128x128xf32, #tpu.memory_space<vmem>>, vector<1x128x128xf32>
    %13 = vector.shape_cast %12 : vector<1x128x128xf32> to vector<128x128xf32>
    %cst_15 = arith.constant dense<0.000000e+00> : vector<180x128xf32>
    %14 = tpu.matmul %11, %13, %cst_15 {dimension_numbers = #tpu.dot_dimension_numbers<[1], [0], [0], [1], [0, 0, 1, 1], [], []>} : vector<180x128xf32>, vector<128x128xf32>, vector<180x128xf32> -> vector<180x128xf32>
    %15 = arith.addf %9, %14 : vector<180x128xf32>
    %c0_16 = arith.constant 0 : index
    %c0_17 = arith.constant 0 : index
    %c9 = arith.constant 9 : index
    %c0_18 = arith.constant 0 : index
    %16 = vector.load %arg2[%c0_16, %c0_17, %c9, %c0_18] : memref<1x1x232x128xf32, #tpu.memory_space<vmem>>, vector<1x1x180x128xf32>
    %17 = vector.shape_cast %16 : vector<1x1x180x128xf32> to vector<180x128xf32>
    %c2 = arith.constant 2 : index
    %c0_19 = arith.constant 0 : index
    %c0_20 = arith.constant 0 : index
    %18 = vector.load %arg4[%c2, %c0_19, %c0_20] : memref<9x128x128xf32, #tpu.memory_space<vmem>>, vector<1x128x128xf32>
    %19 = vector.shape_cast %18 : vector<1x128x128xf32> to vector<128x128xf32>
    %cst_21 = arith.constant dense<0.000000e+00> : vector<180x128xf32>
    %20 = tpu.matmul %17, %19, %cst_21 {dimension_numbers = #tpu.dot_dimension_numbers<[1], [0], [0], [1], [0, 0, 1, 1], [], []>} : vector<180x128xf32>, vector<128x128xf32>, vector<180x128xf32> -> vector<180x128xf32>
    %21 = arith.addf %15, %20 : vector<180x128xf32>
    %c0_22 = arith.constant 0 : index
    %c0_23 = arith.constant 0 : index
    %c25 = arith.constant 25 : index
    %c0_24 = arith.constant 0 : index
    %22 = vector.load %arg2[%c0_22, %c0_23, %c25, %c0_24] : memref<1x1x232x128xf32, #tpu.memory_space<vmem>>, vector<1x1x180x128xf32>
    %23 = vector.shape_cast %22 : vector<1x1x180x128xf32> to vector<180x128xf32>
    %c3 = arith.constant 3 : index
    %c0_25 = arith.constant 0 : index
    %c0_26 = arith.constant 0 : index
    %24 = vector.load %arg4[%c3, %c0_25, %c0_26] : memref<9x128x128xf32, #tpu.memory_space<vmem>>, vector<1x128x128xf32>
    %25 = vector.shape_cast %24 : vector<1x128x128xf32> to vector<128x128xf32>
    %cst_27 = arith.constant dense<0.000000e+00> : vector<180x128xf32>
    %26 = tpu.matmul %23, %25, %cst_27 {dimension_numbers = #tpu.dot_dimension_numbers<[1], [0], [0], [1], [0, 0, 1, 1], [], []>} : vector<180x128xf32>, vector<128x128xf32>, vector<180x128xf32> -> vector<180x128xf32>
    %27 = arith.addf %21, %26 : vector<180x128xf32>
    %c0_28 = arith.constant 0 : index
    %c0_29 = arith.constant 0 : index
    %c26 = arith.constant 26 : index
    %c0_30 = arith.constant 0 : index
    %28 = vector.load %arg2[%c0_28, %c0_29, %c26, %c0_30] : memref<1x1x232x128xf32, #tpu.memory_space<vmem>>, vector<1x1x180x128xf32>
    %29 = vector.shape_cast %28 : vector<1x1x180x128xf32> to vector<180x128xf32>
    %c4 = arith.constant 4 : index
    %c0_31 = arith.constant 0 : index
    %c0_32 = arith.constant 0 : index
    %30 = vector.load %arg4[%c4, %c0_31, %c0_32] : memref<9x128x128xf32, #tpu.memory_space<vmem>>, vector<1x128x128xf32>
    %31 = vector.shape_cast %30 : vector<1x128x128xf32> to vector<128x128xf32>
    %cst_33 = arith.constant dense<0.000000e+00> : vector<180x128xf32>
    %32 = tpu.matmul %29, %31, %cst_33 {dimension_numbers = #tpu.dot_dimension_numbers<[1], [0], [0], [1], [0, 0, 1, 1], [], []>} : vector<180x128xf32>, vector<128x128xf32>, vector<180x128xf32> -> vector<180x128xf32>
    %33 = arith.addf %27, %32 : vector<180x128xf32>
    %c0_34 = arith.constant 0 : index
    %c0_35 = arith.constant 0 : index
    %c27 = arith.constant 27 : index
    %c0_36 = arith.constant 0 : index
    %34 = vector.load %arg2[%c0_34, %c0_35, %c27, %c0_36] : memref<1x1x232x128xf32, #tpu.memory_space<vmem>>, vector<1x1x180x128xf32>
    %35 = vector.shape_cast %34 : vector<1x1x180x128xf32> to vector<180x128xf32>
    %c5 = arith.constant 5 : index
    %c0_37 = arith.constant 0 : index
    %c0_38 = arith.constant 0 : index
    %36 = vector.load %arg4[%c5, %c0_37, %c0_38] : memref<9x128x128xf32, #tpu.memory_space<vmem>>, vector<1x128x128xf32>
    %37 = vector.shape_cast %36 : vector<1x128x128xf32> to vector<128x128xf32>
    %cst_39 = arith.constant dense<0.000000e+00> : vector<180x128xf32>
    %38 = tpu.matmul %35, %37, %cst_39 {dimension_numbers = #tpu.dot_dimension_numbers<[1], [0], [0], [1], [0, 0, 1, 1], [], []>} : vector<180x128xf32>, vector<128x128xf32>, vector<180x128xf32> -> vector<180x128xf32>
    %39 = arith.addf %33, %38 : vector<180x128xf32>
    %c0_40 = arith.constant 0 : index
    %c0_41 = arith.constant 0 : index
    %c43 = arith.constant 43 : index
    %c0_42 = arith.constant 0 : index
    %40 = vector.load %arg2[%c0_40, %c0_41, %c43, %c0_42] : memref<1x1x232x128xf32, #tpu.memory_space<vmem>>, vector<1x1x180x128xf32>
    %41 = vector.shape_cast %40 : vector<1x1x180x128xf32> to vector<180x128xf32>
    %c6 = arith.constant 6 : index
    %c0_43 = arith.constant 0 : index
    %c0_44 = arith.constant 0 : index
    %42 = vector.load %arg4[%c6, %c0_43, %c0_44] : memref<9x128x128xf32, #tpu.memory_space<vmem>>, vector<1x128x128xf32>
    %43 = vector.shape_cast %42 : vector<1x128x128xf32> to vector<128x128xf32>
    %cst_45 = arith.constant dense<0.000000e+00> : vector<180x128xf32>
    %44 = tpu.matmul %41, %43, %cst_45 {dimension_numbers = #tpu.dot_dimension_numbers<[1], [0], [0], [1], [0, 0, 1, 1], [], []>} : vector<180x128xf32>, vector<128x128xf32>, vector<180x128xf32> -> vector<180x128xf32>
    %45 = arith.addf %39, %44 : vector<180x128xf32>
    %c0_46 = arith.constant 0 : index
    %c0_47 = arith.constant 0 : index
    %c44 = arith.constant 44 : index
    %c0_48 = arith.constant 0 : index
    %46 = vector.load %arg2[%c0_46, %c0_47, %c44, %c0_48] : memref<1x1x232x128xf32, #tpu.memory_space<vmem>>, vector<1x1x180x128xf32>
    %47 = vector.shape_cast %46 : vector<1x1x180x128xf32> to vector<180x128xf32>
    %c7_49 = arith.constant 7 : index
    %c0_50 = arith.constant 0 : index
    %c0_51 = arith.constant 0 : index
    %48 = vector.load %arg4[%c7_49, %c0_50, %c0_51] : memref<9x128x128xf32, #tpu.memory_space<vmem>>, vector<1x128x128xf32>
    %49 = vector.shape_cast %48 : vector<1x128x128xf32> to vector<128x128xf32>
    %cst_52 = arith.constant dense<0.000000e+00> : vector<180x128xf32>
    %50 = tpu.matmul %47, %49, %cst_52 {dimension_numbers = #tpu.dot_dimension_numbers<[1], [0], [0], [1], [0, 0, 1, 1], [], []>} : vector<180x128xf32>, vector<128x128xf32>, vector<180x128xf32> -> vector<180x128xf32>
    %51 = arith.addf %45, %50 : vector<180x128xf32>
    %c0_53 = arith.constant 0 : index
    %c0_54 = arith.constant 0 : index
    %c45 = arith.constant 45 : index
    %c0_55 = arith.constant 0 : index
    %52 = vector.load %arg2[%c0_53, %c0_54, %c45, %c0_55] : memref<1x1x232x128xf32, #tpu.memory_space<vmem>>, vector<1x1x180x128xf32>
    %53 = vector.shape_cast %52 : vector<1x1x180x128xf32> to vector<180x128xf32>
    %c8_56 = arith.constant 8 : index
    %c0_57 = arith.constant 0 : index
    %c0_58 = arith.constant 0 : index
    %54 = vector.load %arg4[%c8_56, %c0_57, %c0_58] : memref<9x128x128xf32, #tpu.memory_space<vmem>>, vector<1x128x128xf32>
    %55 = vector.shape_cast %54 : vector<1x128x128xf32> to vector<128x128xf32>
    %cst_59 = arith.constant dense<0.000000e+00> : vector<180x128xf32>
    %56 = tpu.matmul %53, %55, %cst_59 {dimension_numbers = #tpu.dot_dimension_numbers<[1], [0], [0], [1], [0, 0, 1, 1], [], []>} : vector<180x128xf32>, vector<128x128xf32>, vector<180x128xf32> -> vector<180x128xf32>
    %57 = arith.addf %51, %56 : vector<180x128xf32>
    %c0_60 = arith.constant 0 : index
    %c0_61 = arith.constant 0 : index
    %58 = vector.load %arg7[%c0_60, %c0_61] : memref<1x128xf32, #tpu.memory_space<vmem>>, vector<1x128xf32>
    %59 = vector.broadcast %58 : vector<1x128xf32> to vector<180x128xf32>
    %60 = arith.addf %57, %59 : vector<180x128xf32>
    %cst_62 = arith.constant 0.000000e+00 : f32
    %61 = vector.broadcast %cst_62 : f32 to vector<180x128xf32>
    %62 = arith.maximumf %60, %61 : vector<180x128xf32>
    %63 = vector.broadcast %2 : vector<180x1xf32> to vector<180x128xf32>
    %64 = arith.mulf %62, %63 : vector<180x128xf32>
    %c0_63 = arith.constant 0 : index
    %c0_64 = arith.constant 0 : index
    %65 = vector.load %arg12[%c0_63, %c0_64] : memref<188x128xf32, #tpu.memory_space<vmem>>, vector<180x128xf32>
    tpu.vector_store %arg12[%c0_63, %c0_64], %64 {strides = array<i32>} : memref<188x128xf32, #tpu.memory_space<vmem>>, vector<180x128xf32>,
    %c0_i32 = arith.constant 0 : i32
    %66 = arith.cmpi eq, %arg1, %c0_i32 : i32
    %67 = arith.extui %66 : i1 to i32
    %c0_i32_65 = arith.constant 0 : i32
    %68 = arith.cmpi ne, %67, %c0_i32_65 : i32
    scf.if %68 {
      %cst_130 = arith.constant 0.000000e+00 : f32
      %131 = vector.broadcast %cst_130 : f32 to vector<18x128xf32>
      %c0_131 = arith.constant 0 : index
      %c0_132 = arith.constant 0 : index
      %132 = vector.load %arg12[%c0_131, %c0_132] : memref<188x128xf32, #tpu.memory_space<vmem>>, vector<18x128xf32>
      tpu.vector_store %arg12[%c0_131, %c0_132], %131 {strides = array<i32>} : memref<188x128xf32, #tpu.memory_space<vmem>>, vector<18x128xf32>,
    } else {
    }
    %c1_i32 = arith.constant 1 : i32
    %69 = arith.cmpi eq, %arg1, %c1_i32 : i32
    %70 = arith.extui %69 : i1 to i32
    %c0_i32_66 = arith.constant 0 : i32
    %71 = arith.cmpi ne, %70, %c0_i32_66 : i32
    scf.if %71 {
      %cst_130 = arith.constant 0.000000e+00 : f32
      %131 = vector.broadcast %cst_130 : f32 to vector<18x128xf32>
      %c162 = arith.constant 162 : index
      %c0_131 = arith.constant 0 : index
      %132 = vector.load %arg12[%c162, %c0_131] : memref<188x128xf32, #tpu.memory_space<vmem>>, vector<18x128xf32>
      tpu.vector_store %arg12[%c162, %c0_131], %131 {strides = array<i32>} : memref<188x128xf32, #tpu.memory_space<vmem>>, vector<18x128xf32>,
    } else {
    }
    %c0_67 = arith.constant 0 : index
    %c0_68 = arith.constant 0 : index
    %72 = vector.load %arg10[%c0_67, %c0_68] : memref<32x144xf32, #tpu.memory_space<vmem>>, vector<32x144xf32>
    %cst_69 = arith.constant 0.000000e+00 : f32
    %73 = vector.broadcast %cst_69 : f32 to vector<144x128xf32>
    %c0_70 = arith.constant 0 : index
    %c0_71 = arith.constant 0 : index
    %74 = vector.load %arg12[%c0_70, %c0_71] : memref<188x128xf32, #tpu.memory_space<vmem>>, vector<144x128xf32>
    %c0_72 = arith.constant 0 : index
    %c0_73 = arith.constant 0 : index
    %c0_74 = arith.constant 0 : index
    %75 = vector.load %arg5[%c0_72, %c0_73, %c0_74] : memref<9x128x128xf32, #tpu.memory_space<vmem>>, vector<1x128x128xf32>
    %76 = vector.shape_cast %75 : vector<1x128x128xf32> to vector<128x128xf32>
    %cst_75 = arith.constant dense<0.000000e+00> : vector<144x128xf32>
    %77 = tpu.matmul %74, %76, %cst_75 {dimension_numbers = #tpu.dot_dimension_numbers<[1], [0], [0], [1], [0, 0, 1, 1], [], []>} : vector<144x128xf32>, vector<128x128xf32>, vector<144x128xf32> -> vector<144x128xf32>
    %78 = arith.addf %73, %77 : vector<144x128xf32>
    %c1_76 = arith.constant 1 : index
    %c0_77 = arith.constant 0 : index
    %79 = vector.load %arg12[%c1_76, %c0_77] : memref<188x128xf32, #tpu.memory_space<vmem>>, vector<144x128xf32>
    %c1_78 = arith.constant 1 : index
    %c0_79 = arith.constant 0 : index
    %c0_80 = arith.constant 0 : index
    %80 = vector.load %arg5[%c1_78, %c0_79, %c0_80] : memref<9x128x128xf32, #tpu.memory_space<vmem>>, vector<1x128x128xf32>
    %81 = vector.shape_cast %80 : vector<1x128x128xf32> to vector<128x128xf32>
    %cst_81 = arith.constant dense<0.000000e+00> : vector<144x128xf32>
    %82 = tpu.matmul %79, %81, %cst_81 {dimension_numbers = #tpu.dot_dimension_numbers<[1], [0], [0], [1], [0, 0, 1, 1], [], []>} : vector<144x128xf32>, vector<128x128xf32>, vector<144x128xf32> -> vector<144x128xf32>
    %83 = arith.addf %78, %82 : vector<144x128xf32>
    %c2_82 = arith.constant 2 : index
    %c0_83 = arith.constant 0 : index
    %84 = vector.load %arg12[%c2_82, %c0_83] : memref<188x128xf32, #tpu.memory_space<vmem>>, vector<144x128xf32>
    %c2_84 = arith.constant 2 : index
    %c0_85 = arith.constant 0 : index
    %c0_86 = arith.constant 0 : index
    %85 = vector.load %arg5[%c2_84, %c0_85, %c0_86] : memref<9x128x128xf32, #tpu.memory_space<vmem>>, vector<1x128x128xf32>
    %86 = vector.shape_cast %85 : vector<1x128x128xf32> to vector<128x128xf32>
    %cst_87 = arith.constant dense<0.000000e+00> : vector<144x128xf32>
    %87 = tpu.matmul %84, %86, %cst_87 {dimension_numbers = #tpu.dot_dimension_numbers<[1], [0], [0], [1], [0, 0, 1, 1], [], []>} : vector<144x128xf32>, vector<128x128xf32>, vector<144x128xf32> -> vector<144x128xf32>
    %88 = arith.addf %83, %87 : vector<144x128xf32>
    %c18 = arith.constant 18 : index
    %c0_88 = arith.constant 0 : index
    %89 = vector.load %arg12[%c18, %c0_88] : memref<188x128xf32, #tpu.memory_space<vmem>>, vector<144x128xf32>
    %c3_89 = arith.constant 3 : index
    %c0_90 = arith.constant 0 : index
    %c0_91 = arith.constant 0 : index
    %90 = vector.load %arg5[%c3_89, %c0_90, %c0_91] : memref<9x128x128xf32, #tpu.memory_space<vmem>>, vector<1x128x128xf32>
    %91 = vector.shape_cast %90 : vector<1x128x128xf32> to vector<128x128xf32>
    %cst_92 = arith.constant dense<0.000000e+00> : vector<144x128xf32>
    %92 = tpu.matmul %89, %91, %cst_92 {dimension_numbers = #tpu.dot_dimension_numbers<[1], [0], [0], [1], [0, 0, 1, 1], [], []>} : vector<144x128xf32>, vector<128x128xf32>, vector<144x128xf32> -> vector<144x128xf32>
    %93 = arith.addf %88, %92 : vector<144x128xf32>
    %c19 = arith.constant 19 : index
    %c0_93 = arith.constant 0 : index
    %94 = vector.load %arg12[%c19, %c0_93] : memref<188x128xf32, #tpu.memory_space<vmem>>, vector<144x128xf32>
    %c4_94 = arith.constant 4 : index
    %c0_95 = arith.constant 0 : index
    %c0_96 = arith.constant 0 : index
    %95 = vector.load %arg5[%c4_94, %c0_95, %c0_96] : memref<9x128x128xf32, #tpu.memory_space<vmem>>, vector<1x128x128xf32>
    %96 = vector.shape_cast %95 : vector<1x128x128xf32> to vector<128x128xf32>
    %cst_97 = arith.constant dense<0.000000e+00> : vector<144x128xf32>
    %97 = tpu.matmul %94, %96, %cst_97 {dimension_numbers = #tpu.dot_dimension_numbers<[1], [0], [0], [1], [0, 0, 1, 1], [], []>} : vector<144x128xf32>, vector<128x128xf32>, vector<144x128xf32> -> vector<144x128xf32>
    %98 = arith.addf %93, %97 : vector<144x128xf32>
    %c20 = arith.constant 20 : index
    %c0_98 = arith.constant 0 : index
    %99 = vector.load %arg12[%c20, %c0_98] : memref<188x128xf32, #tpu.memory_space<vmem>>, vector<144x128xf32>
    %c5_99 = arith.constant 5 : index
    %c0_100 = arith.constant 0 : index
    %c0_101 = arith.constant 0 : index
    %100 = vector.load %arg5[%c5_99, %c0_100, %c0_101] : memref<9x128x128xf32, #tpu.memory_space<vmem>>, vector<1x128x128xf32>
    %101 = vector.shape_cast %100 : vector<1x128x128xf32> to vector<128x128xf32>
    %cst_102 = arith.constant dense<0.000000e+00> : vector<144x128xf32>
    %102 = tpu.matmul %99, %101, %cst_102 {dimension_numbers = #tpu.dot_dimension_numbers<[1], [0], [0], [1], [0, 0, 1, 1], [], []>} : vector<144x128xf32>, vector<128x128xf32>, vector<144x128xf32> -> vector<144x128xf32>
    %103 = arith.addf %98, %102 : vector<144x128xf32>
    %c36 = arith.constant 36 : index
    %c0_103 = arith.constant 0 : index
    %104 = vector.load %arg12[%c36, %c0_103] : memref<188x128xf32, #tpu.memory_space<vmem>>, vector<144x128xf32>
    %c6_104 = arith.constant 6 : index
    %c0_105 = arith.constant 0 : index
    %c0_106 = arith.constant 0 : index
    %105 = vector.load %arg5[%c6_104, %c0_105, %c0_106] : memref<9x128x128xf32, #tpu.memory_space<vmem>>, vector<1x128x128xf32>
    %106 = vector.shape_cast %105 : vector<1x128x128xf32> to vector<128x128xf32>
    %cst_107 = arith.constant dense<0.000000e+00> : vector<144x128xf32>
    %107 = tpu.matmul %104, %106, %cst_107 {dimension_numbers = #tpu.dot_dimension_numbers<[1], [0], [0], [1], [0, 0, 1, 1], [], []>} : vector<144x128xf32>, vector<128x128xf32>, vector<144x128xf32> -> vector<144x128xf32>
    %108 = arith.addf %103, %107 : vector<144x128xf32>
    %c37 = arith.constant 37 : index
    %c0_108 = arith.constant 0 : index
    %109 = vector.load %arg12[%c37, %c0_108] : memref<188x128xf32, #tpu.memory_space<vmem>>, vector<144x128xf32>
    %c7_109 = arith.constant 7 : index
    %c0_110 = arith.constant 0 : index
    %c0_111 = arith.constant 0 : index
    %110 = vector.load %arg5[%c7_109, %c0_110, %c0_111] : memref<9x128x128xf32, #tpu.memory_space<vmem>>, vector<1x128x128xf32>
    %111 = vector.shape_cast %110 : vector<1x128x128xf32> to vector<128x128xf32>
    %cst_112 = arith.constant dense<0.000000e+00> : vector<144x128xf32>
    %112 = tpu.matmul %109, %111, %cst_112 {dimension_numbers = #tpu.dot_dimension_numbers<[1], [0], [0], [1], [0, 0, 1, 1], [], []>} : vector<144x128xf32>, vector<128x128xf32>, vector<144x128xf32> -> vector<144x128xf32>
    %113 = arith.addf %108, %112 : vector<144x128xf32>
    %c38 = arith.constant 38 : index
    %c0_113 = arith.constant 0 : index
    %114 = vector.load %arg12[%c38, %c0_113] : memref<188x128xf32, #tpu.memory_space<vmem>>, vector<144x128xf32>
    %c8_114 = arith.constant 8 : index
    %c0_115 = arith.constant 0 : index
    %c0_116 = arith.constant 0 : index
    %115 = vector.load %arg5[%c8_114, %c0_115, %c0_116] : memref<9x128x128xf32, #tpu.memory_space<vmem>>, vector<1x128x128xf32>
    %116 = vector.shape_cast %115 : vector<1x128x128xf32> to vector<128x128xf32>
    %cst_117 = arith.constant dense<0.000000e+00> : vector<144x128xf32>
    %117 = tpu.matmul %114, %116, %cst_117 {dimension_numbers = #tpu.dot_dimension_numbers<[1], [0], [0], [1], [0, 0, 1, 1], [], []>} : vector<144x128xf32>, vector<128x128xf32>, vector<144x128xf32> -> vector<144x128xf32>
    %118 = arith.addf %113, %117 : vector<144x128xf32>
    %cst_118 = arith.constant dense<0.000000e+00> : vector<32x128xf32>
    %119 = tpu.matmul %72, %118, %cst_118 {dimension_numbers = #tpu.dot_dimension_numbers<[1], [0], [0], [1], [0, 0, 1, 1], [], []>} : vector<32x144xf32>, vector<144x128xf32>, vector<32x128xf32> -> vector<32x128xf32>
    %c0_119 = arith.constant 0 : index
    %c0_120 = arith.constant 0 : index
    %c0_121 = arith.constant 0 : index
    %120 = vector.load %arg3[%c0_119, %c0_120, %c0_121] : memref<1x32x128xf32, #tpu.memory_space<vmem>>, vector<1x32x128xf32>
    %121 = vector.shape_cast %120 : vector<1x32x128xf32> to vector<32x128xf32>
    %c0_122 = arith.constant 0 : index
    %c0_123 = arith.constant 0 : index
    %122 = vector.load %arg6[%c0_122, %c0_123] : memref<128x128xf32, #tpu.memory_space<vmem>>, vector<128x128xf32>
    %cst_124 = arith.constant dense<0.000000e+00> : vector<32x128xf32>
    %123 = tpu.matmul %121, %122, %cst_124 {dimension_numbers = #tpu.dot_dimension_numbers<[1], [0], [0], [1], [0, 0, 1, 1], [], []>} : vector<32x128xf32>, vector<128x128xf32>, vector<32x128xf32> -> vector<32x128xf32>
    %124 = arith.addf %119, %123 : vector<32x128xf32>
    %c0_125 = arith.constant 0 : index
    %c0_126 = arith.constant 0 : index
    %125 = vector.load %arg8[%c0_125, %c0_126] : memref<1x128xf32, #tpu.memory_space<vmem>>, vector<1x128xf32>
    %126 = vector.broadcast %125 : vector<1x128xf32> to vector<32x128xf32>
    %127 = arith.addf %124, %126 : vector<32x128xf32>
    %c0_127 = arith.constant 0 : index
    %c0_128 = arith.constant 0 : index
    %c0_129 = arith.constant 0 : index
    %128 = vector.load %arg11[%c0_127, %c0_128, %c0_129] : memref<1x32x128xf32, #tpu.memory_space<vmem>>, vector<1x32x128xf32>
    %129 = vector.shape_cast %128 : vector<1x32x128xf32> to vector<32x128xf32>
    %130 = vector.shape_cast %127 : vector<32x128xf32> to vector<1x32x128xf32>
    tpu.vector_store %arg11[%c0_127, %c0_128, %c0_129], %130 {strides = array<i32>} : memref<1x32x128xf32, #tpu.memory_space<vmem>>, vector<1x32x128xf32>,
    return
  }
  func.func @transform_0(%arg0: i32, %arg1: i32) -> (i32, i32, i32, i32) {
    %c0_i32 = arith.constant 0 : i32
    %c0_i32_0 = arith.constant 0 : i32
    %c0_i32_1 = arith.constant 0 : i32
    return %arg0, %arg1, %c0_i32, %c0_i32_0 : i32, i32, i32, i32
  }
  func.func @transform_1(%arg0: i32, %arg1: i32) -> (i32, i32, i32) {
    %c0_i32 = arith.constant 0 : i32
    %c0_i32_0 = arith.constant 0 : i32
    return %arg0, %arg1, %c0_i32 : i32, i32, i32
  }
  func.func @transform_2(%arg0: i32, %arg1: i32) -> (i32, i32, i32) {
    %c0_i32 = arith.constant 0 : i32
    %c0_i32_0 = arith.constant 0 : i32
    %c0_i32_1 = arith.constant 0 : i32
    %c0_i32_2 = arith.constant 0 : i32
    return %c0_i32, %c0_i32_0, %c0_i32_1 : i32, i32, i32
  }
  func.func @transform_3(%arg0: i32, %arg1: i32) -> (i32, i32, i32) {
    %c0_i32 = arith.constant 0 : i32
    %c0_i32_0 = arith.constant 0 : i32
    %c0_i32_1 = arith.constant 0 : i32
    %c0_i32_2 = arith.constant 0 : i32
    return %c0_i32, %c0_i32_0, %c0_i32_1 : i32, i32, i32
  }
  func.func @transform_4(%arg0: i32, %arg1: i32) -> (i32, i32) {
    %c0_i32 = arith.constant 0 : i32
    %c0_i32_0 = arith.constant 0 : i32
    %c0_i32_1 = arith.constant 0 : i32
    return %c0_i32, %c0_i32_0 : i32, i32
  }
  func.func @transform_5(%arg0: i32, %arg1: i32) -> (i32, i32) {
    %c0_i32 = arith.constant 0 : i32
    %c0_i32_0 = arith.constant 0 : i32
    %c0_i32_1 = arith.constant 0 : i32
    return %c0_i32, %c0_i32_0 : i32, i32
  }
  func.func @transform_6(%arg0: i32, %arg1: i32) -> (i32, i32) {
    %c0_i32 = arith.constant 0 : i32
    %c0_i32_0 = arith.constant 0 : i32
    %c0_i32_1 = arith.constant 0 : i32
    return %c0_i32, %c0_i32_0 : i32, i32
  }
  func.func @transform_7(%arg0: i32, %arg1: i32) -> (i32, i32) {
    %c0_i32 = arith.constant 0 : i32
    %c0_i32_0 = arith.constant 0 : i32
    %c0_i32_1 = arith.constant 0 : i32
    return %c0_i32, %c0_i32_0 : i32, i32
  }
  func.func @transform_8(%arg0: i32, %arg1: i32) -> (i32, i32) {
    %c0_i32 = arith.constant 0 : i32
    %c0_i32_0 = arith.constant 0 : i32
    %c0_i32_1 = arith.constant 0 : i32
    return %c0_i32, %c0_i32_0 : i32, i32
  }
  func.func @transform_9(%arg0: i32, %arg1: i32) -> (i32, i32, i32) {
    %c0_i32 = arith.constant 0 : i32
    %c0_i32_0 = arith.constant 0 : i32
    return %arg0, %arg1, %c0_i32 : i32, i32, i32
  }
}

</mosaic_0001>

<llo_original>
// kernel: basic_block_discriminator_forward.1
$region0: #{basic_block_discriminator_forward.1}
  #allocation0 [shape = 'u32[]', space=smem, size = 0x4, offset = 0x4, fixed_abs, tag = 'smem constant byte address 0x4 - core index']
  #allocation1 [shape = 'u32[144,128]{1,0:T(1,128)}', space=vmem, size = 0x12000, scoped, tag = 'internal scratch']
  #allocation2 [shape = 'f32[188,128]{1,0:T(8,128)}', space=vmem, size = 0x18000, scoped, tag = 'scratch operand']
  %s0 = inlined_call_operand.vmem [shape: f32[2,2,232,128], index: 0, kind: input, shape index: {}]
  %s1 = inlined_call_operand.vmem [shape: f32[2,64,128], index: 1, kind: input, shape index: {}]
  %s2 = inlined_call_operand.vmem [shape: f32[9,128,128], index: 2, kind: input, shape index: {}]
  %s3 = inlined_call_operand.vmem [shape: f32[9,128,128], index: 3, kind: input, shape index: {}]
  %s4 = inlined_call_operand.vmem [shape: f32[128,128], index: 4, kind: input, shape index: {}]
  %s5 = inlined_call_operand.vmem [shape: f32[1,128], index: 5, kind: input, shape index: {}]
  %s6 = inlined_call_operand.vmem [shape: f32[1,128], index: 6, kind: input, shape index: {}]
  %s7 = inlined_call_operand.vmem [shape: f32[180,1], index: 7, kind: input, shape index: {}]
  %s8 = inlined_call_operand.vmem [shape: f32[32,144], index: 8, kind: input, shape index: {}]
  %s9 = inlined_call_operand.vmem [shape: f32[2,64,128], index: 9, kind: output, shape index: {}]
  %s10 = sld [smem:[#allocation0]]
  $region77: #{basic_block_discriminator_forward.1} parent=0
    _
  %s12 = ssub.s32 1, %s10
  %s13 = scalar_select 0, %s12, %s10
  loop: start=0, step=1, limit=6
  $region2: #{basic_block_discriminator_forward.1} parent=0 // loop_pre_header
    _
  $region3: #{basic_block_discriminator_forward.1} parent=0 // loop_header
    %s15 = sphi 0, %s19
    %p16 = scmp.ge.s32.totalorder %s15, 6
    %s22 = sphi 0, %s34
    %s23 = sphi 0, %s30
    %s24 = sphi 0, %s22
    %s25 = sphi 0, %s23
    %s26 = sphi 0, %s24
    %s27 = sphi 0, %s25
    %s39 = sphi 0, %s41
    %s42 = sphi 0, %s39
    %s43 = sphi 0, %s42
    %s59 = sphi 0, %s43
    %s67 = sphi 0, %s69
    %s70 = sphi 0, %s67
    %s71 = sphi 0, %s70
    %s87 = sphi 0, %s71
    %s91 = sphi 0, %s91
    %s93 = sphi 0, %s91
    %s94 = sphi 0, %s93
    %s108 = sphi 0, %s94
    %s112 = sphi 0, %s112
    %s114 = sphi 0, %s112
    %s115 = sphi 0, %s114
    %s129 = sphi 0, %s115
    %s133 = sphi 0, %s133
    %s135 = sphi 0, %s133
    %s136 = sphi 0, %s135
    %s150 = sphi 0, %s136
    %s154 = sphi 0, %s154
    %s156 = sphi 0, %s154
    %s157 = sphi 0, %s156
    %s171 = sphi 0, %s157
    %s175 = sphi 0, %s175
    %s177 = sphi 0, %s175
    %s178 = sphi 0, %s177
    %s192 = sphi 0, %s178
    %s196 = sphi 0, %s196
    %s198 = sphi 0, %s196
    %s199 = sphi 0, %s198
    %s213 = sphi 0, %s199
    %s217 = sphi 0, %s217
    %s219 = sphi 0, %s217
    %s220 = sphi 0, %s219
    %s234 = sphi 0, %s220
    %s242 = sphi 0, %s244
    %s245 = sphi 0, %s242
    %s246 = sphi 0, %s245
    %s262 = sphi 0, %s246
  $region4: #{basic_block_discriminator_forward.1} parent=0 // loop_header_branch
    %18 = sbr.rel (%p16) target = $region8
  $region5: #{basic_block_discriminator_forward.1} parent=0 // loop_body
    %s20 = ssub.s32 %s15, 1
    %s21 = ssub.s32 %s15, 2
    %s28 = sadd.s32 1, %s23
    %p29 = scmp.ge.s32.totalorder %s28, 2
    %s30 = scalar_select %p29, 0, %s28
    %s31 = sadd.s32 1, %s22
    %s32 = scalar_select %p29, %s31, %s22
    %p33 = scmp.ge.s32.totalorder %s32, 2
    %s34 = scalar_select %p33, 0, %s32
    %s35 = ssub.s32 %s22, %s34
    %s36 = ssub.s32 %s23, %s30
    %s37 = sor.u32 %s35, %s36
    %p38 = scmp.eq.s32.totalorder %s37, 0
    %s40 = sadd.s32 %s39, 1
    %s41 = scalar_select %p38, %s39, %s40
    %p44 = pneg %p38
    %p45 = scmp.eq.s32.totalorder %s15, 3
    %p46 = por %p44, %p45
    %p47 = scmp.ne.s32.totalorder %s39, %s42
    %p48 = scmp.eq.s32.totalorder %s15, 0
    %p49 = por %p47, %p48
    %p50 = scmp.ne.s32.totalorder %s39, %s42
    %p51 = scmp.eq.s32.totalorder %s20, 3
    %p52 = por %p50, %p51
    %p53 = scmp.ne.s32.totalorder %s42, %s43
    %p54 = scmp.eq.s32.totalorder %s20, 0
    %p55 = por %p53, %p54
    %p56 = scmp.ne.s32.totalorder %s42, %s43
    %p57 = scmp.eq.s32.totalorder %s21, 3
    %p58 = por %p56, %p57
    %p60 = scmp.ne.s32.totalorder %s43, %s59
    %p61 = scmp.eq.s32.totalorder %s21, 0
    %p62 = por %p60, %p61
    %s63 = ssub.s32 %s22, %s34
    %s64 = ssub.s32 %s23, %s30
    %s65 = sor.u32 %s63, %s64
    %p66 = scmp.eq.s32.totalorder %s65, 0
    %s68 = sadd.s32 %s67, 1
    %s69 = scalar_select %p66, %s67, %s68
    %p72 = pneg %p66
    %p73 = scmp.eq.s32.totalorder %s15, 3
    %p74 = por %p72, %p73
    %p75 = scmp.ne.s32.totalorder %s67, %s70
    %p76 = scmp.eq.s32.totalorder %s15, 0
    %p77 = por %p75, %p76
    %p78 = scmp.ne.s32.totalorder %s67, %s70
    %p79 = scmp.eq.s32.totalorder %s20, 3
    %p80 = por %p78, %p79
    %p81 = scmp.ne.s32.totalorder %s70, %s71
    %p82 = scmp.eq.s32.totalorder %s20, 0
    %p83 = por %p81, %p82
    %p84 = scmp.ne.s32.totalorder %s70, %s71
    %p85 = scmp.eq.s32.totalorder %s21, 3
    %p86 = por %p84, %p85
    %p88 = scmp.ne.s32.totalorder %s71, %s87
    %p89 = scmp.eq.s32.totalorder %s21, 0
    %p90 = por %p88, %p89
    %s92 = sadd.s32 %s91, 1
    %p95 = scmp.eq.s32.totalorder %s15, 3
    %p96 = scmp.ne.s32.totalorder %s91, %s93
    %p97 = scmp.eq.s32.totalorder %s15, 0
    %p98 = por %p96, %p97
    %p99 = scmp.ne.s32.totalorder %s91, %s93
    %p100 = scmp.eq.s32.totalorder %s20, 3
    %p101 = por %p99, %p100
    %p102 = scmp.ne.s32.totalorder %s93, %s94
    %p103 = scmp.eq.s32.totalorder %s20, 0
    %p104 = por %p102, %p103
    %p105 = scmp.ne.s32.totalorder %s93, %s94
    %p106 = scmp.eq.s32.totalorder %s21, 3
    %p107 = por %p105, %p106
    %p109 = scmp.ne.s32.totalorder %s94, %s108
    %p110 = scmp.eq.s32.totalorder %s21, 0
    %p111 = por %p109, %p110
    %s113 = sadd.s32 %s112, 1
    %p116 = scmp.eq.s32.totalorder %s15, 3
    %p117 = scmp.ne.s32.totalorder %s112, %s114
    %p118 = scmp.eq.s32.totalorder %s15, 0
    %p119 = por %p117, %p118
    %p120 = scmp.ne.s32.totalorder %s112, %s114
    %p121 = scmp.eq.s32.totalorder %s20, 3
    %p122 = por %p120, %p121
    %p123 = scmp.ne.s32.totalorder %s114, %s115
    %p124 = scmp.eq.s32.totalorder %s20, 0
    %p125 = por %p123, %p124
    %p126 = scmp.ne.s32.totalorder %s114, %s115
    %p127 = scmp.eq.s32.totalorder %s21, 3
    %p128 = por %p126, %p127
    %p130 = scmp.ne.s32.totalorder %s115, %s129
    %p131 = scmp.eq.s32.totalorder %s21, 0
    %p132 = por %p130, %p131
    %s134 = sadd.s32 %s133, 1
    %p137 = scmp.eq.s32.totalorder %s15, 3
    %p138 = scmp.ne.s32.totalorder %s133, %s135
    %p139 = scmp.eq.s32.totalorder %s15, 0
    %p140 = por %p138, %p139
    %p141 = scmp.ne.s32.totalorder %s133, %s135
    %p142 = scmp.eq.s32.totalorder %s20, 3
    %p143 = por %p141, %p142
    %p144 = scmp.ne.s32.totalorder %s135, %s136
    %p145 = scmp.eq.s32.totalorder %s20, 0
    %p146 = por %p144, %p145
    %p147 = scmp.ne.s32.totalorder %s135, %s136
    %p148 = scmp.eq.s32.totalorder %s21, 3
    %p149 = por %p147, %p148
    %p151 = scmp.ne.s32.totalorder %s136, %s150
    %p152 = scmp.eq.s32.totalorder %s21, 0
    %p153 = por %p151, %p152
    %s155 = sadd.s32 %s154, 1
    %p158 = scmp.eq.s32.totalorder %s15, 3
    %p159 = scmp.ne.s32.totalorder %s154, %s156
    %p160 = scmp.eq.s32.totalorder %s15, 0
    %p161 = por %p159, %p160
    %p162 = scmp.ne.s32.totalorder %s154, %s156
    %p163 = scmp.eq.s32.totalorder %s20, 3
    %p164 = por %p162, %p163
    %p165 = scmp.ne.s32.totalorder %s156, %s157
    %p166 = scmp.eq.s32.totalorder %s20, 0
    %p167 = por %p165, %p166
    %p168 = scmp.ne.s32.totalorder %s156, %s157
    %p169 = scmp.eq.s32.totalorder %s21, 3
    %p170 = por %p168, %p169
    %p172 = scmp.ne.s32.totalorder %s157, %s171
    %p173 = scmp.eq.s32.totalorder %s21, 0
    %p174 = por %p172, %p173
    %s176 = sadd.s32 %s175, 1
    %p179 = scmp.eq.s32.totalorder %s15, 3
    %p180 = scmp.ne.s32.totalorder %s175, %s177
    %p181 = scmp.eq.s32.totalorder %s15, 0
    %p182 = por %p180, %p181
    %p183 = scmp.ne.s32.totalorder %s175, %s177
    %p184 = scmp.eq.s32.totalorder %s20, 3
    %p185 = por %p183, %p184
    %p186 = scmp.ne.s32.totalorder %s177, %s178
    %p187 = scmp.eq.s32.totalorder %s20, 0
    %p188 = por %p186, %p187
    %p189 = scmp.ne.s32.totalorder %s177, %s178
    %p190 = scmp.eq.s32.totalorder %s21, 3
    %p191 = por %p189, %p190
    %p193 = scmp.ne.s32.totalorder %s178, %s192
    %p194 = scmp.eq.s32.totalorder %s21, 0
    %p195 = por %p193, %p194
    %s197 = sadd.s32 %s196, 1
    %p200 = scmp.eq.s32.totalorder %s15, 3
    %p201 = scmp.ne.s32.totalorder %s196, %s198
    %p202 = scmp.eq.s32.totalorder %s15, 0
    %p203 = por %p201, %p202
    %p204 = scmp.ne.s32.totalorder %s196, %s198
    %p205 = scmp.eq.s32.totalorder %s20, 3
    %p206 = por %p204, %p205
    %p207 = scmp.ne.s32.totalorder %s198, %s199
    %p208 = scmp.eq.s32.totalorder %s20, 0
    %p209 = por %p207, %p208
    %p210 = scmp.ne.s32.totalorder %s198, %s199
    %p211 = scmp.eq.s32.totalorder %s21, 3
    %p212 = por %p210, %p211
    %p214 = scmp.ne.s32.totalorder %s199, %s213
    %p215 = scmp.eq.s32.totalorder %s21, 0
    %p216 = por %p214, %p215
    %s218 = sadd.s32 %s217, 1
    %p221 = scmp.eq.s32.totalorder %s15, 3
    %p222 = scmp.ne.s32.totalorder %s217, %s219
    %p223 = scmp.eq.s32.totalorder %s15, 0
    %p224 = por %p222, %p223
    %p225 = scmp.ne.s32.totalorder %s217, %s219
    %p226 = scmp.eq.s32.totalorder %s20, 3
    %p227 = por %p225, %p226
    %p228 = scmp.ne.s32.totalorder %s219, %s220
    %p229 = scmp.eq.s32.totalorder %s20, 0
    %p230 = por %p228, %p229
    %p231 = scmp.ne.s32.totalorder %s219, %s220
    %p232 = scmp.eq.s32.totalorder %s21, 3
    %p233 = por %p231, %p232
    %p235 = scmp.ne.s32.totalorder %s220, %s234
    %p236 = scmp.eq.s32.totalorder %s21, 0
    %p237 = por %p235, %p236
    %s238 = ssub.s32 %s22, %s34
    %s239 = ssub.s32 %s23, %s30
    %s240 = sor.u32 %s238, %s239
    %p241 = scmp.eq.s32.totalorder %s240, 0
    %s243 = sadd.s32 %s242, 1
    %s244 = scalar_select %p241, %s242, %s243
    %p247 = pneg %p241
    %p248 = scmp.eq.s32.totalorder %s15, 3
    %p249 = por %p247, %p248
    %p250 = scmp.ne.s32.totalorder %s242, %s245
    %p251 = scmp.eq.s32.totalorder %s15, 0
    %p252 = por %p250, %p251
    %p253 = scmp.ne.s32.totalorder %s242, %s245
    %p254 = scmp.eq.s32.totalorder %s20, 3
    %p255 = por %p253, %p254
    %p256 = scmp.ne.s32.totalorder %s245, %s246
    %p257 = scmp.eq.s32.totalorder %s20, 0
    %p258 = por %p256, %p257
    %p259 = scmp.ne.s32.totalorder %s245, %s246
    %p260 = scmp.eq.s32.totalorder %s21, 3
    %p261 = por %p259, %p260
    %p263 = scmp.ne.s32.totalorder %s246, %s262
    %p264 = scmp.eq.s32.totalorder %s21, 0
    %p265 = por %p263, %p264
    %p266 = scmp.le.s32.totalorder 1, %s15
    %p267 = scmp.lt.s32.totalorder %s15, 5
    %p268 = pnand %p266, %p267
    %p269 = pneg %p268
    // Predicated region
    $region9: #{basic_block_discriminator_forward.1} parent=5 // pred_check
      _
    $region10: #{basic_block_discriminator_forward.1} parent=5 // pred_check_branch
      %271 = sbr.rel (%p268) target = $region12
    $region11: #{basic_block_discriminator_forward.1} parent=5 // pred_region
      %s272 = ssub.s32 %s15, 1
      // Predicated region
      $region13: #{basic_block_discriminator_forward.1} parent=11 // pred_check
        %p273 = pneg %p104
      $region14: #{basic_block_discriminator_forward.1} parent=11 // pred_check_branch
        %275 = sbr.rel (%p273) target = $region16
      $region15: #{basic_block_discriminator_forward.1} parent=11 // pred_region
        _
      $region16: #{basic_block_discriminator_forward.1} parent=11 // pred_fallthru
        _
      // Predicated region
      $region17: #{basic_block_discriminator_forward.1} parent=11 // pred_check
        %p276 = pneg %p125
      $region18: #{basic_block_discriminator_forward.1} parent=11 // pred_check_branch
        %278 = sbr.rel (%p276) target = $region20
      $region19: #{basic_block_discriminator_forward.1} parent=11 // pred_region
        _
      $region20: #{basic_block_discriminator_forward.1} parent=11 // pred_fallthru
        _
      // Predicated region
      $region21: #{basic_block_discriminator_forward.1} parent=11 // pred_check
        %p279 = pneg %p146
      $region22: #{basic_block_discriminator_forward.1} parent=11 // pred_check_branch
        %281 = sbr.rel (%p279) target = $region24
      $region23: #{basic_block_discriminator_forward.1} parent=11 // pred_region
        _
      $region24: #{basic_block_discriminator_forward.1} parent=11 // pred_fallthru
        _
      // Predicated region
      $region25: #{basic_block_discriminator_forward.1} parent=11 // pred_check
        %p282 = pneg %p167
      $region26: #{basic_block_discriminator_forward.1} parent=11 // pred_check_branch
        %284 = sbr.rel (%p282) target = $region28
      $region27: #{basic_block_discriminator_forward.1} parent=11 // pred_region
        _
      $region28: #{basic_block_discriminator_forward.1} parent=11 // pred_fallthru
        _
      // Predicated region
      $region29: #{basic_block_discriminator_forward.1} parent=11 // pred_check
        %p285 = pneg %p188
      $region30: #{basic_block_discriminator_forward.1} parent=11 // pred_check_branch
        %287 = sbr.rel (%p285) target = $region32
      $region31: #{basic_block_discriminator_forward.1} parent=11 // pred_region
        _
      $region32: #{basic_block_discriminator_forward.1} parent=11 // pred_fallthru
        _
      // Predicated region
      $region33: #{basic_block_discriminator_forward.1} parent=11 // pred_check
        %p288 = pneg %p209
      $region34: #{basic_block_discriminator_forward.1} parent=11 // pred_check_branch
        %290 = sbr.rel (%p288) target = $region36
      $region35: #{basic_block_discriminator_forward.1} parent=11 // pred_region
        _
      $region36: #{basic_block_discriminator_forward.1} parent=11 // pred_fallthru
        _
      // Predicated region
      $region37: #{basic_block_discriminator_forward.1} parent=11 // pred_check
        %p291 = pneg %p230
      $region38: #{basic_block_discriminator_forward.1} parent=11 // pred_check_branch
        %293 = sbr.rel (%p291) target = $region40
      $region39: #{basic_block_discriminator_forward.1} parent=11 // pred_region
        _
      $region40: #{basic_block_discriminator_forward.1} parent=11 // pred_fallthru
        _
    $region12: #{basic_block_discriminator_forward.1} parent=5 // pred_fallthru
      _
    %p294 = scmp.lt.s32.totalorder %s15, 4
    // Predicated region
    $region41: #{basic_block_discriminator_forward.1} parent=5 // pred_check
      %p295 = pneg %p294
    $region42: #{basic_block_discriminator_forward.1} parent=5 // pred_check_branch
      %297 = sbr.rel (%p295) target = $region44
    $region43: #{basic_block_discriminator_forward.1} parent=5 // pred_region
      // Predicated region
      $region45: #{basic_block_discriminator_forward.1} parent=43 // pred_check
        %p298 = pneg %p49
      $region46: #{basic_block_discriminator_forward.1} parent=43 // pred_check_branch
        %300 = sbr.rel (%p298) target = $region48
      $region47: #{basic_block_discriminator_forward.1} parent=43 // pred_region
        %p301 = scmp.lt.s32.totalorder %s22, 1
        %s302 = scalar_select %p301, %s22, 1
        %p303 = scmp.lt.s32.totalorder %s23, 1
        %s304 = scalar_select %p303, %s23, 1
        %s305 = smul.addr %s304, 29
        %s306 = smul.addr %s302, 58
        %s307 = sadd.s32 %s305, %s306
        %s308 = smul.addr %s307, 8
        %s309 = scalar_lea.vmem %s0, %s308
      $region48: #{basic_block_discriminator_forward.1} parent=43 // pred_fallthru
        _
      // Predicated region
      $region49: #{basic_block_discriminator_forward.1} parent=43 // pred_check
        %p310 = pneg %p77
      $region50: #{basic_block_discriminator_forward.1} parent=43 // pred_check_branch
        %312 = sbr.rel (%p310) target = $region52
      $region51: #{basic_block_discriminator_forward.1} parent=43 // pred_region
        %s313 = smul.u32 4, %s23
        %p314 = scmp.lt.s32.totalorder %s22, 1
        %s315 = scalar_select %p314, %s22, 1
        %p316 = scmp.lt.s32.totalorder %s313, 7
        %s317 = scalar_select %p316, %s313, 7
        %s318 = smul.addr %s315, 8
        %s319 = sadd.s32 %s317, %s318
        %s320 = smul.addr %s319, 8
        %s321 = scalar_lea.vmem %s1, %s320
        %s322 = smul.u32 4, %s23
      $region52: #{basic_block_discriminator_forward.1} parent=43 // pred_fallthru
        _
    $region44: #{basic_block_discriminator_forward.1} parent=5 // pred_fallthru
      _
    %p323 = scmp.le.s32.totalorder 1, %s15
    %p324 = scmp.lt.s32.totalorder %s15, 5
    %p325 = pnand %p323, %p324
    %p326 = pneg %p325
    // Predicated region
    $region53: #{basic_block_discriminator_forward.1} parent=5 // pred_check
      _
    $region54: #{basic_block_discriminator_forward.1} parent=5 // pred_check_branch
      %328 = sbr.rel (%p325) target = $region56
    $region55: #{basic_block_discriminator_forward.1} parent=5 // pred_region
      %s329 = ssub.s32 %s15, 1
      %p330 = scmp.lt.s32.totalorder %s24, 1
      %s331 = scalar_select %p330, %s24, 1
      %p332 = scmp.lt.s32.totalorder %s25, 1
      %s333 = scalar_select %p332, %s25, 1
      %s334 = smul.addr %s333, 29
      %s335 = smul.addr %s331, 58
      %s336 = sadd.s32 %s334, %s335
      %s337 = smul.addr %s336, 8
      %s338 = scalar_lea.vmem %s0, %s337
      %p339 = pneg %p55
      %p340 = pneg %p52
      %s341 = smul.u32 4, %s25
      %p342 = scmp.lt.s32.totalorder %s24, 1
      %s343 = scalar_select %p342, %s24, 1
      %p344 = scmp.lt.s32.totalorder %s341, 7
      %s345 = scalar_select %p344, %s341, 7
      %s346 = smul.addr %s343, 8
      %s347 = sadd.s32 %s345, %s346
      %s348 = smul.addr %s347, 8
      %s349 = scalar_lea.vmem %s1, %s348
      %p350 = pneg %p83
      %p351 = pneg %p80
      %p352 = pneg %p104
      %p353 = pneg %p101
      %p354 = pneg %p125
      %p355 = pneg %p122
      %p356 = pneg %p146
      %p357 = pneg %p143
      %p358 = pneg %p167
      %p359 = pneg %p164
      %p360 = pneg %p188
      %p361 = pneg %p185
      %p362 = pneg %p209
      %p363 = pneg %p206
      %p364 = pneg %p230
      %p365 = pneg %p227
      %p366 = pneg %p258
      %p367 = pneg %p255
      %s368 = smul.u32 4, %s25
      %p369 = scmp.lt.s32.totalorder %s24, 1
      %s370 = scalar_select %p369, %s24, 1
      %p371 = scmp.lt.s32.totalorder %s368, 7
      %s372 = scalar_select %p371, %s368, 7
      %s373 = smul.addr %s370, 8
      %s374 = sadd.s32 %s372, %s373
      %s375 = smul.addr %s374, 8
      %s376 = scalar_lea.vmem %s9, %s375
      %p377 = scmp.lt.s32.totalorder %s24, 1
      %s378 = scalar_select %p377, %s24, 1
      %p379 = scmp.lt.s32.totalorder %s25, 1
      %s380 = scalar_select %p379, %s25, 1
      %s381 = smul.addr %s380, 29
      %s382 = smul.addr %s378, 58
      %s383 = sadd.s32 %s381, %s382
      %s384 = smul.addr %s383, 8
      %s385 = scalar_lea.vmem %s0, %s384
      %s386 = smul.u32 4, %s25
      %p387 = scmp.lt.s32.totalorder %s24, 1
      %s388 = scalar_select %p387, %s24, 1
      %p389 = scmp.lt.s32.totalorder %s386, 7
      %s390 = scalar_select %p389, %s386, 7
      %s391 = smul.addr %s388, 8
      %s392 = sadd.s32 %s390, %s391
      %s393 = smul.addr %s392, 8
      %s394 = scalar_lea.vmem %s1, %s393
      %s395 = smul.u32 4, %s25
      %s396 = smul.u32 4, %s25
      %p397 = scmp.lt.s32.totalorder %s24, 1
      %s398 = scalar_select %p397, %s24, 1
      %p399 = scmp.lt.s32.totalorder %s396, 7
      %s400 = scalar_select %p399, %s396, 7
      %s401 = smul.addr %s398, 8
      %s402 = sadd.s32 %s400, %s401
      %s403 = smul.addr %s402, 8
      %s404 = scalar_lea.vmem %s9, %s403
      %s405 = smul.u32 4, %s25
      %406 = vst [vmem:[#allocation2 + $0xb4] sm:$0xff] 0.0
      %v407 = vld [vmem:[%s7] sm:$0xff]
      %v408 = vld [vmem:[%s7 + $0x8] sm:$0xff]
      %v409 = vld [vmem:[%s7 + $0x10] sm:$0xff]
      %v410 = vld [vmem:[%s7 + $0x18] sm:$0xff]
      %v411 = vld [vmem:[%s7 + $0x20] sm:$0xff]
      %v412 = vld [vmem:[%s7 + $0x28] sm:$0xff]
      %v413 = vld [vmem:[%s7 + $0x30] sm:$0xff]
      %v414 = vld [vmem:[%s7 + $0x38] sm:$0xff]
      %v415 = vld [vmem:[%s7 + $0x40] sm:$0xff]
      %v416 = vld [vmem:[%s7 + $0x48] sm:$0xff]
      %v417 = vld [vmem:[%s7 + $0x50] sm:$0xff]
      %v418 = vld [vmem:[%s7 + $0x58] sm:$0xff]
      %v419 = vld [vmem:[%s7 + $0x60] sm:$0xff]
      %v420 = vld [vmem:[%s7 + $0x68] sm:$0xff]
      %v421 = vld [vmem:[%s7 + $0x70] sm:$0xff]
      %v422 = vld [vmem:[%s7 + $0x78] sm:$0xff]
      %v423 = vld [vmem:[%s7 + $0x80] sm:$0xff]
      %v424 = vld [vmem:[%s7 + $0x88] sm:$0xff]
      %v425 = vld [vmem:[%s7 + $0x90] sm:$0xff]
      %v426 = vld [vmem:[%s7 + $0x98] sm:$0xff]
      %v427 = vld [vmem:[%s7 + $0xa0] sm:$0xff]
      %v428 = vld [vmem:[%s7 + $0xa8] sm:$0xff]
      %v429 = vld [vmem:[%s7 + $0xb0] sm:$0xf]
      %v430 = vld [vmem:[%s385 + $0x7] sm:$0xff]
      %v431 = vld [vmem:[%s385 + $0xf] sm:$0xff]
      %v432 = vld [vmem:[%s385 + $0x17] sm:$0xff]
      %v433 = vld [vmem:[%s385 + $0x1f] sm:$0xff]
      %v434 = vld [vmem:[%s385 + $0x27] sm:$0xff]
      %v435 = vld [vmem:[%s385 + $0x2f] sm:$0xff]
      %v436 = vld [vmem:[%s385 + $0x37] sm:$0xff]
      %v437 = vld [vmem:[%s385 + $0x3f] sm:$0xff]
      %v438 = vld [vmem:[%s385 + $0x47] sm:$0xff]
      %v439 = vld [vmem:[%s385 + $0x4f] sm:$0xff]
      %v440 = vld [vmem:[%s385 + $0x57] sm:$0xff]
      %v441 = vld [vmem:[%s385 + $0x5f] sm:$0xff]
      %v442 = vld [vmem:[%s385 + $0x67] sm:$0xff]
      %v443 = vld [vmem:[%s385 + $0x6f] sm:$0xff]
      %v444 = vld [vmem:[%s385 + $0x77] sm:$0xff]
      %v445 = vld [vmem:[%s385 + $0x7f] sm:$0xff]
      %v446 = vld [vmem:[%s385 + $0x87] sm:$0xff]
      %v447 = vld [vmem:[%s385 + $0x8f] sm:$0xff]
      %v448 = vld [vmem:[%s385 + $0x97] sm:$0xff]
      %v449 = vld [vmem:[%s385 + $0x9f] sm:$0xff]
      %v450 = vld [vmem:[%s385 + $0xa7] sm:$0xff]
      %v451 = vld [vmem:[%s385 + $0xaf] sm:$0xff]
      %v452 = vld [vmem:[%s385 + $0xb7] sm:$0xf]
      %v453 = vld [vmem:[%s2] sm:$0xff]
      %v454 = vld [vmem:[%s2 + $0x8] sm:$0xff]
      %v455 = vld [vmem:[%s2 + $0x10] sm:$0xff]
      %v456 = vld [vmem:[%s2 + $0x18] sm:$0xff]
      %v457 = vld [vmem:[%s2 + $0x20] sm:$0xff]
      %v458 = vld [vmem:[%s2 + $0x28] sm:$0xff]
      %v459 = vld [vmem:[%s2 + $0x30] sm:$0xff]
      %v460 = vld [vmem:[%s2 + $0x38] sm:$0xff]
      %v461 = vld [vmem:[%s2 + $0x40] sm:$0xff]
      %v462 = vld [vmem:[%s2 + $0x48] sm:$0xff]
      %v463 = vld [vmem:[%s2 + $0x50] sm:$0xff]
      %v464 = vld [vmem:[%s2 + $0x58] sm:$0xff]
      %v465 = vld [vmem:[%s2 + $0x60] sm:$0xff]
      %v466 = vld [vmem:[%s2 + $0x68] sm:$0xff]
      %v467 = vld [vmem:[%s2 + $0x70] sm:$0xff]
      %v468 = vld [vmem:[%s2 + $0x78] sm:$0xff]
      %v469 = vld [vmem:[%s385 + $0x8] sm:$0xff]
      %v470 = vld [vmem:[%s385 + $0x10] sm:$0xff]
      %v471 = vld [vmem:[%s385 + $0x18] sm:$0xff]
      %v472 = vld [vmem:[%s385 + $0x20] sm:$0xff]
      %v473 = vld [vmem:[%s385 + $0x28] sm:$0xff]
      %v474 = vld [vmem:[%s385 + $0x30] sm:$0xff]
      %v475 = vld [vmem:[%s385 + $0x38] sm:$0xff]
      %v476 = vld [vmem:[%s385 + $0x40] sm:$0xff]
      %v477 = vld [vmem:[%s385 + $0x48] sm:$0xff]
      %v478 = vld [vmem:[%s385 + $0x50] sm:$0xff]
      %v479 = vld [vmem:[%s385 + $0x58] sm:$0xff]
      %v480 = vld [vmem:[%s385 + $0x60] sm:$0xff]
      %v481 = vld [vmem:[%s385 + $0x68] sm:$0xff]
      %v482 = vld [vmem:[%s385 + $0x70] sm:$0xff]
      %v483 = vld [vmem:[%s385 + $0x78] sm:$0xff]
      %v484 = vld [vmem:[%s385 + $0x80] sm:$0xff]
      %v485 = vld [vmem:[%s385 + $0x88] sm:$0xff]
      %v486 = vld [vmem:[%s385 + $0x90] sm:$0xff]
      %v487 = vld [vmem:[%s385 + $0x98] sm:$0xff]
      %v488 = vld [vmem:[%s385 + $0xa0] sm:$0xff]
      %v489 = vld [vmem:[%s385 + $0xa8] sm:$0xff]
      %v490 = vld [vmem:[%s385 + $0xb0] sm:$0xff]
      %v491 = vld [vmem:[%s385 + $0xb8] sm:$0xf]
      %s492 = scalar_lea.vmem %s2, 128
      %v493 = vld [vmem:[%s492] sm:$0xff]
      %v494 = vld [vmem:[%s492 + $0x8] sm:$0xff]
      %v495 = vld [vmem:[%s492 + $0x10] sm:$0xff]
      %v496 = vld [vmem:[%s492 + $0x18] sm:$0xff]
      %v497 = vld [vmem:[%s492 + $0x20] sm:$0xff]
      %v498 = vld [vmem:[%s492 + $0x28] sm:$0xff]
      %v499 = vld [vmem:[%s492 + $0x30] sm:$0xff]
      %v500 = vld [vmem:[%s492 + $0x38] sm:$0xff]
      %v501 = vld [vmem:[%s492 + $0x40] sm:$0xff]
      %v502 = vld [vmem:[%s492 + $0x48] sm:$0xff]
      %v503 = vld [vmem:[%s492 + $0x50] sm:$0xff]
      %v504 = vld [vmem:[%s492 + $0x58] sm:$0xff]
      %v505 = vld [vmem:[%s492 + $0x60] sm:$0xff]
      %v506 = vld [vmem:[%s492 + $0x68] sm:$0xff]
      %v507 = vld [vmem:[%s492 + $0x70] sm:$0xff]
      %v508 = vld [vmem:[%s492 + $0x78] sm:$0xff]
      %509 = vmatprep.subr.mxu0 0.0
      %510 = vmatpush1.msra.mxu0 %v508
      %511 = vmatprep.subr.mxu0 0.0
      %512 = vmatpush1.msra.mxu0 %v507
      %513 = vmatprep.subr.mxu0 0.0
      %514 = vmatpush1.msra.mxu0 %v506
      %515 = vmatprep.subr.mxu0 0.0
      %516 = vmatpush1.msra.mxu0 %v505
      %517 = vmatprep.subr.mxu0 0.0
      %518 = vmatpush1.msra.mxu0 %v504
      %519 = vmatprep.subr.mxu0 0.0
      %520 = vmatpush1.msra.mxu0 %v503
      %521 = vmatprep.subr.mxu0 0.0
      %522 = vmatpush1.msra.mxu0 %v502
      %523 = vmatprep.subr.mxu0 0.0
      %524 = vmatpush1.msra.mxu0 %v501
      %525 = vmatprep.subr.mxu0 0.0
      %526 = vmatpush1.msra.mxu0 %v500
      %527 = vmatprep.subr.mxu0 0.0
      %528 = vmatpush1.msra.mxu0 %v499
      %529 = vmatprep.subr.mxu0 0.0
      %530 = vmatpush1.msra.mxu0 %v498
      %531 = vmatprep.subr.mxu0 0.0
      %532 = vmatpush1.msra.mxu0 %v497
      %533 = vmatprep.subr.mxu0 0.0
      %534 = vmatpush1.msra.mxu0 %v496
      %535 = vmatprep.subr.mxu0 0.0
      %536 = vmatpush1.msra.mxu0 %v495
      %537 = vmatprep.subr.mxu0 0.0
      %538 = vmatpush1.msra.mxu0 %v494
      %539 = vmatprep.subr.mxu0 0.0
      %540 = vmatpush1.msra.mxu0 %v493
      %541 = vmatprep.subr.mxu0 0.0
      %542 = vmatpush2.msra.mxu0 0.0
      %543 = vmatprep.subr.mxu0 0.0
      %544 = vmatpush2.msra.mxu0 0.0
      %545 = vmatprep.subr.mxu0 0.0
      %546 = vmatpush2.msra.mxu0 0.0
      %547 = vmatprep.subr.mxu0 0.0
      %548 = vmatpush2.msra.mxu0 0.0
      %549 = vmatprep.subr.mxu0 0.0
      %550 = vmatpush2.msra.mxu0 0.0
      %551 = vmatprep.subr.mxu0 0.0
      %552 = vmatpush2.msra.mxu0 0.0
      %553 = vmatprep.subr.mxu0 0.0
      %554 = vmatpush2.msra.mxu0 0.0
      %555 = vmatprep.subr.mxu0 0.0
      %556 = vmatpush2.msra.mxu0 0.0
      %557 = vmatprep.subr.mxu0 0.0
      %558 = vmatpush2.msra.mxu0 0.0
      %559 = vmatprep.subr.mxu0 0.0
      %560 = vmatpush2.msra.mxu0 0.0
      %561 = vmatprep.subr.mxu0 0.0
      %562 = vmatpush2.msra.mxu0 0.0
      %563 = vmatprep.subr.mxu0 0.0
      %564 = vmatpush2.msra.mxu0 0.0
      %565 = vmatprep.subr.mxu0 0.0
      %566 = vmatpush2.msra.mxu0 0.0
      %567 = vmatprep.subr.mxu0 0.0
      %568 = vmatpush2.msra.mxu0 0.0
      %569 = vmatprep.subr.mxu0 0.0
      %570 = vmatpush2.msra.mxu0 0.0
      %571 = vmatprep.subr.mxu0 0.0
      %572 = vmatpush2.msra.mxu0 0.0
      %573 = vmatprep.mubr.f32.mxu0 0.0
      %574 = vmatmul.mubr.f32.gmra.mxu0 %v469
      %v575 = vpop.f32.mrf.mxu0
      %v576 = vadd.f32 0.0, %v575
      %v577 = vpop.f32.mrf.mxu0
      %578 = vmatprep.mubr.f32.mxu0 0.0
      %579 = vmatmul.mubr.f32.gmra.mxu0 %v470
      %v580 = vpop.f32.mrf.mxu0
      %v581 = vadd.f32 0.0, %v580
      %v582 = vpop.f32.mrf.mxu0
      %583 = vmatprep.mubr.f32.mxu0 0.0
      %584 = vmatmul.mubr.f32.gmra.mxu0 %v471
      %v585 = vpop.f32.mrf.mxu0
      %v586 = vadd.f32 0.0, %v585
      %v587 = vpop.f32.mrf.mxu0
      %588 = vmatprep.mubr.f32.mxu0 0.0
      %589 = vmatmul.mubr.f32.gmra.mxu0 %v472
      %v590 = vpop.f32.mrf.mxu0
      %v591 = vadd.f32 0.0, %v590
      %v592 = vpop.f32.mrf.mxu0
      %593 = vmatprep.mubr.f32.mxu0 0.0
      %594 = vmatmul.mubr.f32.gmra.mxu0 %v473
      %v595 = vpop.f32.mrf.mxu0
      %v596 = vadd.f32 0.0, %v595
      %v597 = vpop.f32.mrf.mxu0
      %598 = vmatprep.mubr.f32.mxu0 0.0
      %599 = vmatmul.mubr.f32.gmra.mxu0 %v474
      %v600 = vpop.f32.mrf.mxu0
      %v601 = vadd.f32 0.0, %v600
      %v602 = vpop.f32.mrf.mxu0
      %603 = vmatprep.mubr.f32.mxu0 0.0
      %604 = vmatmul.mubr.f32.gmra.mxu0 %v475
      %v605 = vpop.f32.mrf.mxu0
      %v606 = vadd.f32 0.0, %v605
      %v607 = vpop.f32.mrf.mxu0
      %608 = vmatprep.mubr.f32.mxu0 0.0
      %609 = vmatmul.mubr.f32.gmra.mxu0 %v476
      %v610 = vpop.f32.mrf.mxu0
      %v611 = vadd.f32 0.0, %v610
      %v612 = vpop.f32.mrf.mxu0
      %613 = vmatprep.mubr.f32.mxu0 0.0
      %614 = vmatmul.mubr.f32.gmra.mxu0 %v477
      %v615 = vpop.f32.mrf.mxu0
      %v616 = vadd.f32 0.0, %v615
      %v617 = vpop.f32.mrf.mxu0
      %618 = vmatprep.mubr.f32.mxu0 0.0
      %619 = vmatmul.mubr.f32.gmra.mxu0 %v478
      %v620 = vpop.f32.mrf.mxu0
      %v621 = vadd.f32 0.0, %v620
      %v622 = vpop.f32.mrf.mxu0
      %623 = vmatprep.mubr.f32.mxu0 0.0
      %624 = vmatmul.mubr.f32.gmra.mxu0 %v479
      %v625 = vpop.f32.mrf.mxu0
      %v626 = vadd.f32 0.0, %v625
      %v627 = vpop.f32.mrf.mxu0
      %628 = vmatprep.mubr.f32.mxu0 0.0
      %629 = vmatmul.mubr.f32.gmra.mxu0 %v480
      %v630 = vpop.f32.mrf.mxu0
      %v631 = vadd.f32 0.0, %v630
      %v632 = vpop.f32.mrf.mxu0
      %633 = vmatprep.mubr.f32.mxu0 0.0
      %634 = vmatmul.mubr.f32.gmra.mxu0 %v481
      %v635 = vpop.f32.mrf.mxu0
      %v636 = vadd.f32 0.0, %v635
      %v637 = vpop.f32.mrf.mxu0
      %638 = vmatprep.mubr.f32.mxu0 0.0
      %639 = vmatmul.mubr.f32.gmra.mxu0 %v482
      %v640 = vpop.f32.mrf.mxu0
      %v641 = vadd.f32 0.0, %v640
      %v642 = vpop.f32.mrf.mxu0
      %643 = vmatprep.mubr.f32.mxu0 0.0
      %644 = vmatmul.mubr.f32.gmra.mxu0 %v483
      %v645 = vpop.f32.mrf.mxu0
      %v646 = vadd.f32 0.0, %v645
      %v647 = vpop.f32.mrf.mxu0
      %648 = vmatprep.mubr.f32.mxu0 0.0
      %649 = vmatmul.mubr.f32.gmra.mxu0 %v484
      %v650 = vpop.f32.mrf.mxu0
      %v651 = vadd.f32 0.0, %v650
      %v652 = vpop.f32.mrf.mxu0
      %653 = vmatprep.mubr.f32.mxu0 0.0
      %654 = vmatmul.mubr.f32.gmra.mxu0 %v485
      %v655 = vpop.f32.mrf.mxu0
      %v656 = vadd.f32 0.0, %v655
      %v657 = vpop.f32.mrf.mxu0
      %658 = vmatprep.mubr.f32.mxu0 0.0
      %659 = vmatmul.mubr.f32.gmra.mxu0 %v486
      %v660 = vpop.f32.mrf.mxu0
      %v661 = vadd.f32 0.0, %v660
      %v662 = vpop.f32.mrf.mxu0
      %663 = vmatprep.mubr.f32.mxu0 0.0
      %664 = vmatmul.mubr.f32.gmra.mxu0 %v487
      %v665 = vpop.f32.mrf.mxu0
      %v666 = vadd.f32 0.0, %v665
      %v667 = vpop.f32.mrf.mxu0
      %668 = vmatprep.mubr.f32.mxu0 0.0
      %669 = vmatmul.mubr.f32.gmra.mxu0 %v488
      %v670 = vpop.f32.mrf.mxu0
      %v671 = vadd.f32 0.0, %v670
      %v672 = vpop.f32.mrf.mxu0
      %673 = vmatprep.mubr.f32.mxu0 0.0
      %674 = vmatmul.mubr.f32.gmra.mxu0 %v489
      %v675 = vpop.f32.mrf.mxu0
      %v676 = vadd.f32 0.0, %v675
      %v677 = vpop.f32.mrf.mxu0
      %678 = vmatprep.mubr.f32.mxu0 0.0
      %679 = vmatmul.mubr.f32.gmra.mxu0 %v490
      %v680 = vpop.f32.mrf.mxu0
      %v681 = vadd.f32 0.0, %v680
      %v682 = vpop.f32.mrf.mxu0
      %683 = vmatprep.mubr.f32.mxu0 0.0
      %684 = vmatmul.mubr.f32.gmra.mxu0 %v491
      %v685 = vpop.f32.mrf.mxu0
      %v686 = vadd.f32 0.0, %v685
      %v687 = vpop.f32.mrf.mxu0
      %688 = vdwg.mxu0
      %689 = vmatprep.subr.mxu0 0.0
      %690 = vmatpush1.msra.mxu0 %v468
      %691 = vmatprep.subr.mxu0 0.0
      %692 = vmatpush1.msra.mxu0 %v467
      %693 = vmatprep.subr.mxu0 0.0
      %694 = vmatpush1.msra.mxu0 %v466
      %695 = vmatprep.subr.mxu0 0.0
      %696 = vmatpush1.msra.mxu0 %v465
      %697 = vmatprep.subr.mxu0 0.0
      %698 = vmatpush1.msra.mxu0 %v464
      %699 = vmatprep.subr.mxu0 0.0
      %700 = vmatpush1.msra.mxu0 %v463
      %701 = vmatprep.subr.mxu0 0.0
      %702 = vmatpush1.msra.mxu0 %v462
      %703 = vmatprep.subr.mxu0 0.0
      %704 = vmatpush1.msra.mxu0 %v461
      %705 = vmatprep.subr.mxu0 0.0
      %706 = vmatpush1.msra.mxu0 %v460
      %707 = vmatprep.subr.mxu0 0.0
      %708 = vmatpush1.msra.mxu0 %v459
      %709 = vmatprep.subr.mxu0 0.0
      %710 = vmatpush1.msra.mxu0 %v458
      %711 = vmatprep.subr.mxu0 0.0
      %712 = vmatpush1.msra.mxu0 %v457
      %713 = vmatprep.subr.mxu0 0.0
      %714 = vmatpush1.msra.mxu0 %v456
      %715 = vmatprep.subr.mxu0 0.0
      %716 = vmatpush1.msra.mxu0 %v455
      %717 = vmatprep.subr.mxu0 0.0
      %718 = vmatpush1.msra.mxu0 %v454
      %719 = vmatprep.subr.mxu0 0.0
      %720 = vmatpush1.msra.mxu0 %v453
      %721 = vmatprep.subr.mxu0 0.0
      %722 = vmatpush2.msra.mxu0 0.0
      %723 = vmatprep.subr.mxu0 0.0
      %724 = vmatpush2.msra.mxu0 0.0
      %725 = vmatprep.subr.mxu0 0.0
      %726 = vmatpush2.msra.mxu0 0.0
      %727 = vmatprep.subr.mxu0 0.0
      %728 = vmatpush2.msra.mxu0 0.0
      %729 = vmatprep.subr.mxu0 0.0
      %730 = vmatpush2.msra.mxu0 0.0
      %731 = vmatprep.subr.mxu0 0.0
      %732 = vmatpush2.msra.mxu0 0.0
      %733 = vmatprep.subr.mxu0 0.0
      %734 = vmatpush2.msra.mxu0 0.0
      %735 = vmatprep.subr.mxu0 0.0
      %736 = vmatpush2.msra.mxu0 0.0
      %737 = vmatprep.subr.mxu0 0.0
      %738 = vmatpush2.msra.mxu0 0.0
      %739 = vmatprep.subr.mxu0 0.0
      %740 = vmatpush2.msra.mxu0 0.0
      %741 = vmatprep.subr.mxu0 0.0
      %742 = vmatpush2.msra.mxu0 0.0
      %743 = vmatprep.subr.mxu0 0.0
      %744 = vmatpush2.msra.mxu0 0.0
      %745 = vmatprep.subr.mxu0 0.0
      %746 = vmatpush2.msra.mxu0 0.0
      %747 = vmatprep.subr.mxu0 0.0
      %748 = vmatpush2.msra.mxu0 0.0
      %749 = vmatprep.subr.mxu0 0.0
      %750 = vmatpush2.msra.mxu0 0.0
      %751 = vmatprep.subr.mxu0 0.0
      %752 = vmatpush2.msra.mxu0 0.0
      %753 = vmatprep.mubr.f32.mxu0 0.0
      %754 = vmatmul.mubr.f32.gmra.mxu0 %v430
      %v755 = vpop.f32.mrf.mxu0
      %v756 = vadd.f32 %v576, %v755
      %v757 = vpop.f32.mrf.mxu0
      %758 = vmatprep.mubr.f32.mxu0 0.0
      %759 = vmatmul.mubr.f32.gmra.mxu0 %v431
      %v760 = vpop.f32.mrf.mxu0
      %v761 = vadd.f32 %v581, %v760
      %v762 = vpop.f32.mrf.mxu0
      %763 = vmatprep.mubr.f32.mxu0 0.0
      %764 = vmatmul.mubr.f32.gmra.mxu0 %v432
      %v765 = vpop.f32.mrf.mxu0
      %v766 = vadd.f32 %v586, %v765
      %v767 = vpop.f32.mrf.mxu0
      %768 = vmatprep.mubr.f32.mxu0 0.0
      %769 = vmatmul.mubr.f32.gmra.mxu0 %v433
      %v770 = vpop.f32.mrf.mxu0
      %v771 = vadd.f32 %v591, %v770
      %v772 = vpop.f32.mrf.mxu0
      %773 = vmatprep.mubr.f32.mxu0 0.0
      %774 = vmatmul.mubr.f32.gmra.mxu0 %v434
      %v775 = vpop.f32.mrf.mxu0
      %v776 = vadd.f32 %v596, %v775
      %v777 = vpop.f32.mrf.mxu0
      %778 = vmatprep.mubr.f32.mxu0 0.0
      %779 = vmatmul.mubr.f32.gmra.mxu0 %v435
      %v780 = vpop.f32.mrf.mxu0
      %v781 = vadd.f32 %v601, %v780
      %v782 = vpop.f32.mrf.mxu0
      %783 = vmatprep.mubr.f32.mxu0 0.0
      %784 = vmatmul.mubr.f32.gmra.mxu0 %v436
      %v785 = vpop.f32.mrf.mxu0
      %v786 = vadd.f32 %v606, %v785
      %v787 = vpop.f32.mrf.mxu0
      %788 = vmatprep.mubr.f32.mxu0 0.0
      %789 = vmatmul.mubr.f32.gmra.mxu0 %v437
      %v790 = vpop.f32.mrf.mxu0
      %v791 = vadd.f32 %v611, %v790
      %v792 = vpop.f32.mrf.mxu0
      %793 = vmatprep.mubr.f32.mxu0 0.0
      %794 = vmatmul.mubr.f32.gmra.mxu0 %v438
      %v795 = vpop.f32.mrf.mxu0
      %v796 = vadd.f32 %v616, %v795
      %v797 = vpop.f32.mrf.mxu0
      %798 = vmatprep.mubr.f32.mxu0 0.0
      %799 = vmatmul.mubr.f32.gmra.mxu0 %v439
      %v800 = vpop.f32.mrf.mxu0
      %v801 = vadd.f32 %v621, %v800
      %v802 = vpop.f32.mrf.mxu0
      %803 = vmatprep.mubr.f32.mxu0 0.0
      %804 = vmatmul.mubr.f32.gmra.mxu0 %v440
      %v805 = vpop.f32.mrf.mxu0
      %v806 = vadd.f32 %v626, %v805
      %v807 = vpop.f32.mrf.mxu0
      %808 = vmatprep.mubr.f32.mxu0 0.0
      %809 = vmatmul.mubr.f32.gmra.mxu0 %v441
      %v810 = vpop.f32.mrf.mxu0
      %v811 = vadd.f32 %v631, %v810
      %v812 = vpop.f32.mrf.mxu0
      %813 = vmatprep.mubr.f32.mxu0 0.0
      %814 = vmatmul.mubr.f32.gmra.mxu0 %v442
      %v815 = vpop.f32.mrf.mxu0
      %v816 = vadd.f32 %v636, %v815
      %v817 = vpop.f32.mrf.mxu0
      %818 = vmatprep.mubr.f32.mxu0 0.0
      %819 = vmatmul.mubr.f32.gmra.mxu0 %v443
      %v820 = vpop.f32.mrf.mxu0
      %v821 = vadd.f32 %v641, %v820
      %v822 = vpop.f32.mrf.mxu0
      %823 = vmatprep.mubr.f32.mxu0 0.0
      %824 = vmatmul.mubr.f32.gmra.mxu0 %v444
      %v825 = vpop.f32.mrf.mxu0
      %v826 = vadd.f32 %v646, %v825
      %v827 = vpop.f32.mrf.mxu0
      %828 = vmatprep.mubr.f32.mxu0 0.0
      %829 = vmatmul.mubr.f32.gmra.mxu0 %v445
      %v830 = vpop.f32.mrf.mxu0
      %v831 = vadd.f32 %v651, %v830
      %v832 = vpop.f32.mrf.mxu0
      %833 = vmatprep.mubr.f32.mxu0 0.0
      %834 = vmatmul.mubr.f32.gmra.mxu0 %v446
      %v835 = vpop.f32.mrf.mxu0
      %v836 = vadd.f32 %v656, %v835
      %v837 = vpop.f32.mrf.mxu0
      %838 = vmatprep.mubr.f32.mxu0 0.0
      %839 = vmatmul.mubr.f32.gmra.mxu0 %v447
      %v840 = vpop.f32.mrf.mxu0
      %v841 = vadd.f32 %v661, %v840
      %v842 = vpop.f32.mrf.mxu0
      %843 = vmatprep.mubr.f32.mxu0 0.0
      %844 = vmatmul.mubr.f32.gmra.mxu0 %v448
      %v845 = vpop.f32.mrf.mxu0
      %v846 = vadd.f32 %v666, %v845
      %v847 = vpop.f32.mrf.mxu0
      %848 = vmatprep.mubr.f32.mxu0 0.0
      %849 = vmatmul.mubr.f32.gmra.mxu0 %v449
      %v850 = vpop.f32.mrf.mxu0
      %v851 = vadd.f32 %v671, %v850
      %v852 = vpop.f32.mrf.mxu0
      %853 = vmatprep.mubr.f32.mxu0 0.0
      %854 = vmatmul.mubr.f32.gmra.mxu0 %v450
      %v855 = vpop.f32.mrf.mxu0
      %v856 = vadd.f32 %v676, %v855
      %v857 = vpop.f32.mrf.mxu0
      %858 = vmatprep.mubr.f32.mxu0 0.0
      %859 = vmatmul.mubr.f32.gmra.mxu0 %v451
      %v860 = vpop.f32.mrf.mxu0
      %v861 = vadd.f32 %v681, %v860
      %v862 = vpop.f32.mrf.mxu0
      %863 = vmatprep.mubr.f32.mxu0 0.0
      %864 = vmatmul.mubr.f32.gmra.mxu0 %v452
      %v865 = vpop.f32.mrf.mxu0
      %v866 = vadd.f32 %v686, %v865
      %v867 = vpop.f32.mrf.mxu0
      %868 = vdwg.mxu0
      %v869 = vld [vmem:[%s385 + $0x9] sm:$0xff]
      %v870 = vld [vmem:[%s385 + $0x11] sm:$0xff]
      %v871 = vld [vmem:[%s385 + $0x19] sm:$0xff]
      %v872 = vld [vmem:[%s385 + $0x21] sm:$0xff]
      %v873 = vld [vmem:[%s385 + $0x29] sm:$0xff]
      %v874 = vld [vmem:[%s385 + $0x31] sm:$0xff]
      %v875 = vld [vmem:[%s385 + $0x39] sm:$0xff]
      %v876 = vld [vmem:[%s385 + $0x41] sm:$0xff]
      %v877 = vld [vmem:[%s385 + $0x49] sm:$0xff]
      %v878 = vld [vmem:[%s385 + $0x51] sm:$0xff]
      %v879 = vld [vmem:[%s385 + $0x59] sm:$0xff]
      %v880 = vld [vmem:[%s385 + $0x61] sm:$0xff]
      %v881 = vld [vmem:[%s385 + $0x69] sm:$0xff]
      %v882 = vld [vmem:[%s385 + $0x71] sm:$0xff]
      %v883 = vld [vmem:[%s385 + $0x79] sm:$0xff]
      %v884 = vld [vmem:[%s385 + $0x81] sm:$0xff]
      %v885 = vld [vmem:[%s385 + $0x89] sm:$0xff]
      %v886 = vld [vmem:[%s385 + $0x91] sm:$0xff]
      %v887 = vld [vmem:[%s385 + $0x99] sm:$0xff]
      %v888 = vld [vmem:[%s385 + $0xa1] sm:$0xff]
      %v889 = vld [vmem:[%s385 + $0xa9] sm:$0xff]
      %v890 = vld [vmem:[%s385 + $0xb1] sm:$0xff]
      %v891 = vld [vmem:[%s385 + $0xb9] sm:$0xf]
      %s892 = scalar_lea.vmem %s2, 256
      %v893 = vld [vmem:[%s892] sm:$0xff]
      %v894 = vld [vmem:[%s892 + $0x8] sm:$0xff]
      %v895 = vld [vmem:[%s892 + $0x10] sm:$0xff]
      %v896 = vld [vmem:[%s892 + $0x18] sm:$0xff]
      %v897 = vld [vmem:[%s892 + $0x20] sm:$0xff]
      %v898 = vld [vmem:[%s892 + $0x28] sm:$0xff]
      %v899 = vld [vmem:[%s892 + $0x30] sm:$0xff]
      %v900 = vld [vmem:[%s892 + $0x38] sm:$0xff]
      %v901 = vld [vmem:[%s892 + $0x40] sm:$0xff]
      %v902 = vld [vmem:[%s892 + $0x48] sm:$0xff]
      %v903 = vld [vmem:[%s892 + $0x50] sm:$0xff]
      %v904 = vld [vmem:[%s892 + $0x58] sm:$0xff]
      %v905 = vld [vmem:[%s892 + $0x60] sm:$0xff]
      %v906 = vld [vmem:[%s892 + $0x68] sm:$0xff]
      %v907 = vld [vmem:[%s892 + $0x70] sm:$0xff]
      %v908 = vld [vmem:[%s892 + $0x78] sm:$0xff]
      %909 = vmatprep.subr.mxu0 0.0
      %910 = vmatpush1.msra.mxu0 %v908
      %911 = vmatprep.subr.mxu0 0.0
      %912 = vmatpush1.msra.mxu0 %v907
      %913 = vmatprep.subr.mxu0 0.0
      %914 = vmatpush1.msra.mxu0 %v906
      %915 = vmatprep.subr.mxu0 0.0
      %916 = vmatpush1.msra.mxu0 %v905
      %917 = vmatprep.subr.mxu0 0.0
      %918 = vmatpush1.msra.mxu0 %v904
      %919 = vmatprep.subr.mxu0 0.0
      %920 = vmatpush1.msra.mxu0 %v903
      %921 = vmatprep.subr.mxu0 0.0
      %922 = vmatpush1.msra.mxu0 %v902
      %923 = vmatprep.subr.mxu0 0.0
      %924 = vmatpush1.msra.mxu0 %v901
      %925 = vmatprep.subr.mxu0 0.0
      %926 = vmatpush1.msra.mxu0 %v900
      %927 = vmatprep.subr.mxu0 0.0
      %928 = vmatpush1.msra.mxu0 %v899
      %929 = vmatprep.subr.mxu0 0.0
      %930 = vmatpush1.msra.mxu0 %v898
      %931 = vmatprep.subr.mxu0 0.0
      %932 = vmatpush1.msra.mxu0 %v897
      %933 = vmatprep.subr.mxu0 0.0
      %934 = vmatpush1.msra.mxu0 %v896
      %935 = vmatprep.subr.mxu0 0.0
      %936 = vmatpush1.msra.mxu0 %v895
      %937 = vmatprep.subr.mxu0 0.0
      %938 = vmatpush1.msra.mxu0 %v894
      %939 = vmatprep.subr.mxu0 0.0
      %940 = vmatpush1.msra.mxu0 %v893
      %941 = vmatprep.subr.mxu0 0.0
      %942 = vmatpush2.msra.mxu0 0.0
      %943 = vmatprep.subr.mxu0 0.0
      %944 = vmatpush2.msra.mxu0 0.0
      %945 = vmatprep.subr.mxu0 0.0
      %946 = vmatpush2.msra.mxu0 0.0
      %947 = vmatprep.subr.mxu0 0.0
      %948 = vmatpush2.msra.mxu0 0.0
      %949 = vmatprep.subr.mxu0 0.0
      %950 = vmatpush2.msra.mxu0 0.0
      %951 = vmatprep.subr.mxu0 0.0
      %952 = vmatpush2.msra.mxu0 0.0
      %953 = vmatprep.subr.mxu0 0.0
      %954 = vmatpush2.msra.mxu0 0.0
      %955 = vmatprep.subr.mxu0 0.0
      %956 = vmatpush2.msra.mxu0 0.0
      %957 = vmatprep.subr.mxu0 0.0
      %958 = vmatpush2.msra.mxu0 0.0
      %959 = vmatprep.subr.mxu0 0.0
      %960 = vmatpush2.msra.mxu0 0.0
      %961 = vmatprep.subr.mxu0 0.0
      %962 = vmatpush2.msra.mxu0 0.0
      %963 = vmatprep.subr.mxu0 0.0
      %964 = vmatpush2.msra.mxu0 0.0
      %965 = vmatprep.subr.mxu0 0.0
      %966 = vmatpush2.msra.mxu0 0.0
      %967 = vmatprep.subr.mxu0 0.0
      %968 = vmatpush2.msra.mxu0 0.0
      %969 = vmatprep.subr.mxu0 0.0
      %970 = vmatpush2.msra.mxu0 0.0
      %971 = vmatprep.subr.mxu0 0.0
      %972 = vmatpush2.msra.mxu0 0.0
      %973 = vmatprep.mubr.f32.mxu0 0.0
      %974 = vmatmul.mubr.f32.gmra.mxu0 %v869
      %v975 = vpop.f32.mrf.mxu0
      %v976 = vadd.f32 0.0, %v975
      %v977 = vpop.f32.mrf.mxu0
      %978 = vmatprep.mubr.f32.mxu0 0.0
      %979 = vmatmul.mubr.f32.gmra.mxu0 %v870
      %v980 = vpop.f32.mrf.mxu0
      %v981 = vadd.f32 0.0, %v980
      %v982 = vpop.f32.mrf.mxu0
      %983 = vmatprep.mubr.f32.mxu0 0.0
      %984 = vmatmul.mubr.f32.gmra.mxu0 %v871
      %v985 = vpop.f32.mrf.mxu0
      %v986 = vadd.f32 0.0, %v985
      %v987 = vpop.f32.mrf.mxu0
      %988 = vmatprep.mubr.f32.mxu0 0.0
      %989 = vmatmul.mubr.f32.gmra.mxu0 %v872
      %v990 = vpop.f32.mrf.mxu0
      %v991 = vadd.f32 0.0, %v990
      %v992 = vpop.f32.mrf.mxu0
      %993 = vmatprep.mubr.f32.mxu0 0.0
      %994 = vmatmul.mubr.f32.gmra.mxu0 %v873
      %v995 = vpop.f32.mrf.mxu0
      %v996 = vadd.f32 0.0, %v995
      %v997 = vpop.f32.mrf.mxu0
      %998 = vmatprep.mubr.f32.mxu0 0.0
      %999 = vmatmul.mubr.f32.gmra.mxu0 %v874
      %v1000 = vpop.f32.mrf.mxu0
      %v1001 = vadd.f32 0.0, %v1000
      %v1002 = vpop.f32.mrf.mxu0
      %1003 = vmatprep.mubr.f32.mxu0 0.0
      %1004 = vmatmul.mubr.f32.gmra.mxu0 %v875
      %v1005 = vpop.f32.mrf.mxu0
      %v1006 = vadd.f32 0.0, %v1005
      %v1007 = vpop.f32.mrf.mxu0
      %1008 = vmatprep.mubr.f32.mxu0 0.0
      %1009 = vmatmul.mubr.f32.gmra.mxu0 %v876
      %v1010 = vpop.f32.mrf.mxu0
      %v1011 = vadd.f32 0.0, %v1010
      %v1012 = vpop.f32.mrf.mxu0
      %1013 = vmatprep.mubr.f32.mxu0 0.0
      %1014 = vmatmul.mubr.f32.gmra.mxu0 %v877
      %v1015 = vpop.f32.mrf.mxu0
      %v1016 = vadd.f32 0.0, %v1015
      %v1017 = vpop.f32.mrf.mxu0
      %1018 = vmatprep.mubr.f32.mxu0 0.0
      %1019 = vmatmul.mubr.f32.gmra.mxu0 %v878
      %v1020 = vpop.f32.mrf.mxu0
      %v1021 = vadd.f32 0.0, %v1020
      %v1022 = vpop.f32.mrf.mxu0
      %1023 = vmatprep.mubr.f32.mxu0 0.0
      %1024 = vmatmul.mubr.f32.gmra.mxu0 %v879
      %v1025 = vpop.f32.mrf.mxu0
      %v1026 = vadd.f32 0.0, %v1025
      %v1027 = vpop.f32.mrf.mxu0
      %1028 = vmatprep.mubr.f32.mxu0 0.0
      %1029 = vmatmul.mubr.f32.gmra.mxu0 %v880
      %v1030 = vpop.f32.mrf.mxu0
      %v1031 = vadd.f32 0.0, %v1030
      %v1032 = vpop.f32.mrf.mxu0
      %1033 = vmatprep.mubr.f32.mxu0 0.0
      %1034 = vmatmul.mubr.f32.gmra.mxu0 %v881
      %v1035 = vpop.f32.mrf.mxu0
      %v1036 = vadd.f32 0.0, %v1035
      %v1037 = vpop.f32.mrf.mxu0
      %1038 = vmatprep.mubr.f32.mxu0 0.0
      %1039 = vmatmul.mubr.f32.gmra.mxu0 %v882
      %v1040 = vpop.f32.mrf.mxu0
      %v1041 = vadd.f32 0.0, %v1040
      %v1042 = vpop.f32.mrf.mxu0
      %1043 = vmatprep.mubr.f32.mxu0 0.0
      %1044 = vmatmul.mubr.f32.gmra.mxu0 %v883
      %v1045 = vpop.f32.mrf.mxu0
      %v1046 = vadd.f32 0.0, %v1045
      %v1047 = vpop.f32.mrf.mxu0
      %1048 = vmatprep.mubr.f32.mxu0 0.0
      %1049 = vmatmul.mubr.f32.gmra.mxu0 %v884
      %v1050 = vpop.f32.mrf.mxu0
      %v1051 = vadd.f32 0.0, %v1050
      %v1052 = vpop.f32.mrf.mxu0
      %1053 = vmatprep.mubr.f32.mxu0 0.0
      %1054 = vmatmul.mubr.f32.gmra.mxu0 %v885
      %v1055 = vpop.f32.mrf.mxu0
      %v1056 = vadd.f32 0.0, %v1055
      %v1057 = vpop.f32.mrf.mxu0
      %1058 = vmatprep.mubr.f32.mxu0 0.0
      %1059 = vmatmul.mubr.f32.gmra.mxu0 %v886
      %v1060 = vpop.f32.mrf.mxu0
      %v1061 = vadd.f32 0.0, %v1060
      %v1062 = vpop.f32.mrf.mxu0
      %1063 = vmatprep.mubr.f32.mxu0 0.0
      %1064 = vmatmul.mubr.f32.gmra.mxu0 %v887
      %v1065 = vpop.f32.mrf.mxu0
      %v1066 = vadd.f32 0.0, %v1065
      %v1067 = vpop.f32.mrf.mxu0
      %1068 = vmatprep.mubr.f32.mxu0 0.0
      %1069 = vmatmul.mubr.f32.gmra.mxu0 %v888
      %v1070 = vpop.f32.mrf.mxu0
      %v1071 = vadd.f32 0.0, %v1070
      %v1072 = vpop.f32.mrf.mxu0
      %1073 = vmatprep.mubr.f32.mxu0 0.0
      %1074 = vmatmul.mubr.f32.gmra.mxu0 %v889
      %v1075 = vpop.f32.mrf.mxu0
      %v1076 = vadd.f32 0.0, %v1075
      %v1077 = vpop.f32.mrf.mxu0
      %1078 = vmatprep.mubr.f32.mxu0 0.0
      %1079 = vmatmul.mubr.f32.gmra.mxu0 %v890
      %v1080 = vpop.f32.mrf.mxu0
      %v1081 = vadd.f32 0.0, %v1080
      %v1082 = vpop.f32.mrf.mxu0
      %1083 = vmatprep.mubr.f32.mxu0 0.0
      %1084 = vmatmul.mubr.f32.gmra.mxu0 %v891
      %v1085 = vpop.f32.mrf.mxu0
      %v1086 = vadd.f32 0.0, %v1085
      %v1087 = vpop.f32.mrf.mxu0
      %1088 = vdwg.mxu0
      %v1089 = vadd.f32 %v756, %v976
      %v1090 = vadd.f32 %v761, %v981
      %v1091 = vadd.f32 %v766, %v986
      %v1092 = vadd.f32 %v771, %v991
      %v1093 = vadd.f32 %v776, %v996
      %v1094 = vadd.f32 %v781, %v1001
      %v1095 = vadd.f32 %v786, %v1006
      %v1096 = vadd.f32 %v791, %v1011
      %v1097 = vadd.f32 %v796, %v1016
      %v1098 = vadd.f32 %v801, %v1021
      %v1099 = vadd.f32 %v806, %v1026
      %v1100 = vadd.f32 %v811, %v1031
      %v1101 = vadd.f32 %v816, %v1036
      %v1102 = vadd.f32 %v821, %v1041
      %v1103 = vadd.f32 %v826, %v1046
      %v1104 = vadd.f32 %v831, %v1051
      %v1105 = vadd.f32 %v836, %v1056
      %v1106 = vadd.f32 %v841, %v1061
      %v1107 = vadd.f32 %v846, %v1066
      %v1108 = vadd.f32 %v851, %v1071
      %v1109 = vadd.f32 %v856, %v1076
      %v1110 = vadd.f32 %v861, %v1081
      %v1111 = vadd.f32 %v866, %v1086
      %v1112 = vld [vmem:[%s385 + $0x19] sm:$0xff]
      %v1113 = vld [vmem:[%s385 + $0x21] sm:$0xff]
      %v1114 = vld [vmem:[%s385 + $0x29] sm:$0xff]
      %v1115 = vld [vmem:[%s385 + $0x31] sm:$0xff]
      %v1116 = vld [vmem:[%s385 + $0x39] sm:$0xff]
      %v1117 = vld [vmem:[%s385 + $0x41] sm:$0xff]
      %v1118 = vld [vmem:[%s385 + $0x49] sm:$0xff]
      %v1119 = vld [vmem:[%s385 + $0x51] sm:$0xff]
      %v1120 = vld [vmem:[%s385 + $0x59] sm:$0xff]
      %v1121 = vld [vmem:[%s385 + $0x61] sm:$0xff]
      %v1122 = vld [vmem:[%s385 + $0x69] sm:$0xff]
      %v1123 = vld [vmem:[%s385 + $0x71] sm:$0xff]
      %v1124 = vld [vmem:[%s385 + $0x79] sm:$0xff]
      %v1125 = vld [vmem:[%s385 + $0x81] sm:$0xff]
      %v1126 = vld [vmem:[%s385 + $0x89] sm:$0xff]
      %v1127 = vld [vmem:[%s385 + $0x91] sm:$0xff]
      %v1128 = vld [vmem:[%s385 + $0x99] sm:$0xff]
      %v1129 = vld [vmem:[%s385 + $0xa1] sm:$0xff]
      %v1130 = vld [vmem:[%s385 + $0xa9] sm:$0xff]
      %v1131 = vld [vmem:[%s385 + $0xb1] sm:$0xff]
      %v1132 = vld [vmem:[%s385 + $0xb9] sm:$0xff]
      %v1133 = vld [vmem:[%s385 + $0xc1] sm:$0xff]
      %v1134 = vld [vmem:[%s385 + $0xc9] sm:$0xf]
      %s1135 = scalar_lea.vmem %s2, 384
      %v1136 = vld [vmem:[%s1135] sm:$0xff]
      %v1137 = vld [vmem:[%s1135 + $0x8] sm:$0xff]
      %v1138 = vld [vmem:[%s1135 + $0x10] sm:$0xff]
      %v1139 = vld [vmem:[%s1135 + $0x18] sm:$0xff]
      %v1140 = vld [vmem:[%s1135 + $0x20] sm:$0xff]
      %v1141 = vld [vmem:[%s1135 + $0x28] sm:$0xff]
      %v1142 = vld [vmem:[%s1135 + $0x30] sm:$0xff]
      %v1143 = vld [vmem:[%s1135 + $0x38] sm:$0xff]
      %v1144 = vld [vmem:[%s1135 + $0x40] sm:$0xff]
      %v1145 = vld [vmem:[%s1135 + $0x48] sm:$0xff]
      %v1146 = vld [vmem:[%s1135 + $0x50] sm:$0xff]
      %v1147 = vld [vmem:[%s1135 + $0x58] sm:$0xff]
      %v1148 = vld [vmem:[%s1135 + $0x60] sm:$0xff]
      %v1149 = vld [vmem:[%s1135 + $0x68] sm:$0xff]
      %v1150 = vld [vmem:[%s1135 + $0x70] sm:$0xff]
      %v1151 = vld [vmem:[%s1135 + $0x78] sm:$0xff]
      %1152 = vmatprep.subr.mxu0 0.0
      %1153 = vmatpush1.msra.mxu0 %v1151
      %1154 = vmatprep.subr.mxu0 0.0
      %1155 = vmatpush1.msra.mxu0 %v1150
      %1156 = vmatprep.subr.mxu0 0.0
      %1157 = vmatpush1.msra.mxu0 %v1149
      %1158 = vmatprep.subr.mxu0 0.0
      %1159 = vmatpush1.msra.mxu0 %v1148
      %1160 = vmatprep.subr.mxu0 0.0
      %1161 = vmatpush1.msra.mxu0 %v1147
      %1162 = vmatprep.subr.mxu0 0.0
      %1163 = vmatpush1.msra.mxu0 %v1146
      %1164 = vmatprep.subr.mxu0 0.0
      %1165 = vmatpush1.msra.mxu0 %v1145
      %1166 = vmatprep.subr.mxu0 0.0
      %1167 = vmatpush1.msra.mxu0 %v1144
      %1168 = vmatprep.subr.mxu0 0.0
      %1169 = vmatpush1.msra.mxu0 %v1143
      %1170 = vmatprep.subr.mxu0 0.0
      %1171 = vmatpush1.msra.mxu0 %v1142
      %1172 = vmatprep.subr.mxu0 0.0
      %1173 = vmatpush1.msra.mxu0 %v1141
      %1174 = vmatprep.subr.mxu0 0.0
      %1175 = vmatpush1.msra.mxu0 %v1140
      %1176 = vmatprep.subr.mxu0 0.0
      %1177 = vmatpush1.msra.mxu0 %v1139
      %1178 = vmatprep.subr.mxu0 0.0
      %1179 = vmatpush1.msra.mxu0 %v1138
      %1180 = vmatprep.subr.mxu0 0.0
      %1181 = vmatpush1.msra.mxu0 %v1137
      %1182 = vmatprep.subr.mxu0 0.0
      %1183 = vmatpush1.msra.mxu0 %v1136
      %1184 = vmatprep.subr.mxu0 0.0
      %1185 = vmatpush2.msra.mxu0 0.0
      %1186 = vmatprep.subr.mxu0 0.0
      %1187 = vmatpush2.msra.mxu0 0.0
      %1188 = vmatprep.subr.mxu0 0.0
      %1189 = vmatpush2.msra.mxu0 0.0
      %1190 = vmatprep.subr.mxu0 0.0
      %1191 = vmatpush2.msra.mxu0 0.0
      %1192 = vmatprep.subr.mxu0 0.0
      %1193 = vmatpush2.msra.mxu0 0.0
      %1194 = vmatprep.subr.mxu0 0.0
      %1195 = vmatpush2.msra.mxu0 0.0
      %1196 = vmatprep.subr.mxu0 0.0
      %1197 = vmatpush2.msra.mxu0 0.0
      %1198 = vmatprep.subr.mxu0 0.0
      %1199 = vmatpush2.msra.mxu0 0.0
      %1200 = vmatprep.subr.mxu0 0.0
      %1201 = vmatpush2.msra.mxu0 0.0
      %1202 = vmatprep.subr.mxu0 0.0
      %1203 = vmatpush2.msra.mxu0 0.0
      %1204 = vmatprep.subr.mxu0 0.0
      %1205 = vmatpush2.msra.mxu0 0.0
      %1206 = vmatprep.subr.mxu0 0.0
      %1207 = vmatpush2.msra.mxu0 0.0
      %1208 = vmatprep.subr.mxu0 0.0
      %1209 = vmatpush2.msra.mxu0 0.0
      %1210 = vmatprep.subr.mxu0 0.0
      %1211 = vmatpush2.msra.mxu0 0.0
      %1212 = vmatprep.subr.mxu0 0.0
      %1213 = vmatpush2.msra.mxu0 0.0
      %1214 = vmatprep.subr.mxu0 0.0
      %1215 = vmatpush2.msra.mxu0 0.0
      %1216 = vmatprep.mubr.f32.mxu0 0.0
      %1217 = vmatmul.mubr.f32.gmra.mxu0 %v1112
      %v1218 = vpop.f32.mrf.mxu0
      %v1219 = vadd.f32 0.0, %v1218
      %v1220 = vpop.f32.mrf.mxu0
      %1221 = vmatprep.mubr.f32.mxu0 0.0
      %1222 = vmatmul.mubr.f32.gmra.mxu0 %v1113
      %v1223 = vpop.f32.mrf.mxu0
      %v1224 = vadd.f32 0.0, %v1223
      %v1225 = vpop.f32.mrf.mxu0
      %1226 = vmatprep.mubr.f32.mxu0 0.0
      %1227 = vmatmul.mubr.f32.gmra.mxu0 %v1114
      %v1228 = vpop.f32.mrf.mxu0
      %v1229 = vadd.f32 0.0, %v1228
      %v1230 = vpop.f32.mrf.mxu0
      %1231 = vmatprep.mubr.f32.mxu0 0.0
      %1232 = vmatmul.mubr.f32.gmra.mxu0 %v1115
      %v1233 = vpop.f32.mrf.mxu0
      %v1234 = vadd.f32 0.0, %v1233
      %v1235 = vpop.f32.mrf.mxu0
      %1236 = vmatprep.mubr.f32.mxu0 0.0
      %1237 = vmatmul.mubr.f32.gmra.mxu0 %v1116
      %v1238 = vpop.f32.mrf.mxu0
      %v1239 = vadd.f32 0.0, %v1238
      %v1240 = vpop.f32.mrf.mxu0
      %1241 = vmatprep.mubr.f32.mxu0 0.0
      %1242 = vmatmul.mubr.f32.gmra.mxu0 %v1117
      %v1243 = vpop.f32.mrf.mxu0
      %v1244 = vadd.f32 0.0, %v1243
      %v1245 = vpop.f32.mrf.mxu0
      %1246 = vmatprep.mubr.f32.mxu0 0.0
      %1247 = vmatmul.mubr.f32.gmra.mxu0 %v1118
      %v1248 = vpop.f32.mrf.mxu0
      %v1249 = vadd.f32 0.0, %v1248
      %v1250 = vpop.f32.mrf.mxu0
      %1251 = vmatprep.mubr.f32.mxu0 0.0
      %1252 = vmatmul.mubr.f32.gmra.mxu0 %v1119
      %v1253 = vpop.f32.mrf.mxu0
      %v1254 = vadd.f32 0.0, %v1253
      %v1255 = vpop.f32.mrf.mxu0
      %1256 = vmatprep.mubr.f32.mxu0 0.0
      %1257 = vmatmul.mubr.f32.gmra.mxu0 %v1120
      %v1258 = vpop.f32.mrf.mxu0
      %v1259 = vadd.f32 0.0, %v1258
      %v1260 = vpop.f32.mrf.mxu0
      %1261 = vmatprep.mubr.f32.mxu0 0.0
      %1262 = vmatmul.mubr.f32.gmra.mxu0 %v1121
      %v1263 = vpop.f32.mrf.mxu0
      %v1264 = vadd.f32 0.0, %v1263
      %v1265 = vpop.f32.mrf.mxu0
      %1266 = vmatprep.mubr.f32.mxu0 0.0
      %1267 = vmatmul.mubr.f32.gmra.mxu0 %v1122
      %v1268 = vpop.f32.mrf.mxu0
      %v1269 = vadd.f32 0.0, %v1268
      %v1270 = vpop.f32.mrf.mxu0
      %1271 = vmatprep.mubr.f32.mxu0 0.0
      %1272 = vmatmul.mubr.f32.gmra.mxu0 %v1123
      %v1273 = vpop.f32.mrf.mxu0
      %v1274 = vadd.f32 0.0, %v1273
      %v1275 = vpop.f32.mrf.mxu0
      %1276 = vmatprep.mubr.f32.mxu0 0.0
      %1277 = vmatmul.mubr.f32.gmra.mxu0 %v1124
      %v1278 = vpop.f32.mrf.mxu0
      %v1279 = vadd.f32 0.0, %v1278
      %v1280 = vpop.f32.mrf.mxu0
      %1281 = vmatprep.mubr.f32.mxu0 0.0
      %1282 = vmatmul.mubr.f32.gmra.mxu0 %v1125
      %v1283 = vpop.f32.mrf.mxu0
      %v1284 = vadd.f32 0.0, %v1283
      %v1285 = vpop.f32.mrf.mxu0
      %1286 = vmatprep.mubr.f32.mxu0 0.0
      %1287 = vmatmul.mubr.f32.gmra.mxu0 %v1126
      %v1288 = vpop.f32.mrf.mxu0
      %v1289 = vadd.f32 0.0, %v1288
      %v1290 = vpop.f32.mrf.mxu0
      %1291 = vmatprep.mubr.f32.mxu0 0.0
      %1292 = vmatmul.mubr.f32.gmra.mxu0 %v1127
      %v1293 = vpop.f32.mrf.mxu0
      %v1294 = vadd.f32 0.0, %v1293
      %v1295 = vpop.f32.mrf.mxu0
      %1296 = vmatprep.mubr.f32.mxu0 0.0
      %1297 = vmatmul.mubr.f32.gmra.mxu0 %v1128
      %v1298 = vpop.f32.mrf.mxu0
      %v1299 = vadd.f32 0.0, %v1298
      %v1300 = vpop.f32.mrf.mxu0
      %1301 = vmatprep.mubr.f32.mxu0 0.0
      %1302 = vmatmul.mubr.f32.gmra.mxu0 %v1129
      %v1303 = vpop.f32.mrf.mxu0
      %v1304 = vadd.f32 0.0, %v1303
      %v1305 = vpop.f32.mrf.mxu0
      %1306 = vmatprep.mubr.f32.mxu0 0.0
      %1307 = vmatmul.mubr.f32.gmra.mxu0 %v1130
      %v1308 = vpop.f32.mrf.mxu0
      %v1309 = vadd.f32 0.0, %v1308
      %v1310 = vpop.f32.mrf.mxu0
      %1311 = vmatprep.mubr.f32.mxu0 0.0
      %1312 = vmatmul.mubr.f32.gmra.mxu0 %v1131
      %v1313 = vpop.f32.mrf.mxu0
      %v1314 = vadd.f32 0.0, %v1313
      %v1315 = vpop.f32.mrf.mxu0
      %1316 = vmatprep.mubr.f32.mxu0 0.0
      %1317 = vmatmul.mubr.f32.gmra.mxu0 %v1132
      %v1318 = vpop.f32.mrf.mxu0
      %v1319 = vadd.f32 0.0, %v1318
      %v1320 = vpop.f32.mrf.mxu0
      %1321 = vmatprep.mubr.f32.mxu0 0.0
      %1322 = vmatmul.mubr.f32.gmra.mxu0 %v1133
      %v1323 = vpop.f32.mrf.mxu0
      %v1324 = vadd.f32 0.0, %v1323
      %v1325 = vpop.f32.mrf.mxu0
      %1326 = vmatprep.mubr.f32.mxu0 0.0
      %1327 = vmatmul.mubr.f32.gmra.mxu0 %v1134
      %v1328 = vpop.f32.mrf.mxu0
      %v1329 = vadd.f32 0.0, %v1328
      %v1330 = vpop.f32.mrf.mxu0
      %1331 = vdwg.mxu0
      %v1332 = vadd.f32 %v1089, %v1219
      %v1333 = vadd.f32 %v1090, %v1224
      %v1334 = vadd.f32 %v1091, %v1229
      %v1335 = vadd.f32 %v1092, %v1234
      %v1336 = vadd.f32 %v1093, %v1239
      %v1337 = vadd.f32 %v1094, %v1244
      %v1338 = vadd.f32 %v1095, %v1249
      %v1339 = vadd.f32 %v1096, %v1254
      %v1340 = vadd.f32 %v1097, %v1259
      %v1341 = vadd.f32 %v1098, %v1264
      %v1342 = vadd.f32 %v1099, %v1269
      %v1343 = vadd.f32 %v1100, %v1274
      %v1344 = vadd.f32 %v1101, %v1279
      %v1345 = vadd.f32 %v1102, %v1284
      %v1346 = vadd.f32 %v1103, %v1289
      %v1347 = vadd.f32 %v1104, %v1294
      %v1348 = vadd.f32 %v1105, %v1299
      %v1349 = vadd.f32 %v1106, %v1304
      %v1350 = vadd.f32 %v1107, %v1309
      %v1351 = vadd.f32 %v1108, %v1314
      %v1352 = vadd.f32 %v1109, %v1319
      %v1353 = vadd.f32 %v1110, %v1324
      %v1354 = vadd.f32 %v1111, %v1329
      %v1355 = vld [vmem:[%s385 + $0x1a] sm:$0xff]
      %v1356 = vld [vmem:[%s385 + $0x22] sm:$0xff]
      %v1357 = vld [vmem:[%s385 + $0x2a] sm:$0xff]
      %v1358 = vld [vmem:[%s385 + $0x32] sm:$0xff]
      %v1359 = vld [vmem:[%s385 + $0x3a] sm:$0xff]
      %v1360 = vld [vmem:[%s385 + $0x42] sm:$0xff]
      %v1361 = vld [vmem:[%s385 + $0x4a] sm:$0xff]
      %v1362 = vld [vmem:[%s385 + $0x52] sm:$0xff]
      %v1363 = vld [vmem:[%s385 + $0x5a] sm:$0xff]
      %v1364 = vld [vmem:[%s385 + $0x62] sm:$0xff]
      %v1365 = vld [vmem:[%s385 + $0x6a] sm:$0xff]
      %v1366 = vld [vmem:[%s385 + $0x72] sm:$0xff]
      %v1367 = vld [vmem:[%s385 + $0x7a] sm:$0xff]
      %v1368 = vld [vmem:[%s385 + $0x82] sm:$0xff]
      %v1369 = vld [vmem:[%s385 + $0x8a] sm:$0xff]
      %v1370 = vld [vmem:[%s385 + $0x92] sm:$0xff]
      %v1371 = vld [vmem:[%s385 + $0x9a] sm:$0xff]
      %v1372 = vld [vmem:[%s385 + $0xa2] sm:$0xff]
      %v1373 = vld [vmem:[%s385 + $0xaa] sm:$0xff]
      %v1374 = vld [vmem:[%s385 + $0xb2] sm:$0xff]
      %v1375 = vld [vmem:[%s385 + $0xba] sm:$0xff]
      %v1376 = vld [vmem:[%s385 + $0xc2] sm:$0xff]
      %v1377 = vld [vmem:[%s385 + $0xca] sm:$0xf]
      %s1378 = scalar_lea.vmem %s2, 512
      %v1379 = vld [vmem:[%s1378] sm:$0xff]
      %v1380 = vld [vmem:[%s1378 + $0x8] sm:$0xff]
      %v1381 = vld [vmem:[%s1378 + $0x10] sm:$0xff]
      %v1382 = vld [vmem:[%s1378 + $0x18] sm:$0xff]
      %v1383 = vld [vmem:[%s1378 + $0x20] sm:$0xff]
      %v1384 = vld [vmem:[%s1378 + $0x28] sm:$0xff]
      %v1385 = vld [vmem:[%s1378 + $0x30] sm:$0xff]
      %v1386 = vld [vmem:[%s1378 + $0x38] sm:$0xff]
      %v1387 = vld [vmem:[%s1378 + $0x40] sm:$0xff]
      %v1388 = vld [vmem:[%s1378 + $0x48] sm:$0xff]
      %v1389 = vld [vmem:[%s1378 + $0x50] sm:$0xff]
      %v1390 = vld [vmem:[%s1378 + $0x58] sm:$0xff]
      %v1391 = vld [vmem:[%s1378 + $0x60] sm:$0xff]
      %v1392 = vld [vmem:[%s1378 + $0x68] sm:$0xff]
      %v1393 = vld [vmem:[%s1378 + $0x70] sm:$0xff]
      %v1394 = vld [vmem:[%s1378 + $0x78] sm:$0xff]
      %1395 = vmatprep.subr.mxu0 0.0
      %1396 = vmatpush1.msra.mxu0 %v1394
      %1397 = vmatprep.subr.mxu0 0.0
      %1398 = vmatpush1.msra.mxu0 %v1393
      %1399 = vmatprep.subr.mxu0 0.0
      %1400 = vmatpush1.msra.mxu0 %v1392
      %1401 = vmatprep.subr.mxu0 0.0
      %1402 = vmatpush1.msra.mxu0 %v1391
      %1403 = vmatprep.subr.mxu0 0.0
      %1404 = vmatpush1.msra.mxu0 %v1390
      %1405 = vmatprep.subr.mxu0 0.0
      %1406 = vmatpush1.msra.mxu0 %v1389
      %1407 = vmatprep.subr.mxu0 0.0
      %1408 = vmatpush1.msra.mxu0 %v1388
      %1409 = vmatprep.subr.mxu0 0.0
      %1410 = vmatpush1.msra.mxu0 %v1387
      %1411 = vmatprep.subr.mxu0 0.0
      %1412 = vmatpush1.msra.mxu0 %v1386
      %1413 = vmatprep.subr.mxu0 0.0
      %1414 = vmatpush1.msra.mxu0 %v1385
      %1415 = vmatprep.subr.mxu0 0.0
      %1416 = vmatpush1.msra.mxu0 %v1384
      %1417 = vmatprep.subr.mxu0 0.0
      %1418 = vmatpush1.msra.mxu0 %v1383
      %1419 = vmatprep.subr.mxu0 0.0
      %1420 = vmatpush1.msra.mxu0 %v1382
      %1421 = vmatprep.subr.mxu0 0.0
      %1422 = vmatpush1.msra.mxu0 %v1381
      %1423 = vmatprep.subr.mxu0 0.0
      %1424 = vmatpush1.msra.mxu0 %v1380
      %1425 = vmatprep.subr.mxu0 0.0
      %1426 = vmatpush1.msra.mxu0 %v1379
      %1427 = vmatprep.subr.mxu0 0.0
      %1428 = vmatpush2.msra.mxu0 0.0
      %1429 = vmatprep.subr.mxu0 0.0
      %1430 = vmatpush2.msra.mxu0 0.0
      %1431 = vmatprep.subr.mxu0 0.0
      %1432 = vmatpush2.msra.mxu0 0.0
      %1433 = vmatprep.subr.mxu0 0.0
      %1434 = vmatpush2.msra.mxu0 0.0
      %1435 = vmatprep.subr.mxu0 0.0
      %1436 = vmatpush2.msra.mxu0 0.0
      %1437 = vmatprep.subr.mxu0 0.0
      %1438 = vmatpush2.msra.mxu0 0.0
      %1439 = vmatprep.subr.mxu0 0.0
      %1440 = vmatpush2.msra.mxu0 0.0
      %1441 = vmatprep.subr.mxu0 0.0
      %1442 = vmatpush2.msra.mxu0 0.0
      %1443 = vmatprep.subr.mxu0 0.0
      %1444 = vmatpush2.msra.mxu0 0.0
      %1445 = vmatprep.subr.mxu0 0.0
      %1446 = vmatpush2.msra.mxu0 0.0
      %1447 = vmatprep.subr.mxu0 0.0
      %1448 = vmatpush2.msra.mxu0 0.0
      %1449 = vmatprep.subr.mxu0 0.0
      %1450 = vmatpush2.msra.mxu0 0.0
      %1451 = vmatprep.subr.mxu0 0.0
      %1452 = vmatpush2.msra.mxu0 0.0
      %1453 = vmatprep.subr.mxu0 0.0
      %1454 = vmatpush2.msra.mxu0 0.0
      %1455 = vmatprep.subr.mxu0 0.0
      %1456 = vmatpush2.msra.mxu0 0.0
      %1457 = vmatprep.subr.mxu0 0.0
      %1458 = vmatpush2.msra.mxu0 0.0
      %1459 = vmatprep.mubr.f32.mxu0 0.0
      %1460 = vmatmul.mubr.f32.gmra.mxu0 %v1355
      %v1461 = vpop.f32.mrf.mxu0
      %v1462 = vadd.f32 0.0, %v1461
      %v1463 = vpop.f32.mrf.mxu0
      %1464 = vmatprep.mubr.f32.mxu0 0.0
      %1465 = vmatmul.mubr.f32.gmra.mxu0 %v1356
      %v1466 = vpop.f32.mrf.mxu0
      %v1467 = vadd.f32 0.0, %v1466
      %v1468 = vpop.f32.mrf.mxu0
      %1469 = vmatprep.mubr.f32.mxu0 0.0
      %1470 = vmatmul.mubr.f32.gmra.mxu0 %v1357
      %v1471 = vpop.f32.mrf.mxu0
      %v1472 = vadd.f32 0.0, %v1471
      %v1473 = vpop.f32.mrf.mxu0
      %1474 = vmatprep.mubr.f32.mxu0 0.0
      %1475 = vmatmul.mubr.f32.gmra.mxu0 %v1358
      %v1476 = vpop.f32.mrf.mxu0
      %v1477 = vadd.f32 0.0, %v1476
      %v1478 = vpop.f32.mrf.mxu0
      %1479 = vmatprep.mubr.f32.mxu0 0.0
      %1480 = vmatmul.mubr.f32.gmra.mxu0 %v1359
      %v1481 = vpop.f32.mrf.mxu0
      %v1482 = vadd.f32 0.0, %v1481
      %v1483 = vpop.f32.mrf.mxu0
      %1484 = vmatprep.mubr.f32.mxu0 0.0
      %1485 = vmatmul.mubr.f32.gmra.mxu0 %v1360
      %v1486 = vpop.f32.mrf.mxu0
      %v1487 = vadd.f32 0.0, %v1486
      %v1488 = vpop.f32.mrf.mxu0
      %1489 = vmatprep.mubr.f32.mxu0 0.0
      %1490 = vmatmul.mubr.f32.gmra.mxu0 %v1361
      %v1491 = vpop.f32.mrf.mxu0
      %v1492 = vadd.f32 0.0, %v1491
      %v1493 = vpop.f32.mrf.mxu0
      %1494 = vmatprep.mubr.f32.mxu0 0.0
      %1495 = vmatmul.mubr.f32.gmra.mxu0 %v1362
      %v1496 = vpop.f32.mrf.mxu0
      %v1497 = vadd.f32 0.0, %v1496
      %v1498 = vpop.f32.mrf.mxu0
      %1499 = vmatprep.mubr.f32.mxu0 0.0
      %1500 = vmatmul.mubr.f32.gmra.mxu0 %v1363
      %v1501 = vpop.f32.mrf.mxu0
      %v1502 = vadd.f32 0.0, %v1501
      %v1503 = vpop.f32.mrf.mxu0
      %1504 = vmatprep.mubr.f32.mxu0 0.0
      %1505 = vmatmul.mubr.f32.gmra.mxu0 %v1364
      %v1506 = vpop.f32.mrf.mxu0
      %v1507 = vadd.f32 0.0, %v1506
      %v1508 = vpop.f32.mrf.mxu0
      %1509 = vmatprep.mubr.f32.mxu0 0.0
      %1510 = vmatmul.mubr.f32.gmra.mxu0 %v1365
      %v1511 = vpop.f32.mrf.mxu0
      %v1512 = vadd.f32 0.0, %v1511
      %v1513 = vpop.f32.mrf.mxu0
      %1514 = vmatprep.mubr.f32.mxu0 0.0
      %1515 = vmatmul.mubr.f32.gmra.mxu0 %v1366
      %v1516 = vpop.f32.mrf.mxu0
      %v1517 = vadd.f32 0.0, %v1516
      %v1518 = vpop.f32.mrf.mxu0
      %1519 = vmatprep.mubr.f32.mxu0 0.0
      %1520 = vmatmul.mubr.f32.gmra.mxu0 %v1367
      %v1521 = vpop.f32.mrf.mxu0
      %v1522 = vadd.f32 0.0, %v1521
      %v1523 = vpop.f32.mrf.mxu0
      %1524 = vmatprep.mubr.f32.mxu0 0.0
      %1525 = vmatmul.mubr.f32.gmra.mxu0 %v1368
      %v1526 = vpop.f32.mrf.mxu0
      %v1527 = vadd.f32 0.0, %v1526
      %v1528 = vpop.f32.mrf.mxu0
      %1529 = vmatprep.mubr.f32.mxu0 0.0
      %1530 = vmatmul.mubr.f32.gmra.mxu0 %v1369
      %v1531 = vpop.f32.mrf.mxu0
      %v1532 = vadd.f32 0.0, %v1531
      %v1533 = vpop.f32.mrf.mxu0
      %1534 = vmatprep.mubr.f32.mxu0 0.0
      %1535 = vmatmul.mubr.f32.gmra.mxu0 %v1370
      %v1536 = vpop.f32.mrf.mxu0
      %v1537 = vadd.f32 0.0, %v1536
      %v1538 = vpop.f32.mrf.mxu0
      %1539 = vmatprep.mubr.f32.mxu0 0.0
      %1540 = vmatmul.mubr.f32.gmra.mxu0 %v1371
      %v1541 = vpop.f32.mrf.mxu0
      %v1542 = vadd.f32 0.0, %v1541
      %v1543 = vpop.f32.mrf.mxu0
      %1544 = vmatprep.mubr.f32.mxu0 0.0
      %1545 = vmatmul.mubr.f32.gmra.mxu0 %v1372
      %v1546 = vpop.f32.mrf.mxu0
      %v1547 = vadd.f32 0.0, %v1546
      %v1548 = vpop.f32.mrf.mxu0
      %1549 = vmatprep.mubr.f32.mxu0 0.0
      %1550 = vmatmul.mubr.f32.gmra.mxu0 %v1373
      %v1551 = vpop.f32.mrf.mxu0
      %v1552 = vadd.f32 0.0, %v1551
      %v1553 = vpop.f32.mrf.mxu0
      %1554 = vmatprep.mubr.f32.mxu0 0.0
      %1555 = vmatmul.mubr.f32.gmra.mxu0 %v1374
      %v1556 = vpop.f32.mrf.mxu0
      %v1557 = vadd.f32 0.0, %v1556
      %v1558 = vpop.f32.mrf.mxu0
      %1559 = vmatprep.mubr.f32.mxu0 0.0
      %1560 = vmatmul.mubr.f32.gmra.mxu0 %v1375
      %v1561 = vpop.f32.mrf.mxu0
      %v1562 = vadd.f32 0.0, %v1561
      %v1563 = vpop.f32.mrf.mxu0
      %1564 = vmatprep.mubr.f32.mxu0 0.0
      %1565 = vmatmul.mubr.f32.gmra.mxu0 %v1376
      %v1566 = vpop.f32.mrf.mxu0
      %v1567 = vadd.f32 0.0, %v1566
      %v1568 = vpop.f32.mrf.mxu0
      %1569 = vmatprep.mubr.f32.mxu0 0.0
      %1570 = vmatmul.mubr.f32.gmra.mxu0 %v1377
      %v1571 = vpop.f32.mrf.mxu0
      %v1572 = vadd.f32 0.0, %v1571
      %v1573 = vpop.f32.mrf.mxu0
      %1574 = vdwg.mxu0
      %v1575 = vadd.f32 %v1332, %v1462
      %v1576 = vadd.f32 %v1333, %v1467
      %v1577 = vadd.f32 %v1334, %v1472
      %v1578 = vadd.f32 %v1335, %v1477
      %v1579 = vadd.f32 %v1336, %v1482
      %v1580 = vadd.f32 %v1337, %v1487
      %v1581 = vadd.f32 %v1338, %v1492
      %v1582 = vadd.f32 %v1339, %v1497
      %v1583 = vadd.f32 %v1340, %v1502
      %v1584 = vadd.f32 %v1341, %v1507
      %v1585 = vadd.f32 %v1342, %v1512
      %v1586 = vadd.f32 %v1343, %v1517
      %v1587 = vadd.f32 %v1344, %v1522
      %v1588 = vadd.f32 %v1345, %v1527
      %v1589 = vadd.f32 %v1346, %v1532
      %v1590 = vadd.f32 %v1347, %v1537
      %v1591 = vadd.f32 %v1348, %v1542
      %v1592 = vadd.f32 %v1349, %v1547
      %v1593 = vadd.f32 %v1350, %v1552
      %v1594 = vadd.f32 %v1351, %v1557
      %v1595 = vadd.f32 %v1352, %v1562
      %v1596 = vadd.f32 %v1353, %v1567
      %v1597 = vadd.f32 %v1354, %v1572
      %v1598 = vld [vmem:[%s385 + $0x1b] sm:$0xff]
      %v1599 = vld [vmem:[%s385 + $0x23] sm:$0xff]
      %v1600 = vld [vmem:[%s385 + $0x2b] sm:$0xff]
      %v1601 = vld [vmem:[%s385 + $0x33] sm:$0xff]
      %v1602 = vld [vmem:[%s385 + $0x3b] sm:$0xff]
      %v1603 = vld [vmem:[%s385 + $0x43] sm:$0xff]
      %v1604 = vld [vmem:[%s385 + $0x4b] sm:$0xff]
      %v1605 = vld [vmem:[%s385 + $0x53] sm:$0xff]
      %v1606 = vld [vmem:[%s385 + $0x5b] sm:$0xff]
      %v1607 = vld [vmem:[%s385 + $0x63] sm:$0xff]
      %v1608 = vld [vmem:[%s385 + $0x6b] sm:$0xff]
      %v1609 = vld [vmem:[%s385 + $0x73] sm:$0xff]
      %v1610 = vld [vmem:[%s385 + $0x7b] sm:$0xff]
      %v1611 = vld [vmem:[%s385 + $0x83] sm:$0xff]
      %v1612 = vld [vmem:[%s385 + $0x8b] sm:$0xff]
      %v1613 = vld [vmem:[%s385 + $0x93] sm:$0xff]
      %v1614 = vld [vmem:[%s385 + $0x9b] sm:$0xff]
      %v1615 = vld [vmem:[%s385 + $0xa3] sm:$0xff]
      %v1616 = vld [vmem:[%s385 + $0xab] sm:$0xff]
      %v1617 = vld [vmem:[%s385 + $0xb3] sm:$0xff]
      %v1618 = vld [vmem:[%s385 + $0xbb] sm:$0xff]
      %v1619 = vld [vmem:[%s385 + $0xc3] sm:$0xff]
      %v1620 = vld [vmem:[%s385 + $0xcb] sm:$0xf]
      %s1621 = scalar_lea.vmem %s2, 640
      %v1622 = vld [vmem:[%s1621] sm:$0xff]
      %v1623 = vld [vmem:[%s1621 + $0x8] sm:$0xff]
      %v1624 = vld [vmem:[%s1621 + $0x10] sm:$0xff]
      %v1625 = vld [vmem:[%s1621 + $0x18] sm:$0xff]
      %v1626 = vld [vmem:[%s1621 + $0x20] sm:$0xff]
      %v1627 = vld [vmem:[%s1621 + $0x28] sm:$0xff]
      %v1628 = vld [vmem:[%s1621 + $0x30] sm:$0xff]
      %v1629 = vld [vmem:[%s1621 + $0x38] sm:$0xff]
      %v1630 = vld [vmem:[%s1621 + $0x40] sm:$0xff]
      %v1631 = vld [vmem:[%s1621 + $0x48] sm:$0xff]
      %v1632 = vld [vmem:[%s1621 + $0x50] sm:$0xff]
      %v1633 = vld [vmem:[%s1621 + $0x58] sm:$0xff]
      %v1634 = vld [vmem:[%s1621 + $0x60] sm:$0xff]
      %v1635 = vld [vmem:[%s1621 + $0x68] sm:$0xff]
      %v1636 = vld [vmem:[%s1621 + $0x70] sm:$0xff]
      %v1637 = vld [vmem:[%s1621 + $0x78] sm:$0xff]
      %1638 = vmatprep.subr.mxu0 0.0
      %1639 = vmatpush1.msra.mxu0 %v1637
      %1640 = vmatprep.subr.mxu0 0.0
      %1641 = vmatpush1.msra.mxu0 %v1636
      %1642 = vmatprep.subr.mxu0 0.0
      %1643 = vmatpush1.msra.mxu0 %v1635
      %1644 = vmatprep.subr.mxu0 0.0
      %1645 = vmatpush1.msra.mxu0 %v1634
      %1646 = vmatprep.subr.mxu0 0.0
      %1647 = vmatpush1.msra.mxu0 %v1633
      %1648 = vmatprep.subr.mxu0 0.0
      %1649 = vmatpush1.msra.mxu0 %v1632
      %1650 = vmatprep.subr.mxu0 0.0
      %1651 = vmatpush1.msra.mxu0 %v1631
      %1652 = vmatprep.subr.mxu0 0.0
      %1653 = vmatpush1.msra.mxu0 %v1630
      %1654 = vmatprep.subr.mxu0 0.0
      %1655 = vmatpush1.msra.mxu0 %v1629
      %1656 = vmatprep.subr.mxu0 0.0
      %1657 = vmatpush1.msra.mxu0 %v1628
      %1658 = vmatprep.subr.mxu0 0.0
      %1659 = vmatpush1.msra.mxu0 %v1627
      %1660 = vmatprep.subr.mxu0 0.0
      %1661 = vmatpush1.msra.mxu0 %v1626
      %1662 = vmatprep.subr.mxu0 0.0
      %1663 = vmatpush1.msra.mxu0 %v1625
      %1664 = vmatprep.subr.mxu0 0.0
      %1665 = vmatpush1.msra.mxu0 %v1624
      %1666 = vmatprep.subr.mxu0 0.0
      %1667 = vmatpush1.msra.mxu0 %v1623
      %1668 = vmatprep.subr.mxu0 0.0
      %1669 = vmatpush1.msra.mxu0 %v1622
      %1670 = vmatprep.subr.mxu0 0.0
      %1671 = vmatpush2.msra.mxu0 0.0
      %1672 = vmatprep.subr.mxu0 0.0
      %1673 = vmatpush2.msra.mxu0 0.0
      %1674 = vmatprep.subr.mxu0 0.0
      %1675 = vmatpush2.msra.mxu0 0.0
      %1676 = vmatprep.subr.mxu0 0.0
      %1677 = vmatpush2.msra.mxu0 0.0
      %1678 = vmatprep.subr.mxu0 0.0
      %1679 = vmatpush2.msra.mxu0 0.0
      %1680 = vmatprep.subr.mxu0 0.0
      %1681 = vmatpush2.msra.mxu0 0.0
      %1682 = vmatprep.subr.mxu0 0.0
      %1683 = vmatpush2.msra.mxu0 0.0
      %1684 = vmatprep.subr.mxu0 0.0
      %1685 = vmatpush2.msra.mxu0 0.0
      %1686 = vmatprep.subr.mxu0 0.0
      %1687 = vmatpush2.msra.mxu0 0.0
      %1688 = vmatprep.subr.mxu0 0.0
      %1689 = vmatpush2.msra.mxu0 0.0
      %1690 = vmatprep.subr.mxu0 0.0
      %1691 = vmatpush2.msra.mxu0 0.0
      %1692 = vmatprep.subr.mxu0 0.0
      %1693 = vmatpush2.msra.mxu0 0.0
      %1694 = vmatprep.subr.mxu0 0.0
      %1695 = vmatpush2.msra.mxu0 0.0
      %1696 = vmatprep.subr.mxu0 0.0
      %1697 = vmatpush2.msra.mxu0 0.0
      %1698 = vmatprep.subr.mxu0 0.0
      %1699 = vmatpush2.msra.mxu0 0.0
      %1700 = vmatprep.subr.mxu0 0.0
      %1701 = vmatpush2.msra.mxu0 0.0
      %1702 = vmatprep.mubr.f32.mxu0 0.0
      %1703 = vmatmul.mubr.f32.gmra.mxu0 %v1598
      %v1704 = vpop.f32.mrf.mxu0
      %v1705 = vadd.f32 0.0, %v1704
      %v1706 = vpop.f32.mrf.mxu0
      %1707 = vmatprep.mubr.f32.mxu0 0.0
      %1708 = vmatmul.mubr.f32.gmra.mxu0 %v1599
      %v1709 = vpop.f32.mrf.mxu0
      %v1710 = vadd.f32 0.0, %v1709
      %v1711 = vpop.f32.mrf.mxu0
      %1712 = vmatprep.mubr.f32.mxu0 0.0
      %1713 = vmatmul.mubr.f32.gmra.mxu0 %v1600
      %v1714 = vpop.f32.mrf.mxu0
      %v1715 = vadd.f32 0.0, %v1714
      %v1716 = vpop.f32.mrf.mxu0
      %1717 = vmatprep.mubr.f32.mxu0 0.0
      %1718 = vmatmul.mubr.f32.gmra.mxu0 %v1601
      %v1719 = vpop.f32.mrf.mxu0
      %v1720 = vadd.f32 0.0, %v1719
      %v1721 = vpop.f32.mrf.mxu0
      %1722 = vmatprep.mubr.f32.mxu0 0.0
      %1723 = vmatmul.mubr.f32.gmra.mxu0 %v1602
      %v1724 = vpop.f32.mrf.mxu0
      %v1725 = vadd.f32 0.0, %v1724
      %v1726 = vpop.f32.mrf.mxu0
      %1727 = vmatprep.mubr.f32.mxu0 0.0
      %1728 = vmatmul.mubr.f32.gmra.mxu0 %v1603
      %v1729 = vpop.f32.mrf.mxu0
      %v1730 = vadd.f32 0.0, %v1729
      %v1731 = vpop.f32.mrf.mxu0
      %1732 = vmatprep.mubr.f32.mxu0 0.0
      %1733 = vmatmul.mubr.f32.gmra.mxu0 %v1604
      %v1734 = vpop.f32.mrf.mxu0
      %v1735 = vadd.f32 0.0, %v1734
      %v1736 = vpop.f32.mrf.mxu0
      %1737 = vmatprep.mubr.f32.mxu0 0.0
      %1738 = vmatmul.mubr.f32.gmra.mxu0 %v1605
      %v1739 = vpop.f32.mrf.mxu0
      %v1740 = vadd.f32 0.0, %v1739
      %v1741 = vpop.f32.mrf.mxu0
      %1742 = vmatprep.mubr.f32.mxu0 0.0
      %1743 = vmatmul.mubr.f32.gmra.mxu0 %v1606
      %v1744 = vpop.f32.mrf.mxu0
      %v1745 = vadd.f32 0.0, %v1744
      %v1746 = vpop.f32.mrf.mxu0
      %1747 = vmatprep.mubr.f32.mxu0 0.0
      %1748 = vmatmul.mubr.f32.gmra.mxu0 %v1607
      %v1749 = vpop.f32.mrf.mxu0
      %v1750 = vadd.f32 0.0, %v1749
      %v1751 = vpop.f32.mrf.mxu0
      %1752 = vmatprep.mubr.f32.mxu0 0.0
      %1753 = vmatmul.mubr.f32.gmra.mxu0 %v1608
      %v1754 = vpop.f32.mrf.mxu0
      %v1755 = vadd.f32 0.0, %v1754
      %v1756 = vpop.f32.mrf.mxu0
      %1757 = vmatprep.mubr.f32.mxu0 0.0
      %1758 = vmatmul.mubr.f32.gmra.mxu0 %v1609
      %v1759 = vpop.f32.mrf.mxu0
      %v1760 = vadd.f32 0.0, %v1759
      %v1761 = vpop.f32.mrf.mxu0
      %1762 = vmatprep.mubr.f32.mxu0 0.0
      %1763 = vmatmul.mubr.f32.gmra.mxu0 %v1610
      %v1764 = vpop.f32.mrf.mxu0
      %v1765 = vadd.f32 0.0, %v1764
      %v1766 = vpop.f32.mrf.mxu0
      %1767 = vmatprep.mubr.f32.mxu0 0.0
      %1768 = vmatmul.mubr.f32.gmra.mxu0 %v1611
      %v1769 = vpop.f32.mrf.mxu0
      %v1770 = vadd.f32 0.0, %v1769
      %v1771 = vpop.f32.mrf.mxu0
      %1772 = vmatprep.mubr.f32.mxu0 0.0
      %1773 = vmatmul.mubr.f32.gmra.mxu0 %v1612
      %v1774 = vpop.f32.mrf.mxu0
      %v1775 = vadd.f32 0.0, %v1774
      %v1776 = vpop.f32.mrf.mxu0
      %1777 = vmatprep.mubr.f32.mxu0 0.0
      %1778 = vmatmul.mubr.f32.gmra.mxu0 %v1613
      %v1779 = vpop.f32.mrf.mxu0
      %v1780 = vadd.f32 0.0, %v1779
      %v1781 = vpop.f32.mrf.mxu0
      %1782 = vmatprep.mubr.f32.mxu0 0.0
      %1783 = vmatmul.mubr.f32.gmra.mxu0 %v1614
      %v1784 = vpop.f32.mrf.mxu0
      %v1785 = vadd.f32 0.0, %v1784
      %v1786 = vpop.f32.mrf.mxu0
      %1787 = vmatprep.mubr.f32.mxu0 0.0
      %1788 = vmatmul.mubr.f32.gmra.mxu0 %v1615
      %v1789 = vpop.f32.mrf.mxu0
      %v1790 = vadd.f32 0.0, %v1789
      %v1791 = vpop.f32.mrf.mxu0
      %1792 = vmatprep.mubr.f32.mxu0 0.0
      %1793 = vmatmul.mubr.f32.gmra.mxu0 %v1616
      %v1794 = vpop.f32.mrf.mxu0
      %v1795 = vadd.f32 0.0, %v1794
      %v1796 = vpop.f32.mrf.mxu0
      %1797 = vmatprep.mubr.f32.mxu0 0.0
      %1798 = vmatmul.mubr.f32.gmra.mxu0 %v1617
      %v1799 = vpop.f32.mrf.mxu0
      %v1800 = vadd.f32 0.0, %v1799
      %v1801 = vpop.f32.mrf.mxu0
      %1802 = vmatprep.mubr.f32.mxu0 0.0
      %1803 = vmatmul.mubr.f32.gmra.mxu0 %v1618
      %v1804 = vpop.f32.mrf.mxu0
      %v1805 = vadd.f32 0.0, %v1804
      %v1806 = vpop.f32.mrf.mxu0
      %1807 = vmatprep.mubr.f32.mxu0 0.0
      %1808 = vmatmul.mubr.f32.gmra.mxu0 %v1619
      %v1809 = vpop.f32.mrf.mxu0
      %v1810 = vadd.f32 0.0, %v1809
      %v1811 = vpop.f32.mrf.mxu0
      %1812 = vmatprep.mubr.f32.mxu0 0.0
      %1813 = vmatmul.mubr.f32.gmra.mxu0 %v1620
      %v1814 = vpop.f32.mrf.mxu0
      %v1815 = vadd.f32 0.0, %v1814
      %v1816 = vpop.f32.mrf.mxu0
      %1817 = vdwg.mxu0
      %v1818 = vadd.f32 %v1575, %v1705
      %v1819 = vadd.f32 %v1576, %v1710
      %v1820 = vadd.f32 %v1577, %v1715
      %v1821 = vadd.f32 %v1578, %v1720
      %v1822 = vadd.f32 %v1579, %v1725
      %v1823 = vadd.f32 %v1580, %v1730
      %v1824 = vadd.f32 %v1581, %v1735
      %v1825 = vadd.f32 %v1582, %v1740
      %v1826 = vadd.f32 %v1583, %v1745
      %v1827 = vadd.f32 %v1584, %v1750
      %v1828 = vadd.f32 %v1585, %v1755
      %v1829 = vadd.f32 %v1586, %v1760
      %v1830 = vadd.f32 %v1587, %v1765
      %v1831 = vadd.f32 %v1588, %v1770
      %v1832 = vadd.f32 %v1589, %v1775
      %v1833 = vadd.f32 %v1590, %v1780
      %v1834 = vadd.f32 %v1591, %v1785
      %v1835 = vadd.f32 %v1592, %v1790
      %v1836 = vadd.f32 %v1593, %v1795
      %v1837 = vadd.f32 %v1594, %v1800
      %v1838 = vadd.f32 %v1595, %v1805
      %v1839 = vadd.f32 %v1596, %v1810
      %v1840 = vadd.f32 %v1597, %v1815
      %v1841 = vld [vmem:[%s385 + $0x2b] sm:$0xff]
      %v1842 = vld [vmem:[%s385 + $0x33] sm:$0xff]
      %v1843 = vld [vmem:[%s385 + $0x3b] sm:$0xff]
      %v1844 = vld [vmem:[%s385 + $0x43] sm:$0xff]
      %v1845 = vld [vmem:[%s385 + $0x4b] sm:$0xff]
      %v1846 = vld [vmem:[%s385 + $0x53] sm:$0xff]
      %v1847 = vld [vmem:[%s385 + $0x5b] sm:$0xff]
      %v1848 = vld [vmem:[%s385 + $0x63] sm:$0xff]
      %v1849 = vld [vmem:[%s385 + $0x6b] sm:$0xff]
      %v1850 = vld [vmem:[%s385 + $0x73] sm:$0xff]
      %v1851 = vld [vmem:[%s385 + $0x7b] sm:$0xff]
      %v1852 = vld [vmem:[%s385 + $0x83] sm:$0xff]
      %v1853 = vld [vmem:[%s385 + $0x8b] sm:$0xff]
      %v1854 = vld [vmem:[%s385 + $0x93] sm:$0xff]
      %v1855 = vld [vmem:[%s385 + $0x9b] sm:$0xff]
      %v1856 = vld [vmem:[%s385 + $0xa3] sm:$0xff]
      %v1857 = vld [vmem:[%s385 + $0xab] sm:$0xff]
      %v1858 = vld [vmem:[%s385 + $0xb3] sm:$0xff]
      %v1859 = vld [vmem:[%s385 + $0xbb] sm:$0xff]
      %v1860 = vld [vmem:[%s385 + $0xc3] sm:$0xff]
      %v1861 = vld [vmem:[%s385 + $0xcb] sm:$0xff]
      %v1862 = vld [vmem:[%s385 + $0xd3] sm:$0xff]
      %v1863 = vld [vmem:[%s385 + $0xdb] sm:$0xf]
      %s1864 = scalar_lea.vmem %s2, 768
      %v1865 = vld [vmem:[%s1864] sm:$0xff]
      %v1866 = vld [vmem:[%s1864 + $0x8] sm:$0xff]
      %v1867 = vld [vmem:[%s1864 + $0x10] sm:$0xff]
      %v1868 = vld [vmem:[%s1864 + $0x18] sm:$0xff]
      %v1869 = vld [vmem:[%s1864 + $0x20] sm:$0xff]
      %v1870 = vld [vmem:[%s1864 + $0x28] sm:$0xff]
      %v1871 = vld [vmem:[%s1864 + $0x30] sm:$0xff]
      %v1872 = vld [vmem:[%s1864 + $0x38] sm:$0xff]
      %v1873 = vld [vmem:[%s1864 + $0x40] sm:$0xff]
      %v1874 = vld [vmem:[%s1864 + $0x48] sm:$0xff]
      %v1875 = vld [vmem:[%s1864 + $0x50] sm:$0xff]
      %v1876 = vld [vmem:[%s1864 + $0x58] sm:$0xff]
      %v1877 = vld [vmem:[%s1864 + $0x60] sm:$0xff]
      %v1878 = vld [vmem:[%s1864 + $0x68] sm:$0xff]
      %v1879 = vld [vmem:[%s1864 + $0x70] sm:$0xff]
      %v1880 = vld [vmem:[%s1864 + $0x78] sm:$0xff]
      %1881 = vmatprep.subr.mxu0 0.0
      %1882 = vmatpush1.msra.mxu0 %v1880
      %1883 = vmatprep.subr.mxu0 0.0
      %1884 = vmatpush1.msra.mxu0 %v1879
      %1885 = vmatprep.subr.mxu0 0.0
      %1886 = vmatpush1.msra.mxu0 %v1878
      %1887 = vmatprep.subr.mxu0 0.0
      %1888 = vmatpush1.msra.mxu0 %v1877
      %1889 = vmatprep.subr.mxu0 0.0
      %1890 = vmatpush1.msra.mxu0 %v1876
      %1891 = vmatprep.subr.mxu0 0.0
      %1892 = vmatpush1.msra.mxu0 %v1875
      %1893 = vmatprep.subr.mxu0 0.0
      %1894 = vmatpush1.msra.mxu0 %v1874
      %1895 = vmatprep.subr.mxu0 0.0
      %1896 = vmatpush1.msra.mxu0 %v1873
      %1897 = vmatprep.subr.mxu0 0.0
      %1898 = vmatpush1.msra.mxu0 %v1872
      %1899 = vmatprep.subr.mxu0 0.0
      %1900 = vmatpush1.msra.mxu0 %v1871
      %1901 = vmatprep.subr.mxu0 0.0
      %1902 = vmatpush1.msra.mxu0 %v1870
      %1903 = vmatprep.subr.mxu0 0.0
      %1904 = vmatpush1.msra.mxu0 %v1869
      %1905 = vmatprep.subr.mxu0 0.0
      %1906 = vmatpush1.msra.mxu0 %v1868
      %1907 = vmatprep.subr.mxu0 0.0
      %1908 = vmatpush1.msra.mxu0 %v1867
      %1909 = vmatprep.subr.mxu0 0.0
      %1910 = vmatpush1.msra.mxu0 %v1866
      %1911 = vmatprep.subr.mxu0 0.0
      %1912 = vmatpush1.msra.mxu0 %v1865
      %1913 = vmatprep.subr.mxu0 0.0
      %1914 = vmatpush2.msra.mxu0 0.0
      %1915 = vmatprep.subr.mxu0 0.0
      %1916 = vmatpush2.msra.mxu0 0.0
      %1917 = vmatprep.subr.mxu0 0.0
      %1918 = vmatpush2.msra.mxu0 0.0
      %1919 = vmatprep.subr.mxu0 0.0
      %1920 = vmatpush2.msra.mxu0 0.0
      %1921 = vmatprep.subr.mxu0 0.0
      %1922 = vmatpush2.msra.mxu0 0.0
      %1923 = vmatprep.subr.mxu0 0.0
      %1924 = vmatpush2.msra.mxu0 0.0
      %1925 = vmatprep.subr.mxu0 0.0
      %1926 = vmatpush2.msra.mxu0 0.0
      %1927 = vmatprep.subr.mxu0 0.0
      %1928 = vmatpush2.msra.mxu0 0.0
      %1929 = vmatprep.subr.mxu0 0.0
      %1930 = vmatpush2.msra.mxu0 0.0
      %1931 = vmatprep.subr.mxu0 0.0
      %1932 = vmatpush2.msra.mxu0 0.0
      %1933 = vmatprep.subr.mxu0 0.0
      %1934 = vmatpush2.msra.mxu0 0.0
      %1935 = vmatprep.subr.mxu0 0.0
      %1936 = vmatpush2.msra.mxu0 0.0
      %1937 = vmatprep.subr.mxu0 0.0
      %1938 = vmatpush2.msra.mxu0 0.0
      %1939 = vmatprep.subr.mxu0 0.0
      %1940 = vmatpush2.msra.mxu0 0.0
      %1941 = vmatprep.subr.mxu0 0.0
      %1942 = vmatpush2.msra.mxu0 0.0
      %1943 = vmatprep.subr.mxu0 0.0
      %1944 = vmatpush2.msra.mxu0 0.0
      %1945 = vmatprep.mubr.f32.mxu0 0.0
      %1946 = vmatmul.mubr.f32.gmra.mxu0 %v1841
      %v1947 = vpop.f32.mrf.mxu0
      %v1948 = vadd.f32 0.0, %v1947
      %v1949 = vpop.f32.mrf.mxu0
      %1950 = vmatprep.mubr.f32.mxu0 0.0
      %1951 = vmatmul.mubr.f32.gmra.mxu0 %v1842
      %v1952 = vpop.f32.mrf.mxu0
      %v1953 = vadd.f32 0.0, %v1952
      %v1954 = vpop.f32.mrf.mxu0
      %1955 = vmatprep.mubr.f32.mxu0 0.0
      %1956 = vmatmul.mubr.f32.gmra.mxu0 %v1843
      %v1957 = vpop.f32.mrf.mxu0
      %v1958 = vadd.f32 0.0, %v1957
      %v1959 = vpop.f32.mrf.mxu0
      %1960 = vmatprep.mubr.f32.mxu0 0.0
      %1961 = vmatmul.mubr.f32.gmra.mxu0 %v1844
      %v1962 = vpop.f32.mrf.mxu0
      %v1963 = vadd.f32 0.0, %v1962
      %v1964 = vpop.f32.mrf.mxu0
      %1965 = vmatprep.mubr.f32.mxu0 0.0
      %1966 = vmatmul.mubr.f32.gmra.mxu0 %v1845
      %v1967 = vpop.f32.mrf.mxu0
      %v1968 = vadd.f32 0.0, %v1967
      %v1969 = vpop.f32.mrf.mxu0
      %1970 = vmatprep.mubr.f32.mxu0 0.0
      %1971 = vmatmul.mubr.f32.gmra.mxu0 %v1846
      %v1972 = vpop.f32.mrf.mxu0
      %v1973 = vadd.f32 0.0, %v1972
      %v1974 = vpop.f32.mrf.mxu0
      %1975 = vmatprep.mubr.f32.mxu0 0.0
      %1976 = vmatmul.mubr.f32.gmra.mxu0 %v1847
      %v1977 = vpop.f32.mrf.mxu0
      %v1978 = vadd.f32 0.0, %v1977
      %v1979 = vpop.f32.mrf.mxu0
      %1980 = vmatprep.mubr.f32.mxu0 0.0
      %1981 = vmatmul.mubr.f32.gmra.mxu0 %v1848
      %v1982 = vpop.f32.mrf.mxu0
      %v1983 = vadd.f32 0.0, %v1982
      %v1984 = vpop.f32.mrf.mxu0
      %1985 = vmatprep.mubr.f32.mxu0 0.0
      %1986 = vmatmul.mubr.f32.gmra.mxu0 %v1849
      %v1987 = vpop.f32.mrf.mxu0
      %v1988 = vadd.f32 0.0, %v1987
      %v1989 = vpop.f32.mrf.mxu0
      %1990 = vmatprep.mubr.f32.mxu0 0.0
      %1991 = vmatmul.mubr.f32.gmra.mxu0 %v1850
      %v1992 = vpop.f32.mrf.mxu0
      %v1993 = vadd.f32 0.0, %v1992
      %v1994 = vpop.f32.mrf.mxu0
      %1995 = vmatprep.mubr.f32.mxu0 0.0
      %1996 = vmatmul.mubr.f32.gmra.mxu0 %v1851
      %v1997 = vpop.f32.mrf.mxu0
      %v1998 = vadd.f32 0.0, %v1997
      %v1999 = vpop.f32.mrf.mxu0
      %2000 = vmatprep.mubr.f32.mxu0 0.0
      %2001 = vmatmul.mubr.f32.gmra.mxu0 %v1852
      %v2002 = vpop.f32.mrf.mxu0
      %v2003 = vadd.f32 0.0, %v2002
      %v2004 = vpop.f32.mrf.mxu0
      %2005 = vmatprep.mubr.f32.mxu0 0.0
      %2006 = vmatmul.mubr.f32.gmra.mxu0 %v1853
      %v2007 = vpop.f32.mrf.mxu0
      %v2008 = vadd.f32 0.0, %v2007
      %v2009 = vpop.f32.mrf.mxu0
      %2010 = vmatprep.mubr.f32.mxu0 0.0
      %2011 = vmatmul.mubr.f32.gmra.mxu0 %v1854
      %v2012 = vpop.f32.mrf.mxu0
      %v2013 = vadd.f32 0.0, %v2012
      %v2014 = vpop.f32.mrf.mxu0
      %2015 = vmatprep.mubr.f32.mxu0 0.0
      %2016 = vmatmul.mubr.f32.gmra.mxu0 %v1855
      %v2017 = vpop.f32.mrf.mxu0
      %v2018 = vadd.f32 0.0, %v2017
      %v2019 = vpop.f32.mrf.mxu0
      %2020 = vmatprep.mubr.f32.mxu0 0.0
      %2021 = vmatmul.mubr.f32.gmra.mxu0 %v1856
      %v2022 = vpop.f32.mrf.mxu0
      %v2023 = vadd.f32 0.0, %v2022
      %v2024 = vpop.f32.mrf.mxu0
      %2025 = vmatprep.mubr.f32.mxu0 0.0
      %2026 = vmatmul.mubr.f32.gmra.mxu0 %v1857
      %v2027 = vpop.f32.mrf.mxu0
      %v2028 = vadd.f32 0.0, %v2027
      %v2029 = vpop.f32.mrf.mxu0
      %2030 = vmatprep.mubr.f32.mxu0 0.0
      %2031 = vmatmul.mubr.f32.gmra.mxu0 %v1858
      %v2032 = vpop.f32.mrf.mxu0
      %v2033 = vadd.f32 0.0, %v2032
      %v2034 = vpop.f32.mrf.mxu0
      %2035 = vmatprep.mubr.f32.mxu0 0.0
      %2036 = vmatmul.mubr.f32.gmra.mxu0 %v1859
      %v2037 = vpop.f32.mrf.mxu0
      %v2038 = vadd.f32 0.0, %v2037
      %v2039 = vpop.f32.mrf.mxu0
      %2040 = vmatprep.mubr.f32.mxu0 0.0
      %2041 = vmatmul.mubr.f32.gmra.mxu0 %v1860
      %v2042 = vpop.f32.mrf.mxu0
      %v2043 = vadd.f32 0.0, %v2042
      %v2044 = vpop.f32.mrf.mxu0
      %2045 = vmatprep.mubr.f32.mxu0 0.0
      %2046 = vmatmul.mubr.f32.gmra.mxu0 %v1861
      %v2047 = vpop.f32.mrf.mxu0
      %v2048 = vadd.f32 0.0, %v2047
      %v2049 = vpop.f32.mrf.mxu0
      %2050 = vmatprep.mubr.f32.mxu0 0.0
      %2051 = vmatmul.mubr.f32.gmra.mxu0 %v1862
      %v2052 = vpop.f32.mrf.mxu0
      %v2053 = vadd.f32 0.0, %v2052
      %v2054 = vpop.f32.mrf.mxu0
      %2055 = vmatprep.mubr.f32.mxu0 0.0
      %2056 = vmatmul.mubr.f32.gmra.mxu0 %v1863
      %v2057 = vpop.f32.mrf.mxu0
      %v2058 = vadd.f32 0.0, %v2057
      %v2059 = vpop.f32.mrf.mxu0
      %2060 = vdwg.mxu0
      %v2061 = vadd.f32 %v1818, %v1948
      %v2062 = vadd.f32 %v1819, %v1953
      %v2063 = vadd.f32 %v1820, %v1958
      %v2064 = vadd.f32 %v1821, %v1963
      %v2065 = vadd.f32 %v1822, %v1968
      %v2066 = vadd.f32 %v1823, %v1973
      %v2067 = vadd.f32 %v1824, %v1978
      %v2068 = vadd.f32 %v1825, %v1983
      %v2069 = vadd.f32 %v1826, %v1988
      %v2070 = vadd.f32 %v1827, %v1993
      %v2071 = vadd.f32 %v1828, %v1998
      %v2072 = vadd.f32 %v1829, %v2003
      %v2073 = vadd.f32 %v1830, %v2008
      %v2074 = vadd.f32 %v1831, %v2013
      %v2075 = vadd.f32 %v1832, %v2018
      %v2076 = vadd.f32 %v1833, %v2023
      %v2077 = vadd.f32 %v1834, %v2028
      %v2078 = vadd.f32 %v1835, %v2033
      %v2079 = vadd.f32 %v1836, %v2038
      %v2080 = vadd.f32 %v1837, %v2043
      %v2081 = vadd.f32 %v1838, %v2048
      %v2082 = vadd.f32 %v1839, %v2053
      %v2083 = vadd.f32 %v1840, %v2058
      %v2084 = vld [vmem:[%s385 + $0x2c] sm:$0xff]
      %v2085 = vld [vmem:[%s385 + $0x34] sm:$0xff]
      %v2086 = vld [vmem:[%s385 + $0x3c] sm:$0xff]
      %v2087 = vld [vmem:[%s385 + $0x44] sm:$0xff]
      %v2088 = vld [vmem:[%s385 + $0x4c] sm:$0xff]
      %v2089 = vld [vmem:[%s385 + $0x54] sm:$0xff]
      %v2090 = vld [vmem:[%s385 + $0x5c] sm:$0xff]
      %v2091 = vld [vmem:[%s385 + $0x64] sm:$0xff]
      %v2092 = vld [vmem:[%s385 + $0x6c] sm:$0xff]
      %v2093 = vld [vmem:[%s385 + $0x74] sm:$0xff]
      %v2094 = vld [vmem:[%s385 + $0x7c] sm:$0xff]
      %v2095 = vld [vmem:[%s385 + $0x84] sm:$0xff]
      %v2096 = vld [vmem:[%s385 + $0x8c] sm:$0xff]
      %v2097 = vld [vmem:[%s385 + $0x94] sm:$0xff]
      %v2098 = vld [vmem:[%s385 + $0x9c] sm:$0xff]
      %v2099 = vld [vmem:[%s385 + $0xa4] sm:$0xff]
      %v2100 = vld [vmem:[%s385 + $0xac] sm:$0xff]
      %v2101 = vld [vmem:[%s385 + $0xb4] sm:$0xff]
      %v2102 = vld [vmem:[%s385 + $0xbc] sm:$0xff]
      %v2103 = vld [vmem:[%s385 + $0xc4] sm:$0xff]
      %v2104 = vld [vmem:[%s385 + $0xcc] sm:$0xff]
      %v2105 = vld [vmem:[%s385 + $0xd4] sm:$0xff]
      %v2106 = vld [vmem:[%s385 + $0xdc] sm:$0xf]
      %s2107 = scalar_lea.vmem %s2, 896
      %v2108 = vld [vmem:[%s2107] sm:$0xff]
      %v2109 = vld [vmem:[%s2107 + $0x8] sm:$0xff]
      %v2110 = vld [vmem:[%s2107 + $0x10] sm:$0xff]
      %v2111 = vld [vmem:[%s2107 + $0x18] sm:$0xff]
      %v2112 = vld [vmem:[%s2107 + $0x20] sm:$0xff]
      %v2113 = vld [vmem:[%s2107 + $0x28] sm:$0xff]
      %v2114 = vld [vmem:[%s2107 + $0x30] sm:$0xff]
      %v2115 = vld [vmem:[%s2107 + $0x38] sm:$0xff]
      %v2116 = vld [vmem:[%s2107 + $0x40] sm:$0xff]
      %v2117 = vld [vmem:[%s2107 + $0x48] sm:$0xff]
      %v2118 = vld [vmem:[%s2107 + $0x50] sm:$0xff]
      %v2119 = vld [vmem:[%s2107 + $0x58] sm:$0xff]
      %v2120 = vld [vmem:[%s2107 + $0x60] sm:$0xff]
      %v2121 = vld [vmem:[%s2107 + $0x68] sm:$0xff]
      %v2122 = vld [vmem:[%s2107 + $0x70] sm:$0xff]
      %v2123 = vld [vmem:[%s2107 + $0x78] sm:$0xff]
      %2124 = vmatprep.subr.mxu0 0.0
      %2125 = vmatpush1.msra.mxu0 %v2123
      %2126 = vmatprep.subr.mxu0 0.0
      %2127 = vmatpush1.msra.mxu0 %v2122
      %2128 = vmatprep.subr.mxu0 0.0
      %2129 = vmatpush1.msra.mxu0 %v2121
      %2130 = vmatprep.subr.mxu0 0.0
      %2131 = vmatpush1.msra.mxu0 %v2120
      %2132 = vmatprep.subr.mxu0 0.0
      %2133 = vmatpush1.msra.mxu0 %v2119
      %2134 = vmatprep.subr.mxu0 0.0
      %2135 = vmatpush1.msra.mxu0 %v2118
      %2136 = vmatprep.subr.mxu0 0.0
      %2137 = vmatpush1.msra.mxu0 %v2117
      %2138 = vmatprep.subr.mxu0 0.0
      %2139 = vmatpush1.msra.mxu0 %v2116
      %2140 = vmatprep.subr.mxu0 0.0
      %2141 = vmatpush1.msra.mxu0 %v2115
      %2142 = vmatprep.subr.mxu0 0.0
      %2143 = vmatpush1.msra.mxu0 %v2114
      %2144 = vmatprep.subr.mxu0 0.0
      %2145 = vmatpush1.msra.mxu0 %v2113
      %2146 = vmatprep.subr.mxu0 0.0
      %2147 = vmatpush1.msra.mxu0 %v2112
      %2148 = vmatprep.subr.mxu0 0.0
      %2149 = vmatpush1.msra.mxu0 %v2111
      %2150 = vmatprep.subr.mxu0 0.0
      %2151 = vmatpush1.msra.mxu0 %v2110
      %2152 = vmatprep.subr.mxu0 0.0
      %2153 = vmatpush1.msra.mxu0 %v2109
      %2154 = vmatprep.subr.mxu0 0.0
      %2155 = vmatpush1.msra.mxu0 %v2108
      %2156 = vmatprep.subr.mxu0 0.0
      %2157 = vmatpush2.msra.mxu0 0.0
      %2158 = vmatprep.subr.mxu0 0.0
      %2159 = vmatpush2.msra.mxu0 0.0
      %2160 = vmatprep.subr.mxu0 0.0
      %2161 = vmatpush2.msra.mxu0 0.0
      %2162 = vmatprep.subr.mxu0 0.0
      %2163 = vmatpush2.msra.mxu0 0.0
      %2164 = vmatprep.subr.mxu0 0.0
      %2165 = vmatpush2.msra.mxu0 0.0
      %2166 = vmatprep.subr.mxu0 0.0
      %2167 = vmatpush2.msra.mxu0 0.0
      %2168 = vmatprep.subr.mxu0 0.0
      %2169 = vmatpush2.msra.mxu0 0.0
      %2170 = vmatprep.subr.mxu0 0.0
      %2171 = vmatpush2.msra.mxu0 0.0
      %2172 = vmatprep.subr.mxu0 0.0
      %2173 = vmatpush2.msra.mxu0 0.0
      %2174 = vmatprep.subr.mxu0 0.0
      %2175 = vmatpush2.msra.mxu0 0.0
      %2176 = vmatprep.subr.mxu0 0.0
      %2177 = vmatpush2.msra.mxu0 0.0
      %2178 = vmatprep.subr.mxu0 0.0
      %2179 = vmatpush2.msra.mxu0 0.0
      %2180 = vmatprep.subr.mxu0 0.0
      %2181 = vmatpush2.msra.mxu0 0.0
      %2182 = vmatprep.subr.mxu0 0.0
      %2183 = vmatpush2.msra.mxu0 0.0
      %2184 = vmatprep.subr.mxu0 0.0
      %2185 = vmatpush2.msra.mxu0 0.0
      %2186 = vmatprep.subr.mxu0 0.0
      %2187 = vmatpush2.msra.mxu0 0.0
      %2188 = vmatprep.mubr.f32.mxu0 0.0
      %2189 = vmatmul.mubr.f32.gmra.mxu0 %v2084
      %v2190 = vpop.f32.mrf.mxu0
      %v2191 = vadd.f32 0.0, %v2190
      %v2192 = vpop.f32.mrf.mxu0
      %2193 = vmatprep.mubr.f32.mxu0 0.0
      %2194 = vmatmul.mubr.f32.gmra.mxu0 %v2085
      %v2195 = vpop.f32.mrf.mxu0
      %v2196 = vadd.f32 0.0, %v2195
      %v2197 = vpop.f32.mrf.mxu0
      %2198 = vmatprep.mubr.f32.mxu0 0.0
      %2199 = vmatmul.mubr.f32.gmra.mxu0 %v2086
      %v2200 = vpop.f32.mrf.mxu0
      %v2201 = vadd.f32 0.0, %v2200
      %v2202 = vpop.f32.mrf.mxu0
      %2203 = vmatprep.mubr.f32.mxu0 0.0
      %2204 = vmatmul.mubr.f32.gmra.mxu0 %v2087
      %v2205 = vpop.f32.mrf.mxu0
      %v2206 = vadd.f32 0.0, %v2205
      %v2207 = vpop.f32.mrf.mxu0
      %2208 = vmatprep.mubr.f32.mxu0 0.0
      %2209 = vmatmul.mubr.f32.gmra.mxu0 %v2088
      %v2210 = vpop.f32.mrf.mxu0
      %v2211 = vadd.f32 0.0, %v2210
      %v2212 = vpop.f32.mrf.mxu0
      %2213 = vmatprep.mubr.f32.mxu0 0.0
      %2214 = vmatmul.mubr.f32.gmra.mxu0 %v2089
      %v2215 = vpop.f32.mrf.mxu0
      %v2216 = vadd.f32 0.0, %v2215
      %v2217 = vpop.f32.mrf.mxu0
      %2218 = vmatprep.mubr.f32.mxu0 0.0
      %2219 = vmatmul.mubr.f32.gmra.mxu0 %v2090
      %v2220 = vpop.f32.mrf.mxu0
      %v2221 = vadd.f32 0.0, %v2220
      %v2222 = vpop.f32.mrf.mxu0
      %2223 = vmatprep.mubr.f32.mxu0 0.0
      %2224 = vmatmul.mubr.f32.gmra.mxu0 %v2091
      %v2225 = vpop.f32.mrf.mxu0
      %v2226 = vadd.f32 0.0, %v2225
      %v2227 = vpop.f32.mrf.mxu0
      %2228 = vmatprep.mubr.f32.mxu0 0.0
      %2229 = vmatmul.mubr.f32.gmra.mxu0 %v2092
      %v2230 = vpop.f32.mrf.mxu0
      %v2231 = vadd.f32 0.0, %v2230
      %v2232 = vpop.f32.mrf.mxu0
      %2233 = vmatprep.mubr.f32.mxu0 0.0
      %2234 = vmatmul.mubr.f32.gmra.mxu0 %v2093
      %v2235 = vpop.f32.mrf.mxu0
      %v2236 = vadd.f32 0.0, %v2235
      %v2237 = vpop.f32.mrf.mxu0
      %2238 = vmatprep.mubr.f32.mxu0 0.0
      %2239 = vmatmul.mubr.f32.gmra.mxu0 %v2094
      %v2240 = vpop.f32.mrf.mxu0
      %v2241 = vadd.f32 0.0, %v2240
      %v2242 = vpop.f32.mrf.mxu0
      %2243 = vmatprep.mubr.f32.mxu0 0.0
      %2244 = vmatmul.mubr.f32.gmra.mxu0 %v2095
      %v2245 = vpop.f32.mrf.mxu0
      %v2246 = vadd.f32 0.0, %v2245
      %v2247 = vpop.f32.mrf.mxu0
      %2248 = vmatprep.mubr.f32.mxu0 0.0
      %2249 = vmatmul.mubr.f32.gmra.mxu0 %v2096
      %v2250 = vpop.f32.mrf.mxu0
      %v2251 = vadd.f32 0.0, %v2250
      %v2252 = vpop.f32.mrf.mxu0
      %2253 = vmatprep.mubr.f32.mxu0 0.0
      %2254 = vmatmul.mubr.f32.gmra.mxu0 %v2097
      %v2255 = vpop.f32.mrf.mxu0
      %v2256 = vadd.f32 0.0, %v2255
      %v2257 = vpop.f32.mrf.mxu0
      %2258 = vmatprep.mubr.f32.mxu0 0.0
      %2259 = vmatmul.mubr.f32.gmra.mxu0 %v2098
      %v2260 = vpop.f32.mrf.mxu0
      %v2261 = vadd.f32 0.0, %v2260
      %v2262 = vpop.f32.mrf.mxu0
      %2263 = vmatprep.mubr.f32.mxu0 0.0
      %2264 = vmatmul.mubr.f32.gmra.mxu0 %v2099
      %v2265 = vpop.f32.mrf.mxu0
      %v2266 = vadd.f32 0.0, %v2265
      %v2267 = vpop.f32.mrf.mxu0
      %2268 = vmatprep.mubr.f32.mxu0 0.0
      %2269 = vmatmul.mubr.f32.gmra.mxu0 %v2100
      %v2270 = vpop.f32.mrf.mxu0
      %v2271 = vadd.f32 0.0, %v2270
      %v2272 = vpop.f32.mrf.mxu0
      %2273 = vmatprep.mubr.f32.mxu0 0.0
      %2274 = vmatmul.mubr.f32.gmra.mxu0 %v2101
      %v2275 = vpop.f32.mrf.mxu0
      %v2276 = vadd.f32 0.0, %v2275
      %v2277 = vpop.f32.mrf.mxu0
      %2278 = vmatprep.mubr.f32.mxu0 0.0
      %2279 = vmatmul.mubr.f32.gmra.mxu0 %v2102
      %v2280 = vpop.f32.mrf.mxu0
      %v2281 = vadd.f32 0.0, %v2280
      %v2282 = vpop.f32.mrf.mxu0
      %2283 = vmatprep.mubr.f32.mxu0 0.0
      %2284 = vmatmul.mubr.f32.gmra.mxu0 %v2103
      %v2285 = vpop.f32.mrf.mxu0
      %v2286 = vadd.f32 0.0, %v2285
      %v2287 = vpop.f32.mrf.mxu0
      %2288 = vmatprep.mubr.f32.mxu0 0.0
      %2289 = vmatmul.mubr.f32.gmra.mxu0 %v2104
      %v2290 = vpop.f32.mrf.mxu0
      %v2291 = vadd.f32 0.0, %v2290
      %v2292 = vpop.f32.mrf.mxu0
      %2293 = vmatprep.mubr.f32.mxu0 0.0
      %2294 = vmatmul.mubr.f32.gmra.mxu0 %v2105
      %v2295 = vpop.f32.mrf.mxu0
      %v2296 = vadd.f32 0.0, %v2295
      %v2297 = vpop.f32.mrf.mxu0
      %2298 = vmatprep.mubr.f32.mxu0 0.0
      %2299 = vmatmul.mubr.f32.gmra.mxu0 %v2106
      %v2300 = vpop.f32.mrf.mxu0
      %v2301 = vadd.f32 0.0, %v2300
      %v2302 = vpop.f32.mrf.mxu0
      %2303 = vdwg.mxu0
      %v2304 = vadd.f32 %v2061, %v2191
      %v2305 = vadd.f32 %v2062, %v2196
      %v2306 = vadd.f32 %v2063, %v2201
      %v2307 = vadd.f32 %v2064, %v2206
      %v2308 = vadd.f32 %v2065, %v2211
      %v2309 = vadd.f32 %v2066, %v2216
      %v2310 = vadd.f32 %v2067, %v2221
      %v2311 = vadd.f32 %v2068, %v2226
      %v2312 = vadd.f32 %v2069, %v2231
      %v2313 = vadd.f32 %v2070, %v2236
      %v2314 = vadd.f32 %v2071, %v2241
      %v2315 = vadd.f32 %v2072, %v2246
      %v2316 = vadd.f32 %v2073, %v2251
      %v2317 = vadd.f32 %v2074, %v2256
      %v2318 = vadd.f32 %v2075, %v2261
      %v2319 = vadd.f32 %v2076, %v2266
      %v2320 = vadd.f32 %v2077, %v2271
      %v2321 = vadd.f32 %v2078, %v2276
      %v2322 = vadd.f32 %v2079, %v2281
      %v2323 = vadd.f32 %v2080, %v2286
      %v2324 = vadd.f32 %v2081, %v2291
      %v2325 = vadd.f32 %v2082, %v2296
      %v2326 = vadd.f32 %v2083, %v2301
      %v2327 = vld [vmem:[%s385 + $0x2d] sm:$0xff]
      %v2328 = vld [vmem:[%s385 + $0x35] sm:$0xff]
      %v2329 = vld [vmem:[%s385 + $0x3d] sm:$0xff]
      %v2330 = vld [vmem:[%s385 + $0x45] sm:$0xff]
      %v2331 = vld [vmem:[%s385 + $0x4d] sm:$0xff]
      %v2332 = vld [vmem:[%s385 + $0x55] sm:$0xff]
      %v2333 = vld [vmem:[%s385 + $0x5d] sm:$0xff]
      %v2334 = vld [vmem:[%s385 + $0x65] sm:$0xff]
      %v2335 = vld [vmem:[%s385 + $0x6d] sm:$0xff]
      %v2336 = vld [vmem:[%s385 + $0x75] sm:$0xff]
      %v2337 = vld [vmem:[%s385 + $0x7d] sm:$0xff]
      %v2338 = vld [vmem:[%s385 + $0x85] sm:$0xff]
      %v2339 = vld [vmem:[%s385 + $0x8d] sm:$0xff]
      %v2340 = vld [vmem:[%s385 + $0x95] sm:$0xff]
      %v2341 = vld [vmem:[%s385 + $0x9d] sm:$0xff]
      %v2342 = vld [vmem:[%s385 + $0xa5] sm:$0xff]
      %v2343 = vld [vmem:[%s385 + $0xad] sm:$0xff]
      %v2344 = vld [vmem:[%s385 + $0xb5] sm:$0xff]
      %v2345 = vld [vmem:[%s385 + $0xbd] sm:$0xff]
      %v2346 = vld [vmem:[%s385 + $0xc5] sm:$0xff]
      %v2347 = vld [vmem:[%s385 + $0xcd] sm:$0xff]
      %v2348 = vld [vmem:[%s385 + $0xd5] sm:$0xff]
      %v2349 = vld [vmem:[%s385 + $0xdd] sm:$0xf]
      %s2350 = scalar_lea.vmem %s2, 1024
      %v2351 = vld [vmem:[%s2350] sm:$0xff]
      %v2352 = vld [vmem:[%s2350 + $0x8] sm:$0xff]
      %v2353 = vld [vmem:[%s2350 + $0x10] sm:$0xff]
      %v2354 = vld [vmem:[%s2350 + $0x18] sm:$0xff]
      %v2355 = vld [vmem:[%s2350 + $0x20] sm:$0xff]
      %v2356 = vld [vmem:[%s2350 + $0x28] sm:$0xff]
      %v2357 = vld [vmem:[%s2350 + $0x30] sm:$0xff]
      %v2358 = vld [vmem:[%s2350 + $0x38] sm:$0xff]
      %v2359 = vld [vmem:[%s2350 + $0x40] sm:$0xff]
      %v2360 = vld [vmem:[%s2350 + $0x48] sm:$0xff]
      %v2361 = vld [vmem:[%s2350 + $0x50] sm:$0xff]
      %v2362 = vld [vmem:[%s2350 + $0x58] sm:$0xff]
      %v2363 = vld [vmem:[%s2350 + $0x60] sm:$0xff]
      %v2364 = vld [vmem:[%s2350 + $0x68] sm:$0xff]
      %v2365 = vld [vmem:[%s2350 + $0x70] sm:$0xff]
      %v2366 = vld [vmem:[%s2350 + $0x78] sm:$0xff]
      %2367 = vmatprep.subr.mxu0 0.0
      %2368 = vmatpush1.msra.mxu0 %v2366
      %2369 = vmatprep.subr.mxu0 0.0
      %2370 = vmatpush1.msra.mxu0 %v2365
      %2371 = vmatprep.subr.mxu0 0.0
      %2372 = vmatpush1.msra.mxu0 %v2364
      %2373 = vmatprep.subr.mxu0 0.0
      %2374 = vmatpush1.msra.mxu0 %v2363
      %2375 = vmatprep.subr.mxu0 0.0
      %2376 = vmatpush1.msra.mxu0 %v2362
      %2377 = vmatprep.subr.mxu0 0.0
      %2378 = vmatpush1.msra.mxu0 %v2361
      %2379 = vmatprep.subr.mxu0 0.0
      %2380 = vmatpush1.msra.mxu0 %v2360
      %2381 = vmatprep.subr.mxu0 0.0
      %2382 = vmatpush1.msra.mxu0 %v2359
      %2383 = vmatprep.subr.mxu0 0.0
      %2384 = vmatpush1.msra.mxu0 %v2358
      %2385 = vmatprep.subr.mxu0 0.0
      %2386 = vmatpush1.msra.mxu0 %v2357
      %2387 = vmatprep.subr.mxu0 0.0
      %2388 = vmatpush1.msra.mxu0 %v2356
      %2389 = vmatprep.subr.mxu0 0.0
      %2390 = vmatpush1.msra.mxu0 %v2355
      %2391 = vmatprep.subr.mxu0 0.0
      %2392 = vmatpush1.msra.mxu0 %v2354
      %2393 = vmatprep.subr.mxu0 0.0
      %2394 = vmatpush1.msra.mxu0 %v2353
      %2395 = vmatprep.subr.mxu0 0.0
      %2396 = vmatpush1.msra.mxu0 %v2352
      %2397 = vmatprep.subr.mxu0 0.0
      %2398 = vmatpush1.msra.mxu0 %v2351
      %2399 = vmatprep.subr.mxu0 0.0
      %2400 = vmatpush2.msra.mxu0 0.0
      %2401 = vmatprep.subr.mxu0 0.0
      %2402 = vmatpush2.msra.mxu0 0.0
      %2403 = vmatprep.subr.mxu0 0.0
      %2404 = vmatpush2.msra.mxu0 0.0
      %2405 = vmatprep.subr.mxu0 0.0
      %2406 = vmatpush2.msra.mxu0 0.0
      %2407 = vmatprep.subr.mxu0 0.0
      %2408 = vmatpush2.msra.mxu0 0.0
      %2409 = vmatprep.subr.mxu0 0.0
      %2410 = vmatpush2.msra.mxu0 0.0
      %2411 = vmatprep.subr.mxu0 0.0
      %2412 = vmatpush2.msra.mxu0 0.0
      %2413 = vmatprep.subr.mxu0 0.0
      %2414 = vmatpush2.msra.mxu0 0.0
      %2415 = vmatprep.subr.mxu0 0.0
      %2416 = vmatpush2.msra.mxu0 0.0
      %2417 = vmatprep.subr.mxu0 0.0
      %2418 = vmatpush2.msra.mxu0 0.0
      %2419 = vmatprep.subr.mxu0 0.0
      %2420 = vmatpush2.msra.mxu0 0.0
      %2421 = vmatprep.subr.mxu0 0.0
      %2422 = vmatpush2.msra.mxu0 0.0
      %2423 = vmatprep.subr.mxu0 0.0
      %2424 = vmatpush2.msra.mxu0 0.0
      %2425 = vmatprep.subr.mxu0 0.0
      %2426 = vmatpush2.msra.mxu0 0.0
      %2427 = vmatprep.subr.mxu0 0.0
      %2428 = vmatpush2.msra.mxu0 0.0
      %2429 = vmatprep.subr.mxu0 0.0
      %2430 = vmatpush2.msra.mxu0 0.0
      %2431 = vmatprep.mubr.f32.mxu0 0.0
      %2432 = vmatmul.mubr.f32.gmra.mxu0 %v2327
      %v2433 = vpop.f32.mrf.mxu0
      %v2434 = vadd.f32 0.0, %v2433
      %v2435 = vpop.f32.mrf.mxu0
      %2436 = vmatprep.mubr.f32.mxu0 0.0
      %2437 = vmatmul.mubr.f32.gmra.mxu0 %v2328
      %v2438 = vpop.f32.mrf.mxu0
      %v2439 = vadd.f32 0.0, %v2438
      %v2440 = vpop.f32.mrf.mxu0
      %2441 = vmatprep.mubr.f32.mxu0 0.0
      %2442 = vmatmul.mubr.f32.gmra.mxu0 %v2329
      %v2443 = vpop.f32.mrf.mxu0
      %v2444 = vadd.f32 0.0, %v2443
      %v2445 = vpop.f32.mrf.mxu0
      %2446 = vmatprep.mubr.f32.mxu0 0.0
      %2447 = vmatmul.mubr.f32.gmra.mxu0 %v2330
      %v2448 = vpop.f32.mrf.mxu0
      %v2449 = vadd.f32 0.0, %v2448
      %v2450 = vpop.f32.mrf.mxu0
      %2451 = vmatprep.mubr.f32.mxu0 0.0
      %2452 = vmatmul.mubr.f32.gmra.mxu0 %v2331
      %v2453 = vpop.f32.mrf.mxu0
      %v2454 = vadd.f32 0.0, %v2453
      %v2455 = vpop.f32.mrf.mxu0
      %2456 = vmatprep.mubr.f32.mxu0 0.0
      %2457 = vmatmul.mubr.f32.gmra.mxu0 %v2332
      %v2458 = vpop.f32.mrf.mxu0
      %v2459 = vadd.f32 0.0, %v2458
      %v2460 = vpop.f32.mrf.mxu0
      %2461 = vmatprep.mubr.f32.mxu0 0.0
      %2462 = vmatmul.mubr.f32.gmra.mxu0 %v2333
      %v2463 = vpop.f32.mrf.mxu0
      %v2464 = vadd.f32 0.0, %v2463
      %v2465 = vpop.f32.mrf.mxu0
      %2466 = vmatprep.mubr.f32.mxu0 0.0
      %2467 = vmatmul.mubr.f32.gmra.mxu0 %v2334
      %v2468 = vpop.f32.mrf.mxu0
      %v2469 = vadd.f32 0.0, %v2468
      %v2470 = vpop.f32.mrf.mxu0
      %2471 = vmatprep.mubr.f32.mxu0 0.0
      %2472 = vmatmul.mubr.f32.gmra.mxu0 %v2335
      %v2473 = vpop.f32.mrf.mxu0
      %v2474 = vadd.f32 0.0, %v2473
      %v2475 = vpop.f32.mrf.mxu0
      %2476 = vmatprep.mubr.f32.mxu0 0.0
      %2477 = vmatmul.mubr.f32.gmra.mxu0 %v2336
      %v2478 = vpop.f32.mrf.mxu0
      %v2479 = vadd.f32 0.0, %v2478
      %v2480 = vpop.f32.mrf.mxu0
      %2481 = vmatprep.mubr.f32.mxu0 0.0
      %2482 = vmatmul.mubr.f32.gmra.mxu0 %v2337
      %v2483 = vpop.f32.mrf.mxu0
      %v2484 = vadd.f32 0.0, %v2483
      %v2485 = vpop.f32.mrf.mxu0
      %2486 = vmatprep.mubr.f32.mxu0 0.0
      %2487 = vmatmul.mubr.f32.gmra.mxu0 %v2338
      %v2488 = vpop.f32.mrf.mxu0
      %v2489 = vadd.f32 0.0, %v2488
      %v2490 = vpop.f32.mrf.mxu0
      %2491 = vmatprep.mubr.f32.mxu0 0.0
      %2492 = vmatmul.mubr.f32.gmra.mxu0 %v2339
      %v2493 = vpop.f32.mrf.mxu0
      %v2494 = vadd.f32 0.0, %v2493
      %v2495 = vpop.f32.mrf.mxu0
      %2496 = vmatprep.mubr.f32.mxu0 0.0
      %2497 = vmatmul.mubr.f32.gmra.mxu0 %v2340
      %v2498 = vpop.f32.mrf.mxu0
      %v2499 = vadd.f32 0.0, %v2498
      %v2500 = vpop.f32.mrf.mxu0
      %2501 = vmatprep.mubr.f32.mxu0 0.0
      %2502 = vmatmul.mubr.f32.gmra.mxu0 %v2341
      %v2503 = vpop.f32.mrf.mxu0
      %v2504 = vadd.f32 0.0, %v2503
      %v2505 = vpop.f32.mrf.mxu0
      %2506 = vmatprep.mubr.f32.mxu0 0.0
      %2507 = vmatmul.mubr.f32.gmra.mxu0 %v2342
      %v2508 = vpop.f32.mrf.mxu0
      %v2509 = vadd.f32 0.0, %v2508
      %v2510 = vpop.f32.mrf.mxu0
      %2511 = vmatprep.mubr.f32.mxu0 0.0
      %2512 = vmatmul.mubr.f32.gmra.mxu0 %v2343
      %v2513 = vpop.f32.mrf.mxu0
      %v2514 = vadd.f32 0.0, %v2513
      %v2515 = vpop.f32.mrf.mxu0
      %2516 = vmatprep.mubr.f32.mxu0 0.0
      %2517 = vmatmul.mubr.f32.gmra.mxu0 %v2344
      %v2518 = vpop.f32.mrf.mxu0
      %v2519 = vadd.f32 0.0, %v2518
      %v2520 = vpop.f32.mrf.mxu0
      %2521 = vmatprep.mubr.f32.mxu0 0.0
      %2522 = vmatmul.mubr.f32.gmra.mxu0 %v2345
      %v2523 = vpop.f32.mrf.mxu0
      %v2524 = vadd.f32 0.0, %v2523
      %v2525 = vpop.f32.mrf.mxu0
      %2526 = vmatprep.mubr.f32.mxu0 0.0
      %2527 = vmatmul.mubr.f32.gmra.mxu0 %v2346
      %v2528 = vpop.f32.mrf.mxu0
      %v2529 = vadd.f32 0.0, %v2528
      %v2530 = vpop.f32.mrf.mxu0
      %2531 = vmatprep.mubr.f32.mxu0 0.0
      %2532 = vmatmul.mubr.f32.gmra.mxu0 %v2347
      %v2533 = vpop.f32.mrf.mxu0
      %v2534 = vadd.f32 0.0, %v2533
      %v2535 = vpop.f32.mrf.mxu0
      %2536 = vmatprep.mubr.f32.mxu0 0.0
      %2537 = vmatmul.mubr.f32.gmra.mxu0 %v2348
      %v2538 = vpop.f32.mrf.mxu0
      %v2539 = vadd.f32 0.0, %v2538
      %v2540 = vpop.f32.mrf.mxu0
      %2541 = vmatprep.mubr.f32.mxu0 0.0
      %2542 = vmatmul.mubr.f32.gmra.mxu0 %v2349
      %v2543 = vpop.f32.mrf.mxu0
      %v2544 = vadd.f32 0.0, %v2543
      %v2545 = vpop.f32.mrf.mxu0
      %2546 = vdwg.mxu0
      %v2547 = vadd.f32 %v2304, %v2434
      %v2548 = vadd.f32 %v2305, %v2439
      %v2549 = vadd.f32 %v2306, %v2444
      %v2550 = vadd.f32 %v2307, %v2449
      %v2551 = vadd.f32 %v2308, %v2454
      %v2552 = vadd.f32 %v2309, %v2459
      %v2553 = vadd.f32 %v2310, %v2464
      %v2554 = vadd.f32 %v2311, %v2469
      %v2555 = vadd.f32 %v2312, %v2474
      %v2556 = vadd.f32 %v2313, %v2479
      %v2557 = vadd.f32 %v2314, %v2484
      %v2558 = vadd.f32 %v2315, %v2489
      %v2559 = vadd.f32 %v2316, %v2494
      %v2560 = vadd.f32 %v2317, %v2499
      %v2561 = vadd.f32 %v2318, %v2504
      %v2562 = vadd.f32 %v2319, %v2509
      %v2563 = vadd.f32 %v2320, %v2514
      %v2564 = vadd.f32 %v2321, %v2519
      %v2565 = vadd.f32 %v2322, %v2524
      %v2566 = vadd.f32 %v2323, %v2529
      %v2567 = vadd.f32 %v2324, %v2534
      %v2568 = vadd.f32 %v2325, %v2539
      %v2569 = vadd.f32 %v2326, %v2544
      %v2570 = vld [vmem:[%s5] sm:$0x1]
      %v2572 = vlaneseq
      %v2573 = vshrl.u32 %v2572, 7
      %v2574 = vsub.s32 0, %v2573
      %v2575 = vrot.slane %v2570, %v2574
      %v2577 = vadd.f32 %v2547, %v2575
      %v2578 = vadd.f32 %v2548, %v2575
      %v2579 = vadd.f32 %v2549, %v2575
      %v2580 = vadd.f32 %v2550, %v2575
      %v2581 = vadd.f32 %v2551, %v2575
      %v2582 = vadd.f32 %v2552, %v2575
      %v2583 = vadd.f32 %v2553, %v2575
      %v2584 = vadd.f32 %v2554, %v2575
      %v2585 = vadd.f32 %v2555, %v2575
      %v2586 = vadd.f32 %v2556, %v2575
      %v2587 = vadd.f32 %v2557, %v2575
      %v2588 = vadd.f32 %v2558, %v2575
      %v2589 = vadd.f32 %v2559, %v2575
      %v2590 = vadd.f32 %v2560, %v2575
      %v2591 = vadd.f32 %v2561, %v2575
      %v2592 = vadd.f32 %v2562, %v2575
      %v2593 = vadd.f32 %v2563, %v2575
      %v2594 = vadd.f32 %v2564, %v2575
      %v2595 = vadd.f32 %v2565, %v2575
      %v2596 = vadd.f32 %v2566, %v2575
      %v2597 = vadd.f32 %v2567, %v2575
      %v2598 = vadd.f32 %v2568, %v2575
      %v2599 = vadd.f32 %v2569, %v2575
      %v2600 = vmax.f32 %v2577, 0.0
      %v2601 = vmax.f32 %v2578, 0.0
      %v2602 = vmax.f32 %v2579, 0.0
      %v2603 = vmax.f32 %v2580, 0.0
      %v2604 = vmax.f32 %v2581, 0.0
      %v2605 = vmax.f32 %v2582, 0.0
      %v2606 = vmax.f32 %v2583, 0.0
      %v2607 = vmax.f32 %v2584, 0.0
      %v2608 = vmax.f32 %v2585, 0.0
      %v2609 = vmax.f32 %v2586, 0.0
      %v2610 = vmax.f32 %v2587, 0.0
      %v2611 = vmax.f32 %v2588, 0.0
      %v2612 = vmax.f32 %v2589, 0.0
      %v2613 = vmax.f32 %v2590, 0.0
      %v2614 = vmax.f32 %v2591, 0.0
      %v2615 = vmax.f32 %v2592, 0.0
      %v2616 = vmax.f32 %v2593, 0.0
      %v2617 = vmax.f32 %v2594, 0.0
      %v2618 = vmax.f32 %v2595, 0.0
      %v2619 = vmax.f32 %v2596, 0.0
      %v2620 = vmax.f32 %v2597, 0.0
      %v2621 = vmax.f32 %v2598, 0.0
      %v2622 = vmax.f32 %v2599, 0.0
      %2624 = vset.pattern.permute.xlu0 0
      %2625 = vperm.xlu0 %2624, %v407
      %v2626 = vpop.permute.xlu0 %2625
      %2629 = vset.pattern.permute.xlu0 0
      %2630 = vperm.xlu0 %2629, %v408
      %v2631 = vpop.permute.xlu0 %2630
      %2634 = vset.pattern.permute.xlu0 0
      %2635 = vperm.xlu0 %2634, %v409
      %v2636 = vpop.permute.xlu0 %2635
      %2639 = vset.pattern.permute.xlu0 0
      %2640 = vperm.xlu0 %2639, %v410
      %v2641 = vpop.permute.xlu0 %2640
      %2644 = vset.pattern.permute.xlu0 0
      %2645 = vperm.xlu0 %2644, %v411
      %v2646 = vpop.permute.xlu0 %2645
      %2649 = vset.pattern.permute.xlu0 0
      %2650 = vperm.xlu0 %2649, %v412
      %v2651 = vpop.permute.xlu0 %2650
      %2654 = vset.pattern.permute.xlu0 0
      %2655 = vperm.xlu0 %2654, %v413
      %v2656 = vpop.permute.xlu0 %2655
      %2659 = vset.pattern.permute.xlu0 0
      %2660 = vperm.xlu0 %2659, %v414
      %v2661 = vpop.permute.xlu0 %2660
      %2664 = vset.pattern.permute.xlu0 0
      %2665 = vperm.xlu0 %2664, %v415
      %v2666 = vpop.permute.xlu0 %2665
      %2669 = vset.pattern.permute.xlu0 0
      %2670 = vperm.xlu0 %2669, %v416
      %v2671 = vpop.permute.xlu0 %2670
      %2674 = vset.pattern.permute.xlu0 0
      %2675 = vperm.xlu0 %2674, %v417
      %v2676 = vpop.permute.xlu0 %2675
      %2679 = vset.pattern.permute.xlu0 0
      %2680 = vperm.xlu0 %2679, %v418
      %v2681 = vpop.permute.xlu0 %2680
      %2684 = vset.pattern.permute.xlu0 0
      %2685 = vperm.xlu0 %2684, %v419
      %v2686 = vpop.permute.xlu0 %2685
      %2689 = vset.pattern.permute.xlu0 0
      %2690 = vperm.xlu0 %2689, %v420
      %v2691 = vpop.permute.xlu0 %2690
      %2694 = vset.pattern.permute.xlu0 0
      %2695 = vperm.xlu0 %2694, %v421
      %v2696 = vpop.permute.xlu0 %2695
      %2699 = vset.pattern.permute.xlu0 0
      %2700 = vperm.xlu0 %2699, %v422
      %v2701 = vpop.permute.xlu0 %2700
      %2704 = vset.pattern.permute.xlu0 0
      %2705 = vperm.xlu0 %2704, %v423
      %v2706 = vpop.permute.xlu0 %2705
      %2709 = vset.pattern.permute.xlu0 0
      %2710 = vperm.xlu0 %2709, %v424
      %v2711 = vpop.permute.xlu0 %2710
      %2714 = vset.pattern.permute.xlu0 0
      %2715 = vperm.xlu0 %2714, %v425
      %v2716 = vpop.permute.xlu0 %2715
      %2719 = vset.pattern.permute.xlu0 0
      %2720 = vperm.xlu0 %2719, %v426
      %v2721 = vpop.permute.xlu0 %2720
      %2724 = vset.pattern.permute.xlu0 0
      %2725 = vperm.xlu0 %2724, %v427
      %v2726 = vpop.permute.xlu0 %2725
      %2729 = vset.pattern.permute.xlu0 0
      %2730 = vperm.xlu0 %2729, %v428
      %v2731 = vpop.permute.xlu0 %2730
      %2734 = vset.pattern.permute.xlu0 0
      %2735 = vperm.xlu0 %2734, %v429
      %v2736 = vpop.permute.xlu0 %2735
      %v2738 = vmul.f32 %v2600, %v2626
      %v2739 = vmul.f32 %v2601, %v2631
      %v2740 = vmul.f32 %v2602, %v2636
      %v2741 = vmul.f32 %v2603, %v2641
      %v2742 = vmul.f32 %v2604, %v2646
      %v2743 = vmul.f32 %v2605, %v2651
      %v2744 = vmul.f32 %v2606, %v2656
      %v2745 = vmul.f32 %v2607, %v2661
      %v2746 = vmul.f32 %v2608, %v2666
      %v2747 = vmul.f32 %v2609, %v2671
      %v2748 = vmul.f32 %v2610, %v2676
      %v2749 = vmul.f32 %v2611, %v2681
      %v2750 = vmul.f32 %v2612, %v2686
      %v2751 = vmul.f32 %v2613, %v2691
      %v2752 = vmul.f32 %v2614, %v2696
      %v2753 = vmul.f32 %v2615, %v2701
      %v2754 = vmul.f32 %v2616, %v2706
      %v2755 = vmul.f32 %v2617, %v2711
      %v2756 = vmul.f32 %v2618, %v2716
      %v2757 = vmul.f32 %v2619, %v2721
      %v2758 = vmul.f32 %v2620, %v2726
      %v2759 = vmul.f32 %v2621, %v2731
      %v2760 = vmul.f32 %v2622, %v2736
      %2761 = vst [vmem:[#allocation2] sm:$0xff] %v2738
      %2762 = vst [vmem:[#allocation2 + $0x8] sm:$0xff] %v2739
      %2763 = vst [vmem:[#allocation2 + $0x10] sm:$0xff] %v2740
      %2764 = vst [vmem:[#allocation2 + $0x18] sm:$0xff] %v2741
      %2765 = vst [vmem:[#allocation2 + $0x20] sm:$0xff] %v2742
      %2766 = vst [vmem:[#allocation2 + $0x28] sm:$0xff] %v2743
      %2767 = vst [vmem:[#allocation2 + $0x30] sm:$0xff] %v2744
      %2768 = vst [vmem:[#allocation2 + $0x38] sm:$0xff] %v2745
      %2769 = vst [vmem:[#allocation2 + $0x40] sm:$0xff] %v2746
      %2770 = vst [vmem:[#allocation2 + $0x48] sm:$0xff] %v2747
      %2771 = vst [vmem:[#allocation2 + $0x50] sm:$0xff] %v2748
      %2772 = vst [vmem:[#allocation2 + $0x58] sm:$0xff] %v2749
      %2773 = vst [vmem:[#allocation2 + $0x60] sm:$0xff] %v2750
      %2774 = vst [vmem:[#allocation2 + $0x68] sm:$0xff] %v2751
      %2775 = vst [vmem:[#allocation2 + $0x70] sm:$0xff] %v2752
      %2776 = vst [vmem:[#allocation2 + $0x78] sm:$0xff] %v2753
      %2777 = vst [vmem:[#allocation2 + $0x80] sm:$0xff] %v2754
      %2778 = vst [vmem:[#allocation2 + $0x88] sm:$0xff] %v2755
      %2779 = vst [vmem:[#allocation2 + $0x90] sm:$0xff] %v2756
      %2780 = vst [vmem:[#allocation2 + $0x98] sm:$0xff] %v2757
      %2781 = vst [vmem:[#allocation2 + $0xa0] sm:$0xff] %v2758
      %2782 = vst [vmem:[#allocation2 + $0xa8] sm:$0xff] %v2759
      %2783 = vst [vmem:[#allocation2 + $0xb0] sm:$0xf] %v2760
      %p2784 = scmp.eq.s32.totalorder %s25, 0
      // Predicated region
      $region57: #{basic_block_discriminator_forward.1} parent=55 // pred_check
        %p2785 = pneg %p2784
      $region58: #{basic_block_discriminator_forward.1} parent=55 // pred_check_branch
        %2787 = sbr.rel (%p2785) target = $region60
      $region59: #{basic_block_discriminator_forward.1} parent=55 // pred_region
        %2788 = vst [vmem:[#allocation2] sm:$0xff] 0.0
        %2789 = vst [vmem:[#allocation2 + $0x8] sm:$0xff] 0.0
        %2790 = vst [vmem:[#allocation2 + $0x10] sm:$0x3] 0.0
      $region60: #{basic_block_discriminator_forward.1} parent=55 // pred_fallthru
        _
      %p2791 = scmp.eq.s32.totalorder %s25, 1
      // Predicated region
      $region61: #{basic_block_discriminator_forward.1} parent=55 // pred_check
        %p2792 = pneg %p2791
      $region62: #{basic_block_discriminator_forward.1} parent=55 // pred_check_branch
        %2794 = sbr.rel (%p2792) target = $region64
      $region63: #{basic_block_discriminator_forward.1} parent=55 // pred_region
        %2795 = vst [vmem:[#allocation2 + $0xa2] sm:$0xff] 0.0
        %2796 = vst [vmem:[#allocation2 + $0xaa] sm:$0xff] 0.0
        %2797 = vst [vmem:[#allocation2 + $0xb2] sm:$0x3] 0.0
      $region64: #{basic_block_discriminator_forward.1} parent=55 // pred_fallthru
        _
      %v2798 = vld [vmem:[%s8] sm:$0xff]
      %v2799 = vld [vmem:[%s8 + $0x8] sm:$0xff]
      %v2800 = vld [vmem:[%s8 + $0x10] sm:$0xff]
      %v2801 = vld [vmem:[%s8 + $0x18] sm:$0xff]
      %v2802 = vld [vmem:[%s8 + $0x20] sm:$0xff]
      %v2803 = vld [vmem:[%s8 + $0x28] sm:$0xff]
      %v2804 = vld [vmem:[%s8 + $0x30] sm:$0xff]
      %v2805 = vld [vmem:[%s8 + $0x38] sm:$0xff]
      %v2806 = vld [vmem:[#allocation2] sm:$0xff]
      %v2807 = vld [vmem:[#allocation2 + $0x8] sm:$0xff]
      %v2808 = vld [vmem:[#allocation2 + $0x10] sm:$0xff]
      %v2809 = vld [vmem:[#allocation2 + $0x18] sm:$0xff]
      %v2810 = vld [vmem:[#allocation2 + $0x20] sm:$0xff]
      %v2811 = vld [vmem:[#allocation2 + $0x28] sm:$0xff]
      %v2812 = vld [vmem:[#allocation2 + $0x30] sm:$0xff]
      %v2813 = vld [vmem:[#allocation2 + $0x38] sm:$0xff]
      %v2814 = vld [vmem:[#allocation2 + $0x40] sm:$0xff]
      %v2815 = vld [vmem:[#allocation2 + $0x48] sm:$0xff]
      %v2816 = vld [vmem:[#allocation2 + $0x50] sm:$0xff]
      %v2817 = vld [vmem:[#allocation2 + $0x58] sm:$0xff]
      %v2818 = vld [vmem:[#allocation2 + $0x60] sm:$0xff]
      %v2819 = vld [vmem:[#allocation2 + $0x68] sm:$0xff]
      %v2820 = vld [vmem:[#allocation2 + $0x70] sm:$0xff]
      %v2821 = vld [vmem:[#allocation2 + $0x78] sm:$0xff]
      %v2822 = vld [vmem:[#allocation2 + $0x80] sm:$0xff]
      %v2823 = vld [vmem:[#allocation2 + $0x88] sm:$0xff]
      %v2824 = vld [vmem:[%s3] sm:$0xff]
      %v2825 = vld [vmem:[%s3 + $0x8] sm:$0xff]
      %v2826 = vld [vmem:[%s3 + $0x10] sm:$0xff]
      %v2827 = vld [vmem:[%s3 + $0x18] sm:$0xff]
      %v2828 = vld [vmem:[%s3 + $0x20] sm:$0xff]
      %v2829 = vld [vmem:[%s3 + $0x28] sm:$0xff]
      %v2830 = vld [vmem:[%s3 + $0x30] sm:$0xff]
      %v2831 = vld [vmem:[%s3 + $0x38] sm:$0xff]
      %v2832 = vld [vmem:[%s3 + $0x40] sm:$0xff]
      %v2833 = vld [vmem:[%s3 + $0x48] sm:$0xff]
      %v2834 = vld [vmem:[%s3 + $0x50] sm:$0xff]
      %v2835 = vld [vmem:[%s3 + $0x58] sm:$0xff]
      %v2836 = vld [vmem:[%s3 + $0x60] sm:$0xff]
      %v2837 = vld [vmem:[%s3 + $0x68] sm:$0xff]
      %v2838 = vld [vmem:[%s3 + $0x70] sm:$0xff]
      %v2839 = vld [vmem:[%s3 + $0x78] sm:$0xff]
      %v2840 = vld [vmem:[#allocation2 + $0x1] sm:$0xff]
      %v2841 = vld [vmem:[#allocation2 + $0x9] sm:$0xff]
      %v2842 = vld [vmem:[#allocation2 + $0x11] sm:$0xff]
      %v2843 = vld [vmem:[#allocation2 + $0x19] sm:$0xff]
      %v2844 = vld [vmem:[#allocation2 + $0x21] sm:$0xff]
      %v2845 = vld [vmem:[#allocation2 + $0x29] sm:$0xff]
      %v2846 = vld [vmem:[#allocation2 + $0x31] sm:$0xff]
      %v2847 = vld [vmem:[#allocation2 + $0x39] sm:$0xff]
      %v2848 = vld [vmem:[#allocation2 + $0x41] sm:$0xff]
      %v2849 = vld [vmem:[#allocation2 + $0x49] sm:$0xff]
      %v2850 = vld [vmem:[#allocation2 + $0x51] sm:$0xff]
      %v2851 = vld [vmem:[#allocation2 + $0x59] sm:$0xff]
      %v2852 = vld [vmem:[#allocation2 + $0x61] sm:$0xff]
      %v2853 = vld [vmem:[#allocation2 + $0x69] sm:$0xff]
      %v2854 = vld [vmem:[#allocation2 + $0x71] sm:$0xff]
      %v2855 = vld [vmem:[#allocation2 + $0x79] sm:$0xff]
      %v2856 = vld [vmem:[#allocation2 + $0x81] sm:$0xff]
      %v2857 = vld [vmem:[#allocation2 + $0x89] sm:$0xff]
      %s2858 = scalar_lea.vmem %s3, 128
      %v2859 = vld [vmem:[%s2858] sm:$0xff]
      %v2860 = vld [vmem:[%s2858 + $0x8] sm:$0xff]
      %v2861 = vld [vmem:[%s2858 + $0x10] sm:$0xff]
      %v2862 = vld [vmem:[%s2858 + $0x18] sm:$0xff]
      %v2863 = vld [vmem:[%s2858 + $0x20] sm:$0xff]
      %v2864 = vld [vmem:[%s2858 + $0x28] sm:$0xff]
      %v2865 = vld [vmem:[%s2858 + $0x30] sm:$0xff]
      %v2866 = vld [vmem:[%s2858 + $0x38] sm:$0xff]
      %v2867 = vld [vmem:[%s2858 + $0x40] sm:$0xff]
      %v2868 = vld [vmem:[%s2858 + $0x48] sm:$0xff]
      %v2869 = vld [vmem:[%s2858 + $0x50] sm:$0xff]
      %v2870 = vld [vmem:[%s2858 + $0x58] sm:$0xff]
      %v2871 = vld [vmem:[%s2858 + $0x60] sm:$0xff]
      %v2872 = vld [vmem:[%s2858 + $0x68] sm:$0xff]
      %v2873 = vld [vmem:[%s2858 + $0x70] sm:$0xff]
      %v2874 = vld [vmem:[%s2858 + $0x78] sm:$0xff]
      %2875 = vmatprep.subr.mxu0 0.0
      %2876 = vmatpush1.msra.mxu0 %v2874
      %2877 = vmatprep.subr.mxu0 0.0
      %2878 = vmatpush1.msra.mxu0 %v2873
      %2879 = vmatprep.subr.mxu0 0.0
      %2880 = vmatpush1.msra.mxu0 %v2872
      %2881 = vmatprep.subr.mxu0 0.0
      %2882 = vmatpush1.msra.mxu0 %v2871
      %2883 = vmatprep.subr.mxu0 0.0
      %2884 = vmatpush1.msra.mxu0 %v2870
      %2885 = vmatprep.subr.mxu0 0.0
      %2886 = vmatpush1.msra.mxu0 %v2869
      %2887 = vmatprep.subr.mxu0 0.0
      %2888 = vmatpush1.msra.mxu0 %v2868
      %2889 = vmatprep.subr.mxu0 0.0
      %2890 = vmatpush1.msra.mxu0 %v2867
      %2891 = vmatprep.subr.mxu0 0.0
      %2892 = vmatpush1.msra.mxu0 %v2866
      %2893 = vmatprep.subr.mxu0 0.0
      %2894 = vmatpush1.msra.mxu0 %v2865
      %2895 = vmatprep.subr.mxu0 0.0
      %2896 = vmatpush1.msra.mxu0 %v2864
      %2897 = vmatprep.subr.mxu0 0.0
      %2898 = vmatpush1.msra.mxu0 %v2863
      %2899 = vmatprep.subr.mxu0 0.0
      %2900 = vmatpush1.msra.mxu0 %v2862
      %2901 = vmatprep.subr.mxu0 0.0
      %2902 = vmatpush1.msra.mxu0 %v2861
      %2903 = vmatprep.subr.mxu0 0.0
      %2904 = vmatpush1.msra.mxu0 %v2860
      %2905 = vmatprep.subr.mxu0 0.0
      %2906 = vmatpush1.msra.mxu0 %v2859
      %2907 = vmatprep.subr.mxu0 0.0
      %2908 = vmatpush2.msra.mxu0 0.0
      %2909 = vmatprep.subr.mxu0 0.0
      %2910 = vmatpush2.msra.mxu0 0.0
      %2911 = vmatprep.subr.mxu0 0.0
      %2912 = vmatpush2.msra.mxu0 0.0
      %2913 = vmatprep.subr.mxu0 0.0
      %2914 = vmatpush2.msra.mxu0 0.0
      %2915 = vmatprep.subr.mxu0 0.0
      %2916 = vmatpush2.msra.mxu0 0.0
      %2917 = vmatprep.subr.mxu0 0.0
      %2918 = vmatpush2.msra.mxu0 0.0
      %2919 = vmatprep.subr.mxu0 0.0
      %2920 = vmatpush2.msra.mxu0 0.0
      %2921 = vmatprep.subr.mxu0 0.0
      %2922 = vmatpush2.msra.mxu0 0.0
      %2923 = vmatprep.subr.mxu0 0.0
      %2924 = vmatpush2.msra.mxu0 0.0
      %2925 = vmatprep.subr.mxu0 0.0
      %2926 = vmatpush2.msra.mxu0 0.0
      %2927 = vmatprep.subr.mxu0 0.0
      %2928 = vmatpush2.msra.mxu0 0.0
      %2929 = vmatprep.subr.mxu0 0.0
      %2930 = vmatpush2.msra.mxu0 0.0
      %2931 = vmatprep.subr.mxu0 0.0
      %2932 = vmatpush2.msra.mxu0 0.0
      %2933 = vmatprep.subr.mxu0 0.0
      %2934 = vmatpush2.msra.mxu0 0.0
      %2935 = vmatprep.subr.mxu0 0.0
      %2936 = vmatpush2.msra.mxu0 0.0
      %2937 = vmatprep.subr.mxu0 0.0
      %2938 = vmatpush2.msra.mxu0 0.0
      %2939 = vmatprep.mubr.f32.mxu0 0.0
      %2940 = vmatmul.mubr.f32.gmra.mxu0 %v2840
      %v2941 = vpop.f32.mrf.mxu0
      %v2942 = vadd.f32 0.0, %v2941
      %v2943 = vpop.f32.mrf.mxu0
      %2944 = vmatprep.mubr.f32.mxu0 0.0
      %2945 = vmatmul.mubr.f32.gmra.mxu0 %v2841
      %v2946 = vpop.f32.mrf.mxu0
      %v2947 = vadd.f32 0.0, %v2946
      %v2948 = vpop.f32.mrf.mxu0
      %2949 = vmatprep.mubr.f32.mxu0 0.0
      %2950 = vmatmul.mubr.f32.gmra.mxu0 %v2842
      %v2951 = vpop.f32.mrf.mxu0
      %v2952 = vadd.f32 0.0, %v2951
      %v2953 = vpop.f32.mrf.mxu0
      %2954 = vmatprep.mubr.f32.mxu0 0.0
      %2955 = vmatmul.mubr.f32.gmra.mxu0 %v2843
      %v2956 = vpop.f32.mrf.mxu0
      %v2957 = vadd.f32 0.0, %v2956
      %v2958 = vpop.f32.mrf.mxu0
      %2959 = vmatprep.mubr.f32.mxu0 0.0
      %2960 = vmatmul.mubr.f32.gmra.mxu0 %v2844
      %v2961 = vpop.f32.mrf.mxu0
      %v2962 = vadd.f32 0.0, %v2961
      %v2963 = vpop.f32.mrf.mxu0
      %2964 = vmatprep.mubr.f32.mxu0 0.0
      %2965 = vmatmul.mubr.f32.gmra.mxu0 %v2845
      %v2966 = vpop.f32.mrf.mxu0
      %v2967 = vadd.f32 0.0, %v2966
      %v2968 = vpop.f32.mrf.mxu0
      %2969 = vmatprep.mubr.f32.mxu0 0.0
      %2970 = vmatmul.mubr.f32.gmra.mxu0 %v2846
      %v2971 = vpop.f32.mrf.mxu0
      %v2972 = vadd.f32 0.0, %v2971
      %v2973 = vpop.f32.mrf.mxu0
      %2974 = vmatprep.mubr.f32.mxu0 0.0
      %2975 = vmatmul.mubr.f32.gmra.mxu0 %v2847
      %v2976 = vpop.f32.mrf.mxu0
      %v2977 = vadd.f32 0.0, %v2976
      %v2978 = vpop.f32.mrf.mxu0
      %2979 = vmatprep.mubr.f32.mxu0 0.0
      %2980 = vmatmul.mubr.f32.gmra.mxu0 %v2848
      %v2981 = vpop.f32.mrf.mxu0
      %v2982 = vadd.f32 0.0, %v2981
      %v2983 = vpop.f32.mrf.mxu0
      %2984 = vmatprep.mubr.f32.mxu0 0.0
      %2985 = vmatmul.mubr.f32.gmra.mxu0 %v2849
      %v2986 = vpop.f32.mrf.mxu0
      %v2987 = vadd.f32 0.0, %v2986
      %v2988 = vpop.f32.mrf.mxu0
      %2989 = vmatprep.mubr.f32.mxu0 0.0
      %2990 = vmatmul.mubr.f32.gmra.mxu0 %v2850
      %v2991 = vpop.f32.mrf.mxu0
      %v2992 = vadd.f32 0.0, %v2991
      %v2993 = vpop.f32.mrf.mxu0
      %2994 = vmatprep.mubr.f32.mxu0 0.0
      %2995 = vmatmul.mubr.f32.gmra.mxu0 %v2851
      %v2996 = vpop.f32.mrf.mxu0
      %v2997 = vadd.f32 0.0, %v2996
      %v2998 = vpop.f32.mrf.mxu0
      %2999 = vmatprep.mubr.f32.mxu0 0.0
      %3000 = vmatmul.mubr.f32.gmra.mxu0 %v2852
      %v3001 = vpop.f32.mrf.mxu0
      %v3002 = vadd.f32 0.0, %v3001
      %v3003 = vpop.f32.mrf.mxu0
      %3004 = vmatprep.mubr.f32.mxu0 0.0
      %3005 = vmatmul.mubr.f32.gmra.mxu0 %v2853
      %v3006 = vpop.f32.mrf.mxu0
      %v3007 = vadd.f32 0.0, %v3006
      %v3008 = vpop.f32.mrf.mxu0
      %3009 = vmatprep.mubr.f32.mxu0 0.0
      %3010 = vmatmul.mubr.f32.gmra.mxu0 %v2854
      %v3011 = vpop.f32.mrf.mxu0
      %v3012 = vadd.f32 0.0, %v3011
      %v3013 = vpop.f32.mrf.mxu0
      %3014 = vmatprep.mubr.f32.mxu0 0.0
      %3015 = vmatmul.mubr.f32.gmra.mxu0 %v2855
      %v3016 = vpop.f32.mrf.mxu0
      %v3017 = vadd.f32 0.0, %v3016
      %v3018 = vpop.f32.mrf.mxu0
      %3019 = vmatprep.mubr.f32.mxu0 0.0
      %3020 = vmatmul.mubr.f32.gmra.mxu0 %v2856
      %v3021 = vpop.f32.mrf.mxu0
      %v3022 = vadd.f32 0.0, %v3021
      %v3023 = vpop.f32.mrf.mxu0
      %3024 = vmatprep.mubr.f32.mxu0 0.0
      %3025 = vmatmul.mubr.f32.gmra.mxu0 %v2857
      %v3026 = vpop.f32.mrf.mxu0
      %v3027 = vadd.f32 0.0, %v3026
      %v3028 = vpop.f32.mrf.mxu0
      %3029 = vdwg.mxu0
      %3030 = vmatprep.subr.mxu0 0.0
      %3031 = vmatpush1.msra.mxu0 %v2839
      %3032 = vmatprep.subr.mxu0 0.0
      %3033 = vmatpush1.msra.mxu0 %v2838
      %3034 = vmatprep.subr.mxu0 0.0
      %3035 = vmatpush1.msra.mxu0 %v2837
      %3036 = vmatprep.subr.mxu0 0.0
      %3037 = vmatpush1.msra.mxu0 %v2836
      %3038 = vmatprep.subr.mxu0 0.0
      %3039 = vmatpush1.msra.mxu0 %v2835
      %3040 = vmatprep.subr.mxu0 0.0
      %3041 = vmatpush1.msra.mxu0 %v2834
      %3042 = vmatprep.subr.mxu0 0.0
      %3043 = vmatpush1.msra.mxu0 %v2833
      %3044 = vmatprep.subr.mxu0 0.0
      %3045 = vmatpush1.msra.mxu0 %v2832
      %3046 = vmatprep.subr.mxu0 0.0
      %3047 = vmatpush1.msra.mxu0 %v2831
      %3048 = vmatprep.subr.mxu0 0.0
      %3049 = vmatpush1.msra.mxu0 %v2830
      %3050 = vmatprep.subr.mxu0 0.0
      %3051 = vmatpush1.msra.mxu0 %v2829
      %3052 = vmatprep.subr.mxu0 0.0
      %3053 = vmatpush1.msra.mxu0 %v2828
      %3054 = vmatprep.subr.mxu0 0.0
      %3055 = vmatpush1.msra.mxu0 %v2827
      %3056 = vmatprep.subr.mxu0 0.0
      %3057 = vmatpush1.msra.mxu0 %v2826
      %3058 = vmatprep.subr.mxu0 0.0
      %3059 = vmatpush1.msra.mxu0 %v2825
      %3060 = vmatprep.subr.mxu0 0.0
      %3061 = vmatpush1.msra.mxu0 %v2824
      %3062 = vmatprep.subr.mxu0 0.0
      %3063 = vmatpush2.msra.mxu0 0.0
      %3064 = vmatprep.subr.mxu0 0.0
      %3065 = vmatpush2.msra.mxu0 0.0
      %3066 = vmatprep.subr.mxu0 0.0
      %3067 = vmatpush2.msra.mxu0 0.0
      %3068 = vmatprep.subr.mxu0 0.0
      %3069 = vmatpush2.msra.mxu0 0.0
      %3070 = vmatprep.subr.mxu0 0.0
      %3071 = vmatpush2.msra.mxu0 0.0
      %3072 = vmatprep.subr.mxu0 0.0
      %3073 = vmatpush2.msra.mxu0 0.0
      %3074 = vmatprep.subr.mxu0 0.0
      %3075 = vmatpush2.msra.mxu0 0.0
      %3076 = vmatprep.subr.mxu0 0.0
      %3077 = vmatpush2.msra.mxu0 0.0
      %3078 = vmatprep.subr.mxu0 0.0
      %3079 = vmatpush2.msra.mxu0 0.0
      %3080 = vmatprep.subr.mxu0 0.0
      %3081 = vmatpush2.msra.mxu0 0.0
      %3082 = vmatprep.subr.mxu0 0.0
      %3083 = vmatpush2.msra.mxu0 0.0
      %3084 = vmatprep.subr.mxu0 0.0
      %3085 = vmatpush2.msra.mxu0 0.0
      %3086 = vmatprep.subr.mxu0 0.0
      %3087 = vmatpush2.msra.mxu0 0.0
      %3088 = vmatprep.subr.mxu0 0.0
      %3089 = vmatpush2.msra.mxu0 0.0
      %3090 = vmatprep.subr.mxu0 0.0
      %3091 = vmatpush2.msra.mxu0 0.0
      %3092 = vmatprep.subr.mxu0 0.0
      %3093 = vmatpush2.msra.mxu0 0.0
      %3094 = vmatprep.mubr.f32.mxu0 0.0
      %3095 = vmatmul.mubr.f32.gmra.mxu0 %v2806
      %v3096 = vpop.f32.mrf.mxu0
      %v3097 = vadd.f32 %v2942, %v3096
      %v3098 = vpop.f32.mrf.mxu0
      %3099 = vmatprep.mubr.f32.mxu0 0.0
      %3100 = vmatmul.mubr.f32.gmra.mxu0 %v2807
      %v3101 = vpop.f32.mrf.mxu0
      %v3102 = vadd.f32 %v2947, %v3101
      %v3103 = vpop.f32.mrf.mxu0
      %3104 = vmatprep.mubr.f32.mxu0 0.0
      %3105 = vmatmul.mubr.f32.gmra.mxu0 %v2808
      %v3106 = vpop.f32.mrf.mxu0
      %v3107 = vadd.f32 %v2952, %v3106
      %v3108 = vpop.f32.mrf.mxu0
      %3109 = vmatprep.mubr.f32.mxu0 0.0
      %3110 = vmatmul.mubr.f32.gmra.mxu0 %v2809
      %v3111 = vpop.f32.mrf.mxu0
      %v3112 = vadd.f32 %v2957, %v3111
      %v3113 = vpop.f32.mrf.mxu0
      %3114 = vmatprep.mubr.f32.mxu0 0.0
      %3115 = vmatmul.mubr.f32.gmra.mxu0 %v2810
      %v3116 = vpop.f32.mrf.mxu0
      %v3117 = vadd.f32 %v2962, %v3116
      %v3118 = vpop.f32.mrf.mxu0
      %3119 = vmatprep.mubr.f32.mxu0 0.0
      %3120 = vmatmul.mubr.f32.gmra.mxu0 %v2811
      %v3121 = vpop.f32.mrf.mxu0
      %v3122 = vadd.f32 %v2967, %v3121
      %v3123 = vpop.f32.mrf.mxu0
      %3124 = vmatprep.mubr.f32.mxu0 0.0
      %3125 = vmatmul.mubr.f32.gmra.mxu0 %v2812
      %v3126 = vpop.f32.mrf.mxu0
      %v3127 = vadd.f32 %v2972, %v3126
      %v3128 = vpop.f32.mrf.mxu0
      %3129 = vmatprep.mubr.f32.mxu0 0.0
      %3130 = vmatmul.mubr.f32.gmra.mxu0 %v2813
      %v3131 = vpop.f32.mrf.mxu0
      %v3132 = vadd.f32 %v2977, %v3131
      %v3133 = vpop.f32.mrf.mxu0
      %3134 = vmatprep.mubr.f32.mxu0 0.0
      %3135 = vmatmul.mubr.f32.gmra.mxu0 %v2814
      %v3136 = vpop.f32.mrf.mxu0
      %v3137 = vadd.f32 %v2982, %v3136
      %v3138 = vpop.f32.mrf.mxu0
      %3139 = vmatprep.mubr.f32.mxu0 0.0
      %3140 = vmatmul.mubr.f32.gmra.mxu0 %v2815
      %v3141 = vpop.f32.mrf.mxu0
      %v3142 = vadd.f32 %v2987, %v3141
      %v3143 = vpop.f32.mrf.mxu0
      %3144 = vmatprep.mubr.f32.mxu0 0.0
      %3145 = vmatmul.mubr.f32.gmra.mxu0 %v2816
      %v3146 = vpop.f32.mrf.mxu0
      %v3147 = vadd.f32 %v2992, %v3146
      %v3148 = vpop.f32.mrf.mxu0
      %3149 = vmatprep.mubr.f32.mxu0 0.0
      %3150 = vmatmul.mubr.f32.gmra.mxu0 %v2817
      %v3151 = vpop.f32.mrf.mxu0
      %v3152 = vadd.f32 %v2997, %v3151
      %v3153 = vpop.f32.mrf.mxu0
      %3154 = vmatprep.mubr.f32.mxu0 0.0
      %3155 = vmatmul.mubr.f32.gmra.mxu0 %v2818
      %v3156 = vpop.f32.mrf.mxu0
      %v3157 = vadd.f32 %v3002, %v3156
      %v3158 = vpop.f32.mrf.mxu0
      %3159 = vmatprep.mubr.f32.mxu0 0.0
      %3160 = vmatmul.mubr.f32.gmra.mxu0 %v2819
      %v3161 = vpop.f32.mrf.mxu0
      %v3162 = vadd.f32 %v3007, %v3161
      %v3163 = vpop.f32.mrf.mxu0
      %3164 = vmatprep.mubr.f32.mxu0 0.0
      %3165 = vmatmul.mubr.f32.gmra.mxu0 %v2820
      %v3166 = vpop.f32.mrf.mxu0
      %v3167 = vadd.f32 %v3012, %v3166
      %v3168 = vpop.f32.mrf.mxu0
      %3169 = vmatprep.mubr.f32.mxu0 0.0
      %3170 = vmatmul.mubr.f32.gmra.mxu0 %v2821
      %v3171 = vpop.f32.mrf.mxu0
      %v3172 = vadd.f32 %v3017, %v3171
      %v3173 = vpop.f32.mrf.mxu0
      %3174 = vmatprep.mubr.f32.mxu0 0.0
      %3175 = vmatmul.mubr.f32.gmra.mxu0 %v2822
      %v3176 = vpop.f32.mrf.mxu0
      %v3177 = vadd.f32 %v3022, %v3176
      %v3178 = vpop.f32.mrf.mxu0
      %3179 = vmatprep.mubr.f32.mxu0 0.0
      %3180 = vmatmul.mubr.f32.gmra.mxu0 %v2823
      %v3181 = vpop.f32.mrf.mxu0
      %v3182 = vadd.f32 %v3027, %v3181
      %v3183 = vpop.f32.mrf.mxu0
      %3184 = vdwg.mxu0
      %v3185 = vld [vmem:[#allocation2 + $0x2] sm:$0xff]
      %v3186 = vld [vmem:[#allocation2 + $0xa] sm:$0xff]
      %v3187 = vld [vmem:[#allocation2 + $0x12] sm:$0xff]
      %v3188 = vld [vmem:[#allocation2 + $0x1a] sm:$0xff]
      %v3189 = vld [vmem:[#allocation2 + $0x22] sm:$0xff]
      %v3190 = vld [vmem:[#allocation2 + $0x2a] sm:$0xff]
      %v3191 = vld [vmem:[#allocation2 + $0x32] sm:$0xff]
      %v3192 = vld [vmem:[#allocation2 + $0x3a] sm:$0xff]
      %v3193 = vld [vmem:[#allocation2 + $0x42] sm:$0xff]
      %v3194 = vld [vmem:[#allocation2 + $0x4a] sm:$0xff]
      %v3195 = vld [vmem:[#allocation2 + $0x52] sm:$0xff]
      %v3196 = vld [vmem:[#allocation2 + $0x5a] sm:$0xff]
      %v3197 = vld [vmem:[#allocation2 + $0x62] sm:$0xff]
      %v3198 = vld [vmem:[#allocation2 + $0x6a] sm:$0xff]
      %v3199 = vld [vmem:[#allocation2 + $0x72] sm:$0xff]
      %v3200 = vld [vmem:[#allocation2 + $0x7a] sm:$0xff]
      %v3201 = vld [vmem:[#allocation2 + $0x82] sm:$0xff]
      %v3202 = vld [vmem:[#allocation2 + $0x8a] sm:$0xff]
      %s3203 = scalar_lea.vmem %s3, 256
      %v3204 = vld [vmem:[%s3203] sm:$0xff]
      %v3205 = vld [vmem:[%s3203 + $0x8] sm:$0xff]
      %v3206 = vld [vmem:[%s3203 + $0x10] sm:$0xff]
      %v3207 = vld [vmem:[%s3203 + $0x18] sm:$0xff]
      %v3208 = vld [vmem:[%s3203 + $0x20] sm:$0xff]
      %v3209 = vld [vmem:[%s3203 + $0x28] sm:$0xff]
      %v3210 = vld [vmem:[%s3203 + $0x30] sm:$0xff]
      %v3211 = vld [vmem:[%s3203 + $0x38] sm:$0xff]
      %v3212 = vld [vmem:[%s3203 + $0x40] sm:$0xff]
      %v3213 = vld [vmem:[%s3203 + $0x48] sm:$0xff]
      %v3214 = vld [vmem:[%s3203 + $0x50] sm:$0xff]
      %v3215 = vld [vmem:[%s3203 + $0x58] sm:$0xff]
      %v3216 = vld [vmem:[%s3203 + $0x60] sm:$0xff]
      %v3217 = vld [vmem:[%s3203 + $0x68] sm:$0xff]
      %v3218 = vld [vmem:[%s3203 + $0x70] sm:$0xff]
      %v3219 = vld [vmem:[%s3203 + $0x78] sm:$0xff]
      %3220 = vmatprep.subr.mxu0 0.0
      %3221 = vmatpush1.msra.mxu0 %v3219
      %3222 = vmatprep.subr.mxu0 0.0
      %3223 = vmatpush1.msra.mxu0 %v3218
      %3224 = vmatprep.subr.mxu0 0.0
      %3225 = vmatpush1.msra.mxu0 %v3217
      %3226 = vmatprep.subr.mxu0 0.0
      %3227 = vmatpush1.msra.mxu0 %v3216
      %3228 = vmatprep.subr.mxu0 0.0
      %3229 = vmatpush1.msra.mxu0 %v3215
      %3230 = vmatprep.subr.mxu0 0.0
      %3231 = vmatpush1.msra.mxu0 %v3214
      %3232 = vmatprep.subr.mxu0 0.0
      %3233 = vmatpush1.msra.mxu0 %v3213
      %3234 = vmatprep.subr.mxu0 0.0
      %3235 = vmatpush1.msra.mxu0 %v3212
      %3236 = vmatprep.subr.mxu0 0.0
      %3237 = vmatpush1.msra.mxu0 %v3211
      %3238 = vmatprep.subr.mxu0 0.0
      %3239 = vmatpush1.msra.mxu0 %v3210
      %3240 = vmatprep.subr.mxu0 0.0
      %3241 = vmatpush1.msra.mxu0 %v3209
      %3242 = vmatprep.subr.mxu0 0.0
      %3243 = vmatpush1.msra.mxu0 %v3208
      %3244 = vmatprep.subr.mxu0 0.0
      %3245 = vmatpush1.msra.mxu0 %v3207
      %3246 = vmatprep.subr.mxu0 0.0
      %3247 = vmatpush1.msra.mxu0 %v3206
      %3248 = vmatprep.subr.mxu0 0.0
      %3249 = vmatpush1.msra.mxu0 %v3205
      %3250 = vmatprep.subr.mxu0 0.0
      %3251 = vmatpush1.msra.mxu0 %v3204
      %3252 = vmatprep.subr.mxu0 0.0
      %3253 = vmatpush2.msra.mxu0 0.0
      %3254 = vmatprep.subr.mxu0 0.0
      %3255 = vmatpush2.msra.mxu0 0.0
      %3256 = vmatprep.subr.mxu0 0.0
      %3257 = vmatpush2.msra.mxu0 0.0
      %3258 = vmatprep.subr.mxu0 0.0
      %3259 = vmatpush2.msra.mxu0 0.0
      %3260 = vmatprep.subr.mxu0 0.0
      %3261 = vmatpush2.msra.mxu0 0.0
      %3262 = vmatprep.subr.mxu0 0.0
      %3263 = vmatpush2.msra.mxu0 0.0
      %3264 = vmatprep.subr.mxu0 0.0
      %3265 = vmatpush2.msra.mxu0 0.0
      %3266 = vmatprep.subr.mxu0 0.0
      %3267 = vmatpush2.msra.mxu0 0.0
      %3268 = vmatprep.subr.mxu0 0.0
      %3269 = vmatpush2.msra.mxu0 0.0
      %3270 = vmatprep.subr.mxu0 0.0
      %3271 = vmatpush2.msra.mxu0 0.0
      %3272 = vmatprep.subr.mxu0 0.0
      %3273 = vmatpush2.msra.mxu0 0.0
      %3274 = vmatprep.subr.mxu0 0.0
      %3275 = vmatpush2.msra.mxu0 0.0
      %3276 = vmatprep.subr.mxu0 0.0
      %3277 = vmatpush2.msra.mxu0 0.0
      %3278 = vmatprep.subr.mxu0 0.0
      %3279 = vmatpush2.msra.mxu0 0.0
      %3280 = vmatprep.subr.mxu0 0.0
      %3281 = vmatpush2.msra.mxu0 0.0
      %3282 = vmatprep.subr.mxu0 0.0
      %3283 = vmatpush2.msra.mxu0 0.0
      %3284 = vmatprep.mubr.f32.mxu0 0.0
      %3285 = vmatmul.mubr.f32.gmra.mxu0 %v3185
      %v3286 = vpop.f32.mrf.mxu0
      %v3287 = vadd.f32 0.0, %v3286
      %v3288 = vpop.f32.mrf.mxu0
      %3289 = vmatprep.mubr.f32.mxu0 0.0
      %3290 = vmatmul.mubr.f32.gmra.mxu0 %v3186
      %v3291 = vpop.f32.mrf.mxu0
      %v3292 = vadd.f32 0.0, %v3291
      %v3293 = vpop.f32.mrf.mxu0
      %3294 = vmatprep.mubr.f32.mxu0 0.0
      %3295 = vmatmul.mubr.f32.gmra.mxu0 %v3187
      %v3296 = vpop.f32.mrf.mxu0
      %v3297 = vadd.f32 0.0, %v3296
      %v3298 = vpop.f32.mrf.mxu0
      %3299 = vmatprep.mubr.f32.mxu0 0.0
      %3300 = vmatmul.mubr.f32.gmra.mxu0 %v3188
      %v3301 = vpop.f32.mrf.mxu0
      %v3302 = vadd.f32 0.0, %v3301
      %v3303 = vpop.f32.mrf.mxu0
      %3304 = vmatprep.mubr.f32.mxu0 0.0
      %3305 = vmatmul.mubr.f32.gmra.mxu0 %v3189
      %v3306 = vpop.f32.mrf.mxu0
      %v3307 = vadd.f32 0.0, %v3306
      %v3308 = vpop.f32.mrf.mxu0
      %3309 = vmatprep.mubr.f32.mxu0 0.0
      %3310 = vmatmul.mubr.f32.gmra.mxu0 %v3190
      %v3311 = vpop.f32.mrf.mxu0
      %v3312 = vadd.f32 0.0, %v3311
      %v3313 = vpop.f32.mrf.mxu0
      %3314 = vmatprep.mubr.f32.mxu0 0.0
      %3315 = vmatmul.mubr.f32.gmra.mxu0 %v3191
      %v3316 = vpop.f32.mrf.mxu0
      %v3317 = vadd.f32 0.0, %v3316
      %v3318 = vpop.f32.mrf.mxu0
      %3319 = vmatprep.mubr.f32.mxu0 0.0
      %3320 = vmatmul.mubr.f32.gmra.mxu0 %v3192
      %v3321 = vpop.f32.mrf.mxu0
      %v3322 = vadd.f32 0.0, %v3321
      %v3323 = vpop.f32.mrf.mxu0
      %3324 = vmatprep.mubr.f32.mxu0 0.0
      %3325 = vmatmul.mubr.f32.gmra.mxu0 %v3193
      %v3326 = vpop.f32.mrf.mxu0
      %v3327 = vadd.f32 0.0, %v3326
      %v3328 = vpop.f32.mrf.mxu0
      %3329 = vmatprep.mubr.f32.mxu0 0.0
      %3330 = vmatmul.mubr.f32.gmra.mxu0 %v3194
      %v3331 = vpop.f32.mrf.mxu0
      %v3332 = vadd.f32 0.0, %v3331
      %v3333 = vpop.f32.mrf.mxu0
      %3334 = vmatprep.mubr.f32.mxu0 0.0
      %3335 = vmatmul.mubr.f32.gmra.mxu0 %v3195
      %v3336 = vpop.f32.mrf.mxu0
      %v3337 = vadd.f32 0.0, %v3336
      %v3338 = vpop.f32.mrf.mxu0
      %3339 = vmatprep.mubr.f32.mxu0 0.0
      %3340 = vmatmul.mubr.f32.gmra.mxu0 %v3196
      %v3341 = vpop.f32.mrf.mxu0
      %v3342 = vadd.f32 0.0, %v3341
      %v3343 = vpop.f32.mrf.mxu0
      %3344 = vmatprep.mubr.f32.mxu0 0.0
      %3345 = vmatmul.mubr.f32.gmra.mxu0 %v3197
      %v3346 = vpop.f32.mrf.mxu0
      %v3347 = vadd.f32 0.0, %v3346
      %v3348 = vpop.f32.mrf.mxu0
      %3349 = vmatprep.mubr.f32.mxu0 0.0
      %3350 = vmatmul.mubr.f32.gmra.mxu0 %v3198
      %v3351 = vpop.f32.mrf.mxu0
      %v3352 = vadd.f32 0.0, %v3351
      %v3353 = vpop.f32.mrf.mxu0
      %3354 = vmatprep.mubr.f32.mxu0 0.0
      %3355 = vmatmul.mubr.f32.gmra.mxu0 %v3199
      %v3356 = vpop.f32.mrf.mxu0
      %v3357 = vadd.f32 0.0, %v3356
      %v3358 = vpop.f32.mrf.mxu0
      %3359 = vmatprep.mubr.f32.mxu0 0.0
      %3360 = vmatmul.mubr.f32.gmra.mxu0 %v3200
      %v3361 = vpop.f32.mrf.mxu0
      %v3362 = vadd.f32 0.0, %v3361
      %v3363 = vpop.f32.mrf.mxu0
      %3364 = vmatprep.mubr.f32.mxu0 0.0
      %3365 = vmatmul.mubr.f32.gmra.mxu0 %v3201
      %v3366 = vpop.f32.mrf.mxu0
      %v3367 = vadd.f32 0.0, %v3366
      %v3368 = vpop.f32.mrf.mxu0
      %3369 = vmatprep.mubr.f32.mxu0 0.0
      %3370 = vmatmul.mubr.f32.gmra.mxu0 %v3202
      %v3371 = vpop.f32.mrf.mxu0
      %v3372 = vadd.f32 0.0, %v3371
      %v3373 = vpop.f32.mrf.mxu0
      %3374 = vdwg.mxu0
      %v3375 = vadd.f32 %v3097, %v3287
      %v3376 = vadd.f32 %v3102, %v3292
      %v3377 = vadd.f32 %v3107, %v3297
      %v3378 = vadd.f32 %v3112, %v3302
      %v3379 = vadd.f32 %v3117, %v3307
      %v3380 = vadd.f32 %v3122, %v3312
      %v3381 = vadd.f32 %v3127, %v3317
      %v3382 = vadd.f32 %v3132, %v3322
      %v3383 = vadd.f32 %v3137, %v3327
      %v3384 = vadd.f32 %v3142, %v3332
      %v3385 = vadd.f32 %v3147, %v3337
      %v3386 = vadd.f32 %v3152, %v3342
      %v3387 = vadd.f32 %v3157, %v3347
      %v3388 = vadd.f32 %v3162, %v3352
      %v3389 = vadd.f32 %v3167, %v3357
      %v3390 = vadd.f32 %v3172, %v3362
      %v3391 = vadd.f32 %v3177, %v3367
      %v3392 = vadd.f32 %v3182, %v3372
      %v3393 = vld [vmem:[#allocation2 + $0x12] sm:$0xff]
      %v3394 = vld [vmem:[#allocation2 + $0x1a] sm:$0xff]
      %v3395 = vld [vmem:[#allocation2 + $0x22] sm:$0xff]
      %v3396 = vld [vmem:[#allocation2 + $0x2a] sm:$0xff]
      %v3397 = vld [vmem:[#allocation2 + $0x32] sm:$0xff]
      %v3398 = vld [vmem:[#allocation2 + $0x3a] sm:$0xff]
      %v3399 = vld [vmem:[#allocation2 + $0x42] sm:$0xff]
      %v3400 = vld [vmem:[#allocation2 + $0x4a] sm:$0xff]
      %v3401 = vld [vmem:[#allocation2 + $0x52] sm:$0xff]
      %v3402 = vld [vmem:[#allocation2 + $0x5a] sm:$0xff]
      %v3403 = vld [vmem:[#allocation2 + $0x62] sm:$0xff]
      %v3404 = vld [vmem:[#allocation2 + $0x6a] sm:$0xff]
      %v3405 = vld [vmem:[#allocation2 + $0x72] sm:$0xff]
      %v3406 = vld [vmem:[#allocation2 + $0x7a] sm:$0xff]
      %v3407 = vld [vmem:[#allocation2 + $0x82] sm:$0xff]
      %v3408 = vld [vmem:[#allocation2 + $0x8a] sm:$0xff]
      %v3409 = vld [vmem:[#allocation2 + $0x92] sm:$0xff]
      %v3410 = vld [vmem:[#allocation2 + $0x9a] sm:$0xff]
      %s3411 = scalar_lea.vmem %s3, 384
      %v3412 = vld [vmem:[%s3411] sm:$0xff]
      %v3413 = vld [vmem:[%s3411 + $0x8] sm:$0xff]
      %v3414 = vld [vmem:[%s3411 + $0x10] sm:$0xff]
      %v3415 = vld [vmem:[%s3411 + $0x18] sm:$0xff]
      %v3416 = vld [vmem:[%s3411 + $0x20] sm:$0xff]
      %v3417 = vld [vmem:[%s3411 + $0x28] sm:$0xff]
      %v3418 = vld [vmem:[%s3411 + $0x30] sm:$0xff]
      %v3419 = vld [vmem:[%s3411 + $0x38] sm:$0xff]
      %v3420 = vld [vmem:[%s3411 + $0x40] sm:$0xff]
      %v3421 = vld [vmem:[%s3411 + $0x48] sm:$0xff]
      %v3422 = vld [vmem:[%s3411 + $0x50] sm:$0xff]
      %v3423 = vld [vmem:[%s3411 + $0x58] sm:$0xff]
      %v3424 = vld [vmem:[%s3411 + $0x60] sm:$0xff]
      %v3425 = vld [vmem:[%s3411 + $0x68] sm:$0xff]
      %v3426 = vld [vmem:[%s3411 + $0x70] sm:$0xff]
      %v3427 = vld [vmem:[%s3411 + $0x78] sm:$0xff]
      %3428 = vmatprep.subr.mxu0 0.0
      %3429 = vmatpush1.msra.mxu0 %v3427
      %3430 = vmatprep.subr.mxu0 0.0
      %3431 = vmatpush1.msra.mxu0 %v3426
      %3432 = vmatprep.subr.mxu0 0.0
      %3433 = vmatpush1.msra.mxu0 %v3425
      %3434 = vmatprep.subr.mxu0 0.0
      %3435 = vmatpush1.msra.mxu0 %v3424
      %3436 = vmatprep.subr.mxu0 0.0
      %3437 = vmatpush1.msra.mxu0 %v3423
      %3438 = vmatprep.subr.mxu0 0.0
      %3439 = vmatpush1.msra.mxu0 %v3422
      %3440 = vmatprep.subr.mxu0 0.0
      %3441 = vmatpush1.msra.mxu0 %v3421
      %3442 = vmatprep.subr.mxu0 0.0
      %3443 = vmatpush1.msra.mxu0 %v3420
      %3444 = vmatprep.subr.mxu0 0.0
      %3445 = vmatpush1.msra.mxu0 %v3419
      %3446 = vmatprep.subr.mxu0 0.0
      %3447 = vmatpush1.msra.mxu0 %v3418
      %3448 = vmatprep.subr.mxu0 0.0
      %3449 = vmatpush1.msra.mxu0 %v3417
      %3450 = vmatprep.subr.mxu0 0.0
      %3451 = vmatpush1.msra.mxu0 %v3416
      %3452 = vmatprep.subr.mxu0 0.0
      %3453 = vmatpush1.msra.mxu0 %v3415
      %3454 = vmatprep.subr.mxu0 0.0
      %3455 = vmatpush1.msra.mxu0 %v3414
      %3456 = vmatprep.subr.mxu0 0.0
      %3457 = vmatpush1.msra.mxu0 %v3413
      %3458 = vmatprep.subr.mxu0 0.0
      %3459 = vmatpush1.msra.mxu0 %v3412
      %3460 = vmatprep.subr.mxu0 0.0
      %3461 = vmatpush2.msra.mxu0 0.0
      %3462 = vmatprep.subr.mxu0 0.0
      %3463 = vmatpush2.msra.mxu0 0.0
      %3464 = vmatprep.subr.mxu0 0.0
      %3465 = vmatpush2.msra.mxu0 0.0
      %3466 = vmatprep.subr.mxu0 0.0
      %3467 = vmatpush2.msra.mxu0 0.0
      %3468 = vmatprep.subr.mxu0 0.0
      %3469 = vmatpush2.msra.mxu0 0.0
      %3470 = vmatprep.subr.mxu0 0.0
      %3471 = vmatpush2.msra.mxu0 0.0
      %3472 = vmatprep.subr.mxu0 0.0
      %3473 = vmatpush2.msra.mxu0 0.0
      %3474 = vmatprep.subr.mxu0 0.0
      %3475 = vmatpush2.msra.mxu0 0.0
      %3476 = vmatprep.subr.mxu0 0.0
      %3477 = vmatpush2.msra.mxu0 0.0
      %3478 = vmatprep.subr.mxu0 0.0
      %3479 = vmatpush2.msra.mxu0 0.0
      %3480 = vmatprep.subr.mxu0 0.0
      %3481 = vmatpush2.msra.mxu0 0.0
      %3482 = vmatprep.subr.mxu0 0.0
      %3483 = vmatpush2.msra.mxu0 0.0
      %3484 = vmatprep.subr.mxu0 0.0
      %3485 = vmatpush2.msra.mxu0 0.0
      %3486 = vmatprep.subr.mxu0 0.0
      %3487 = vmatpush2.msra.mxu0 0.0
      %3488 = vmatprep.subr.mxu0 0.0
      %3489 = vmatpush2.msra.mxu0 0.0
      %3490 = vmatprep.subr.mxu0 0.0
      %3491 = vmatpush2.msra.mxu0 0.0
      %3492 = vmatprep.mubr.f32.mxu0 0.0
      %3493 = vmatmul.mubr.f32.gmra.mxu0 %v3393
      %v3494 = vpop.f32.mrf.mxu0
      %v3495 = vadd.f32 0.0, %v3494
      %v3496 = vpop.f32.mrf.mxu0
      %3497 = vmatprep.mubr.f32.mxu0 0.0
      %3498 = vmatmul.mubr.f32.gmra.mxu0 %v3394
      %v3499 = vpop.f32.mrf.mxu0
      %v3500 = vadd.f32 0.0, %v3499
      %v3501 = vpop.f32.mrf.mxu0
      %3502 = vmatprep.mubr.f32.mxu0 0.0
      %3503 = vmatmul.mubr.f32.gmra.mxu0 %v3395
      %v3504 = vpop.f32.mrf.mxu0
      %v3505 = vadd.f32 0.0, %v3504
      %v3506 = vpop.f32.mrf.mxu0
      %3507 = vmatprep.mubr.f32.mxu0 0.0
      %3508 = vmatmul.mubr.f32.gmra.mxu0 %v3396
      %v3509 = vpop.f32.mrf.mxu0
      %v3510 = vadd.f32 0.0, %v3509
      %v3511 = vpop.f32.mrf.mxu0
      %3512 = vmatprep.mubr.f32.mxu0 0.0
      %3513 = vmatmul.mubr.f32.gmra.mxu0 %v3397
      %v3514 = vpop.f32.mrf.mxu0
      %v3515 = vadd.f32 0.0, %v3514
      %v3516 = vpop.f32.mrf.mxu0
      %3517 = vmatprep.mubr.f32.mxu0 0.0
      %3518 = vmatmul.mubr.f32.gmra.mxu0 %v3398
      %v3519 = vpop.f32.mrf.mxu0
      %v3520 = vadd.f32 0.0, %v3519
      %v3521 = vpop.f32.mrf.mxu0
      %3522 = vmatprep.mubr.f32.mxu0 0.0
      %3523 = vmatmul.mubr.f32.gmra.mxu0 %v3399
      %v3524 = vpop.f32.mrf.mxu0
      %v3525 = vadd.f32 0.0, %v3524
      %v3526 = vpop.f32.mrf.mxu0
      %3527 = vmatprep.mubr.f32.mxu0 0.0
      %3528 = vmatmul.mubr.f32.gmra.mxu0 %v3400
      %v3529 = vpop.f32.mrf.mxu0
      %v3530 = vadd.f32 0.0, %v3529
      %v3531 = vpop.f32.mrf.mxu0
      %3532 = vmatprep.mubr.f32.mxu0 0.0
      %3533 = vmatmul.mubr.f32.gmra.mxu0 %v3401
      %v3534 = vpop.f32.mrf.mxu0
      %v3535 = vadd.f32 0.0, %v3534
      %v3536 = vpop.f32.mrf.mxu0
      %3537 = vmatprep.mubr.f32.mxu0 0.0
      %3538 = vmatmul.mubr.f32.gmra.mxu0 %v3402
      %v3539 = vpop.f32.mrf.mxu0
      %v3540 = vadd.f32 0.0, %v3539
      %v3541 = vpop.f32.mrf.mxu0
      %3542 = vmatprep.mubr.f32.mxu0 0.0
      %3543 = vmatmul.mubr.f32.gmra.mxu0 %v3403
      %v3544 = vpop.f32.mrf.mxu0
      %v3545 = vadd.f32 0.0, %v3544
      %v3546 = vpop.f32.mrf.mxu0
      %3547 = vmatprep.mubr.f32.mxu0 0.0
      %3548 = vmatmul.mubr.f32.gmra.mxu0 %v3404
      %v3549 = vpop.f32.mrf.mxu0
      %v3550 = vadd.f32 0.0, %v3549
      %v3551 = vpop.f32.mrf.mxu0
      %3552 = vmatprep.mubr.f32.mxu0 0.0
      %3553 = vmatmul.mubr.f32.gmra.mxu0 %v3405
      %v3554 = vpop.f32.mrf.mxu0
      %v3555 = vadd.f32 0.0, %v3554
      %v3556 = vpop.f32.mrf.mxu0
      %3557 = vmatprep.mubr.f32.mxu0 0.0
      %3558 = vmatmul.mubr.f32.gmra.mxu0 %v3406
      %v3559 = vpop.f32.mrf.mxu0
      %v3560 = vadd.f32 0.0, %v3559
      %v3561 = vpop.f32.mrf.mxu0
      %3562 = vmatprep.mubr.f32.mxu0 0.0
      %3563 = vmatmul.mubr.f32.gmra.mxu0 %v3407
      %v3564 = vpop.f32.mrf.mxu0
      %v3565 = vadd.f32 0.0, %v3564
      %v3566 = vpop.f32.mrf.mxu0
      %3567 = vmatprep.mubr.f32.mxu0 0.0
      %3568 = vmatmul.mubr.f32.gmra.mxu0 %v3408
      %v3569 = vpop.f32.mrf.mxu0
      %v3570 = vadd.f32 0.0, %v3569
      %v3571 = vpop.f32.mrf.mxu0
      %3572 = vmatprep.mubr.f32.mxu0 0.0
      %3573 = vmatmul.mubr.f32.gmra.mxu0 %v3409
      %v3574 = vpop.f32.mrf.mxu0
      %v3575 = vadd.f32 0.0, %v3574
      %v3576 = vpop.f32.mrf.mxu0
      %3577 = vmatprep.mubr.f32.mxu0 0.0
      %3578 = vmatmul.mubr.f32.gmra.mxu0 %v3410
      %v3579 = vpop.f32.mrf.mxu0
      %v3580 = vadd.f32 0.0, %v3579
      %v3581 = vpop.f32.mrf.mxu0
      %3582 = vdwg.mxu0
      %v3583 = vadd.f32 %v3375, %v3495
      %v3584 = vadd.f32 %v3376, %v3500
      %v3585 = vadd.f32 %v3377, %v3505
      %v3586 = vadd.f32 %v3378, %v3510
      %v3587 = vadd.f32 %v3379, %v3515
      %v3588 = vadd.f32 %v3380, %v3520
      %v3589 = vadd.f32 %v3381, %v3525
      %v3590 = vadd.f32 %v3382, %v3530
      %v3591 = vadd.f32 %v3383, %v3535
      %v3592 = vadd.f32 %v3384, %v3540
      %v3593 = vadd.f32 %v3385, %v3545
      %v3594 = vadd.f32 %v3386, %v3550
      %v3595 = vadd.f32 %v3387, %v3555
      %v3596 = vadd.f32 %v3388, %v3560
      %v3597 = vadd.f32 %v3389, %v3565
      %v3598 = vadd.f32 %v3390, %v3570
      %v3599 = vadd.f32 %v3391, %v3575
      %v3600 = vadd.f32 %v3392, %v3580
      %v3601 = vld [vmem:[#allocation2 + $0x13] sm:$0xff]
      %v3602 = vld [vmem:[#allocation2 + $0x1b] sm:$0xff]
      %v3603 = vld [vmem:[#allocation2 + $0x23] sm:$0xff]
      %v3604 = vld [vmem:[#allocation2 + $0x2b] sm:$0xff]
      %v3605 = vld [vmem:[#allocation2 + $0x33] sm:$0xff]
      %v3606 = vld [vmem:[#allocation2 + $0x3b] sm:$0xff]
      %v3607 = vld [vmem:[#allocation2 + $0x43] sm:$0xff]
      %v3608 = vld [vmem:[#allocation2 + $0x4b] sm:$0xff]
      %v3609 = vld [vmem:[#allocation2 + $0x53] sm:$0xff]
      %v3610 = vld [vmem:[#allocation2 + $0x5b] sm:$0xff]
      %v3611 = vld [vmem:[#allocation2 + $0x63] sm:$0xff]
      %v3612 = vld [vmem:[#allocation2 + $0x6b] sm:$0xff]
      %v3613 = vld [vmem:[#allocation2 + $0x73] sm:$0xff]
      %v3614 = vld [vmem:[#allocation2 + $0x7b] sm:$0xff]
      %v3615 = vld [vmem:[#allocation2 + $0x83] sm:$0xff]
      %v3616 = vld [vmem:[#allocation2 + $0x8b] sm:$0xff]
      %v3617 = vld [vmem:[#allocation2 + $0x93] sm:$0xff]
      %v3618 = vld [vmem:[#allocation2 + $0x9b] sm:$0xff]
      %s3619 = scalar_lea.vmem %s3, 512
      %v3620 = vld [vmem:[%s3619] sm:$0xff]
      %v3621 = vld [vmem:[%s3619 + $0x8] sm:$0xff]
      %v3622 = vld [vmem:[%s3619 + $0x10] sm:$0xff]
      %v3623 = vld [vmem:[%s3619 + $0x18] sm:$0xff]
      %v3624 = vld [vmem:[%s3619 + $0x20] sm:$0xff]
      %v3625 = vld [vmem:[%s3619 + $0x28] sm:$0xff]
      %v3626 = vld [vmem:[%s3619 + $0x30] sm:$0xff]
      %v3627 = vld [vmem:[%s3619 + $0x38] sm:$0xff]
      %v3628 = vld [vmem:[%s3619 + $0x40] sm:$0xff]
      %v3629 = vld [vmem:[%s3619 + $0x48] sm:$0xff]
      %v3630 = vld [vmem:[%s3619 + $0x50] sm:$0xff]
      %v3631 = vld [vmem:[%s3619 + $0x58] sm:$0xff]
      %v3632 = vld [vmem:[%s3619 + $0x60] sm:$0xff]
      %v3633 = vld [vmem:[%s3619 + $0x68] sm:$0xff]
      %v3634 = vld [vmem:[%s3619 + $0x70] sm:$0xff]
      %v3635 = vld [vmem:[%s3619 + $0x78] sm:$0xff]
      %3636 = vmatprep.subr.mxu0 0.0
      %3637 = vmatpush1.msra.mxu0 %v3635
      %3638 = vmatprep.subr.mxu0 0.0
      %3639 = vmatpush1.msra.mxu0 %v3634
      %3640 = vmatprep.subr.mxu0 0.0
      %3641 = vmatpush1.msra.mxu0 %v3633
      %3642 = vmatprep.subr.mxu0 0.0
      %3643 = vmatpush1.msra.mxu0 %v3632
      %3644 = vmatprep.subr.mxu0 0.0
      %3645 = vmatpush1.msra.mxu0 %v3631
      %3646 = vmatprep.subr.mxu0 0.0
      %3647 = vmatpush1.msra.mxu0 %v3630
      %3648 = vmatprep.subr.mxu0 0.0
      %3649 = vmatpush1.msra.mxu0 %v3629
      %3650 = vmatprep.subr.mxu0 0.0
      %3651 = vmatpush1.msra.mxu0 %v3628
      %3652 = vmatprep.subr.mxu0 0.0
      %3653 = vmatpush1.msra.mxu0 %v3627
      %3654 = vmatprep.subr.mxu0 0.0
      %3655 = vmatpush1.msra.mxu0 %v3626
      %3656 = vmatprep.subr.mxu0 0.0
      %3657 = vmatpush1.msra.mxu0 %v3625
      %3658 = vmatprep.subr.mxu0 0.0
      %3659 = vmatpush1.msra.mxu0 %v3624
      %3660 = vmatprep.subr.mxu0 0.0
      %3661 = vmatpush1.msra.mxu0 %v3623
      %3662 = vmatprep.subr.mxu0 0.0
      %3663 = vmatpush1.msra.mxu0 %v3622
      %3664 = vmatprep.subr.mxu0 0.0
      %3665 = vmatpush1.msra.mxu0 %v3621
      %3666 = vmatprep.subr.mxu0 0.0
      %3667 = vmatpush1.msra.mxu0 %v3620
      %3668 = vmatprep.subr.mxu0 0.0
      %3669 = vmatpush2.msra.mxu0 0.0
      %3670 = vmatprep.subr.mxu0 0.0
      %3671 = vmatpush2.msra.mxu0 0.0
      %3672 = vmatprep.subr.mxu0 0.0
      %3673 = vmatpush2.msra.mxu0 0.0
      %3674 = vmatprep.subr.mxu0 0.0
      %3675 = vmatpush2.msra.mxu0 0.0
      %3676 = vmatprep.subr.mxu0 0.0
      %3677 = vmatpush2.msra.mxu0 0.0
      %3678 = vmatprep.subr.mxu0 0.0
      %3679 = vmatpush2.msra.mxu0 0.0
      %3680 = vmatprep.subr.mxu0 0.0
      %3681 = vmatpush2.msra.mxu0 0.0
      %3682 = vmatprep.subr.mxu0 0.0
      %3683 = vmatpush2.msra.mxu0 0.0
      %3684 = vmatprep.subr.mxu0 0.0
      %3685 = vmatpush2.msra.mxu0 0.0
      %3686 = vmatprep.subr.mxu0 0.0
      %3687 = vmatpush2.msra.mxu0 0.0
      %3688 = vmatprep.subr.mxu0 0.0
      %3689 = vmatpush2.msra.mxu0 0.0
      %3690 = vmatprep.subr.mxu0 0.0
      %3691 = vmatpush2.msra.mxu0 0.0
      %3692 = vmatprep.subr.mxu0 0.0
      %3693 = vmatpush2.msra.mxu0 0.0
      %3694 = vmatprep.subr.mxu0 0.0
      %3695 = vmatpush2.msra.mxu0 0.0
      %3696 = vmatprep.subr.mxu0 0.0
      %3697 = vmatpush2.msra.mxu0 0.0
      %3698 = vmatprep.subr.mxu0 0.0
      %3699 = vmatpush2.msra.mxu0 0.0
      %3700 = vmatprep.mubr.f32.mxu0 0.0
      %3701 = vmatmul.mubr.f32.gmra.mxu0 %v3601
      %v3702 = vpop.f32.mrf.mxu0
      %v3703 = vadd.f32 0.0, %v3702
      %v3704 = vpop.f32.mrf.mxu0
      %3705 = vmatprep.mubr.f32.mxu0 0.0
      %3706 = vmatmul.mubr.f32.gmra.mxu0 %v3602
      %v3707 = vpop.f32.mrf.mxu0
      %v3708 = vadd.f32 0.0, %v3707
      %v3709 = vpop.f32.mrf.mxu0
      %3710 = vmatprep.mubr.f32.mxu0 0.0
      %3711 = vmatmul.mubr.f32.gmra.mxu0 %v3603
      %v3712 = vpop.f32.mrf.mxu0
      %v3713 = vadd.f32 0.0, %v3712
      %v3714 = vpop.f32.mrf.mxu0
      %3715 = vmatprep.mubr.f32.mxu0 0.0
      %3716 = vmatmul.mubr.f32.gmra.mxu0 %v3604
      %v3717 = vpop.f32.mrf.mxu0
      %v3718 = vadd.f32 0.0, %v3717
      %v3719 = vpop.f32.mrf.mxu0
      %3720 = vmatprep.mubr.f32.mxu0 0.0
      %3721 = vmatmul.mubr.f32.gmra.mxu0 %v3605
      %v3722 = vpop.f32.mrf.mxu0
      %v3723 = vadd.f32 0.0, %v3722
      %v3724 = vpop.f32.mrf.mxu0
      %3725 = vmatprep.mubr.f32.mxu0 0.0
      %3726 = vmatmul.mubr.f32.gmra.mxu0 %v3606
      %v3727 = vpop.f32.mrf.mxu0
      %v3728 = vadd.f32 0.0, %v3727
      %v3729 = vpop.f32.mrf.mxu0
      %3730 = vmatprep.mubr.f32.mxu0 0.0
      %3731 = vmatmul.mubr.f32.gmra.mxu0 %v3607
      %v3732 = vpop.f32.mrf.mxu0
      %v3733 = vadd.f32 0.0, %v3732
      %v3734 = vpop.f32.mrf.mxu0
      %3735 = vmatprep.mubr.f32.mxu0 0.0
      %3736 = vmatmul.mubr.f32.gmra.mxu0 %v3608
      %v3737 = vpop.f32.mrf.mxu0
      %v3738 = vadd.f32 0.0, %v3737
      %v3739 = vpop.f32.mrf.mxu0
      %3740 = vmatprep.mubr.f32.mxu0 0.0
      %3741 = vmatmul.mubr.f32.gmra.mxu0 %v3609
      %v3742 = vpop.f32.mrf.mxu0
      %v3743 = vadd.f32 0.0, %v3742
      %v3744 = vpop.f32.mrf.mxu0
      %3745 = vmatprep.mubr.f32.mxu0 0.0
      %3746 = vmatmul.mubr.f32.gmra.mxu0 %v3610
      %v3747 = vpop.f32.mrf.mxu0
      %v3748 = vadd.f32 0.0, %v3747
      %v3749 = vpop.f32.mrf.mxu0
      %3750 = vmatprep.mubr.f32.mxu0 0.0
      %3751 = vmatmul.mubr.f32.gmra.mxu0 %v3611
      %v3752 = vpop.f32.mrf.mxu0
      %v3753 = vadd.f32 0.0, %v3752
      %v3754 = vpop.f32.mrf.mxu0
      %3755 = vmatprep.mubr.f32.mxu0 0.0
      %3756 = vmatmul.mubr.f32.gmra.mxu0 %v3612
      %v3757 = vpop.f32.mrf.mxu0
      %v3758 = vadd.f32 0.0, %v3757
      %v3759 = vpop.f32.mrf.mxu0
      %3760 = vmatprep.mubr.f32.mxu0 0.0
      %3761 = vmatmul.mubr.f32.gmra.mxu0 %v3613
      %v3762 = vpop.f32.mrf.mxu0
      %v3763 = vadd.f32 0.0, %v3762
      %v3764 = vpop.f32.mrf.mxu0
      %3765 = vmatprep.mubr.f32.mxu0 0.0
      %3766 = vmatmul.mubr.f32.gmra.mxu0 %v3614
      %v3767 = vpop.f32.mrf.mxu0
      %v3768 = vadd.f32 0.0, %v3767
      %v3769 = vpop.f32.mrf.mxu0
      %3770 = vmatprep.mubr.f32.mxu0 0.0
      %3771 = vmatmul.mubr.f32.gmra.mxu0 %v3615
      %v3772 = vpop.f32.mrf.mxu0
      %v3773 = vadd.f32 0.0, %v3772
      %v3774 = vpop.f32.mrf.mxu0
      %3775 = vmatprep.mubr.f32.mxu0 0.0
      %3776 = vmatmul.mubr.f32.gmra.mxu0 %v3616
      %v3777 = vpop.f32.mrf.mxu0
      %v3778 = vadd.f32 0.0, %v3777
      %v3779 = vpop.f32.mrf.mxu0
      %3780 = vmatprep.mubr.f32.mxu0 0.0
      %3781 = vmatmul.mubr.f32.gmra.mxu0 %v3617
      %v3782 = vpop.f32.mrf.mxu0
      %v3783 = vadd.f32 0.0, %v3782
      %v3784 = vpop.f32.mrf.mxu0
      %3785 = vmatprep.mubr.f32.mxu0 0.0
      %3786 = vmatmul.mubr.f32.gmra.mxu0 %v3618
      %v3787 = vpop.f32.mrf.mxu0
      %v3788 = vadd.f32 0.0, %v3787
      %v3789 = vpop.f32.mrf.mxu0
      %3790 = vdwg.mxu0
      %v3791 = vadd.f32 %v3583, %v3703
      %v3792 = vadd.f32 %v3584, %v3708
      %v3793 = vadd.f32 %v3585, %v3713
      %v3794 = vadd.f32 %v3586, %v3718
      %v3795 = vadd.f32 %v3587, %v3723
      %v3796 = vadd.f32 %v3588, %v3728
      %v3797 = vadd.f32 %v3589, %v3733
      %v3798 = vadd.f32 %v3590, %v3738
      %v3799 = vadd.f32 %v3591, %v3743
      %v3800 = vadd.f32 %v3592, %v3748
      %v3801 = vadd.f32 %v3593, %v3753
      %v3802 = vadd.f32 %v3594, %v3758
      %v3803 = vadd.f32 %v3595, %v3763
      %v3804 = vadd.f32 %v3596, %v3768
      %v3805 = vadd.f32 %v3597, %v3773
      %v3806 = vadd.f32 %v3598, %v3778
      %v3807 = vadd.f32 %v3599, %v3783
      %v3808 = vadd.f32 %v3600, %v3788
      %v3809 = vld [vmem:[#allocation2 + $0x14] sm:$0xff]
      %v3810 = vld [vmem:[#allocation2 + $0x1c] sm:$0xff]
      %v3811 = vld [vmem:[#allocation2 + $0x24] sm:$0xff]
      %v3812 = vld [vmem:[#allocation2 + $0x2c] sm:$0xff]
      %v3813 = vld [vmem:[#allocation2 + $0x34] sm:$0xff]
      %v3814 = vld [vmem:[#allocation2 + $0x3c] sm:$0xff]
      %v3815 = vld [vmem:[#allocation2 + $0x44] sm:$0xff]
      %v3816 = vld [vmem:[#allocation2 + $0x4c] sm:$0xff]
      %v3817 = vld [vmem:[#allocation2 + $0x54] sm:$0xff]
      %v3818 = vld [vmem:[#allocation2 + $0x5c] sm:$0xff]
      %v3819 = vld [vmem:[#allocation2 + $0x64] sm:$0xff]
      %v3820 = vld [vmem:[#allocation2 + $0x6c] sm:$0xff]
      %v3821 = vld [vmem:[#allocation2 + $0x74] sm:$0xff]
      %v3822 = vld [vmem:[#allocation2 + $0x7c] sm:$0xff]
      %v3823 = vld [vmem:[#allocation2 + $0x84] sm:$0xff]
      %v3824 = vld [vmem:[#allocation2 + $0x8c] sm:$0xff]
      %v3825 = vld [vmem:[#allocation2 + $0x94] sm:$0xff]
      %v3826 = vld [vmem:[#allocation2 + $0x9c] sm:$0xff]
      %s3827 = scalar_lea.vmem %s3, 640
      %v3828 = vld [vmem:[%s3827] sm:$0xff]
      %v3829 = vld [vmem:[%s3827 + $0x8] sm:$0xff]
      %v3830 = vld [vmem:[%s3827 + $0x10] sm:$0xff]
      %v3831 = vld [vmem:[%s3827 + $0x18] sm:$0xff]
      %v3832 = vld [vmem:[%s3827 + $0x20] sm:$0xff]
      %v3833 = vld [vmem:[%s3827 + $0x28] sm:$0xff]
      %v3834 = vld [vmem:[%s3827 + $0x30] sm:$0xff]
      %v3835 = vld [vmem:[%s3827 + $0x38] sm:$0xff]
      %v3836 = vld [vmem:[%s3827 + $0x40] sm:$0xff]
      %v3837 = vld [vmem:[%s3827 + $0x48] sm:$0xff]
      %v3838 = vld [vmem:[%s3827 + $0x50] sm:$0xff]
      %v3839 = vld [vmem:[%s3827 + $0x58] sm:$0xff]
      %v3840 = vld [vmem:[%s3827 + $0x60] sm:$0xff]
      %v3841 = vld [vmem:[%s3827 + $0x68] sm:$0xff]
      %v3842 = vld [vmem:[%s3827 + $0x70] sm:$0xff]
      %v3843 = vld [vmem:[%s3827 + $0x78] sm:$0xff]
      %3844 = vmatprep.subr.mxu0 0.0
      %3845 = vmatpush1.msra.mxu0 %v3843
      %3846 = vmatprep.subr.mxu0 0.0
      %3847 = vmatpush1.msra.mxu0 %v3842
      %3848 = vmatprep.subr.mxu0 0.0
      %3849 = vmatpush1.msra.mxu0 %v3841
      %3850 = vmatprep.subr.mxu0 0.0
      %3851 = vmatpush1.msra.mxu0 %v3840
      %3852 = vmatprep.subr.mxu0 0.0
      %3853 = vmatpush1.msra.mxu0 %v3839
      %3854 = vmatprep.subr.mxu0 0.0
      %3855 = vmatpush1.msra.mxu0 %v3838
      %3856 = vmatprep.subr.mxu0 0.0
      %3857 = vmatpush1.msra.mxu0 %v3837
      %3858 = vmatprep.subr.mxu0 0.0
      %3859 = vmatpush1.msra.mxu0 %v3836
      %3860 = vmatprep.subr.mxu0 0.0
      %3861 = vmatpush1.msra.mxu0 %v3835
      %3862 = vmatprep.subr.mxu0 0.0
      %3863 = vmatpush1.msra.mxu0 %v3834
      %3864 = vmatprep.subr.mxu0 0.0
      %3865 = vmatpush1.msra.mxu0 %v3833
      %3866 = vmatprep.subr.mxu0 0.0
      %3867 = vmatpush1.msra.mxu0 %v3832
      %3868 = vmatprep.subr.mxu0 0.0
      %3869 = vmatpush1.msra.mxu0 %v3831
      %3870 = vmatprep.subr.mxu0 0.0
      %3871 = vmatpush1.msra.mxu0 %v3830
      %3872 = vmatprep.subr.mxu0 0.0
      %3873 = vmatpush1.msra.mxu0 %v3829
      %3874 = vmatprep.subr.mxu0 0.0
      %3875 = vmatpush1.msra.mxu0 %v3828
      %3876 = vmatprep.subr.mxu0 0.0
      %3877 = vmatpush2.msra.mxu0 0.0
      %3878 = vmatprep.subr.mxu0 0.0
      %3879 = vmatpush2.msra.mxu0 0.0
      %3880 = vmatprep.subr.mxu0 0.0
      %3881 = vmatpush2.msra.mxu0 0.0
      %3882 = vmatprep.subr.mxu0 0.0
      %3883 = vmatpush2.msra.mxu0 0.0
      %3884 = vmatprep.subr.mxu0 0.0
      %3885 = vmatpush2.msra.mxu0 0.0
      %3886 = vmatprep.subr.mxu0 0.0
      %3887 = vmatpush2.msra.mxu0 0.0
      %3888 = vmatprep.subr.mxu0 0.0
      %3889 = vmatpush2.msra.mxu0 0.0
      %3890 = vmatprep.subr.mxu0 0.0
      %3891 = vmatpush2.msra.mxu0 0.0
      %3892 = vmatprep.subr.mxu0 0.0
      %3893 = vmatpush2.msra.mxu0 0.0
      %3894 = vmatprep.subr.mxu0 0.0
      %3895 = vmatpush2.msra.mxu0 0.0
      %3896 = vmatprep.subr.mxu0 0.0
      %3897 = vmatpush2.msra.mxu0 0.0
      %3898 = vmatprep.subr.mxu0 0.0
      %3899 = vmatpush2.msra.mxu0 0.0
      %3900 = vmatprep.subr.mxu0 0.0
      %3901 = vmatpush2.msra.mxu0 0.0
      %3902 = vmatprep.subr.mxu0 0.0
      %3903 = vmatpush2.msra.mxu0 0.0
      %3904 = vmatprep.subr.mxu0 0.0
      %3905 = vmatpush2.msra.mxu0 0.0
      %3906 = vmatprep.subr.mxu0 0.0
      %3907 = vmatpush2.msra.mxu0 0.0
      %3908 = vmatprep.mubr.f32.mxu0 0.0
      %3909 = vmatmul.mubr.f32.gmra.mxu0 %v3809
      %v3910 = vpop.f32.mrf.mxu0
      %v3911 = vadd.f32 0.0, %v3910
      %v3912 = vpop.f32.mrf.mxu0
      %3913 = vmatprep.mubr.f32.mxu0 0.0
      %3914 = vmatmul.mubr.f32.gmra.mxu0 %v3810
      %v3915 = vpop.f32.mrf.mxu0
      %v3916 = vadd.f32 0.0, %v3915
      %v3917 = vpop.f32.mrf.mxu0
      %3918 = vmatprep.mubr.f32.mxu0 0.0
      %3919 = vmatmul.mubr.f32.gmra.mxu0 %v3811
      %v3920 = vpop.f32.mrf.mxu0
      %v3921 = vadd.f32 0.0, %v3920
      %v3922 = vpop.f32.mrf.mxu0
      %3923 = vmatprep.mubr.f32.mxu0 0.0
      %3924 = vmatmul.mubr.f32.gmra.mxu0 %v3812
      %v3925 = vpop.f32.mrf.mxu0
      %v3926 = vadd.f32 0.0, %v3925
      %v3927 = vpop.f32.mrf.mxu0
      %3928 = vmatprep.mubr.f32.mxu0 0.0
      %3929 = vmatmul.mubr.f32.gmra.mxu0 %v3813
      %v3930 = vpop.f32.mrf.mxu0
      %v3931 = vadd.f32 0.0, %v3930
      %v3932 = vpop.f32.mrf.mxu0
      %3933 = vmatprep.mubr.f32.mxu0 0.0
      %3934 = vmatmul.mubr.f32.gmra.mxu0 %v3814
      %v3935 = vpop.f32.mrf.mxu0
      %v3936 = vadd.f32 0.0, %v3935
      %v3937 = vpop.f32.mrf.mxu0
      %3938 = vmatprep.mubr.f32.mxu0 0.0
      %3939 = vmatmul.mubr.f32.gmra.mxu0 %v3815
      %v3940 = vpop.f32.mrf.mxu0
      %v3941 = vadd.f32 0.0, %v3940
      %v3942 = vpop.f32.mrf.mxu0
      %3943 = vmatprep.mubr.f32.mxu0 0.0
      %3944 = vmatmul.mubr.f32.gmra.mxu0 %v3816
      %v3945 = vpop.f32.mrf.mxu0
      %v3946 = vadd.f32 0.0, %v3945
      %v3947 = vpop.f32.mrf.mxu0
      %3948 = vmatprep.mubr.f32.mxu0 0.0
      %3949 = vmatmul.mubr.f32.gmra.mxu0 %v3817
      %v3950 = vpop.f32.mrf.mxu0
      %v3951 = vadd.f32 0.0, %v3950
      %v3952 = vpop.f32.mrf.mxu0
      %3953 = vmatprep.mubr.f32.mxu0 0.0
      %3954 = vmatmul.mubr.f32.gmra.mxu0 %v3818
      %v3955 = vpop.f32.mrf.mxu0
      %v3956 = vadd.f32 0.0, %v3955
      %v3957 = vpop.f32.mrf.mxu0
      %3958 = vmatprep.mubr.f32.mxu0 0.0
      %3959 = vmatmul.mubr.f32.gmra.mxu0 %v3819
      %v3960 = vpop.f32.mrf.mxu0
      %v3961 = vadd.f32 0.0, %v3960
      %v3962 = vpop.f32.mrf.mxu0
      %3963 = vmatprep.mubr.f32.mxu0 0.0
      %3964 = vmatmul.mubr.f32.gmra.mxu0 %v3820
      %v3965 = vpop.f32.mrf.mxu0
      %v3966 = vadd.f32 0.0, %v3965
      %v3967 = vpop.f32.mrf.mxu0
      %3968 = vmatprep.mubr.f32.mxu0 0.0
      %3969 = vmatmul.mubr.f32.gmra.mxu0 %v3821
      %v3970 = vpop.f32.mrf.mxu0
      %v3971 = vadd.f32 0.0, %v3970
      %v3972 = vpop.f32.mrf.mxu0
      %3973 = vmatprep.mubr.f32.mxu0 0.0
      %3974 = vmatmul.mubr.f32.gmra.mxu0 %v3822
      %v3975 = vpop.f32.mrf.mxu0
      %v3976 = vadd.f32 0.0, %v3975
      %v3977 = vpop.f32.mrf.mxu0
      %3978 = vmatprep.mubr.f32.mxu0 0.0
      %3979 = vmatmul.mubr.f32.gmra.mxu0 %v3823
      %v3980 = vpop.f32.mrf.mxu0
      %v3981 = vadd.f32 0.0, %v3980
      %v3982 = vpop.f32.mrf.mxu0
      %3983 = vmatprep.mubr.f32.mxu0 0.0
      %3984 = vmatmul.mubr.f32.gmra.mxu0 %v3824
      %v3985 = vpop.f32.mrf.mxu0
      %v3986 = vadd.f32 0.0, %v3985
      %v3987 = vpop.f32.mrf.mxu0
      %3988 = vmatprep.mubr.f32.mxu0 0.0
      %3989 = vmatmul.mubr.f32.gmra.mxu0 %v3825
      %v3990 = vpop.f32.mrf.mxu0
      %v3991 = vadd.f32 0.0, %v3990
      %v3992 = vpop.f32.mrf.mxu0
      %3993 = vmatprep.mubr.f32.mxu0 0.0
      %3994 = vmatmul.mubr.f32.gmra.mxu0 %v3826
      %v3995 = vpop.f32.mrf.mxu0
      %v3996 = vadd.f32 0.0, %v3995
      %v3997 = vpop.f32.mrf.mxu0
      %3998 = vdwg.mxu0
      %v3999 = vadd.f32 %v3791, %v3911
      %v4000 = vadd.f32 %v3792, %v3916
      %v4001 = vadd.f32 %v3793, %v3921
      %v4002 = vadd.f32 %v3794, %v3926
      %v4003 = vadd.f32 %v3795, %v3931
      %v4004 = vadd.f32 %v3796, %v3936
      %v4005 = vadd.f32 %v3797, %v3941
      %v4006 = vadd.f32 %v3798, %v3946
      %v4007 = vadd.f32 %v3799, %v3951
      %v4008 = vadd.f32 %v3800, %v3956
      %v4009 = vadd.f32 %v3801, %v3961
      %v4010 = vadd.f32 %v3802, %v3966
      %v4011 = vadd.f32 %v3803, %v3971
      %v4012 = vadd.f32 %v3804, %v3976
      %v4013 = vadd.f32 %v3805, %v3981
      %v4014 = vadd.f32 %v3806, %v3986
      %v4015 = vadd.f32 %v3807, %v3991
      %v4016 = vadd.f32 %v3808, %v3996
      %v4017 = vld [vmem:[#allocation2 + $0x24] sm:$0xff]
      %v4018 = vld [vmem:[#allocation2 + $0x2c] sm:$0xff]
      %v4019 = vld [vmem:[#allocation2 + $0x34] sm:$0xff]
      %v4020 = vld [vmem:[#allocation2 + $0x3c] sm:$0xff]
      %v4021 = vld [vmem:[#allocation2 + $0x44] sm:$0xff]
      %v4022 = vld [vmem:[#allocation2 + $0x4c] sm:$0xff]
      %v4023 = vld [vmem:[#allocation2 + $0x54] sm:$0xff]
      %v4024 = vld [vmem:[#allocation2 + $0x5c] sm:$0xff]
      %v4025 = vld [vmem:[#allocation2 + $0x64] sm:$0xff]
      %v4026 = vld [vmem:[#allocation2 + $0x6c] sm:$0xff]
      %v4027 = vld [vmem:[#allocation2 + $0x74] sm:$0xff]
      %v4028 = vld [vmem:[#allocation2 + $0x7c] sm:$0xff]
      %v4029 = vld [vmem:[#allocation2 + $0x84] sm:$0xff]
      %v4030 = vld [vmem:[#allocation2 + $0x8c] sm:$0xff]
      %v4031 = vld [vmem:[#allocation2 + $0x94] sm:$0xff]
      %v4032 = vld [vmem:[#allocation2 + $0x9c] sm:$0xff]
      %v4033 = vld [vmem:[#allocation2 + $0xa4] sm:$0xff]
      %v4034 = vld [vmem:[#allocation2 + $0xac] sm:$0xff]
      %s4035 = scalar_lea.vmem %s3, 768
      %v4036 = vld [vmem:[%s4035] sm:$0xff]
      %v4037 = vld [vmem:[%s4035 + $0x8] sm:$0xff]
      %v4038 = vld [vmem:[%s4035 + $0x10] sm:$0xff]
      %v4039 = vld [vmem:[%s4035 + $0x18] sm:$0xff]
      %v4040 = vld [vmem:[%s4035 + $0x20] sm:$0xff]
      %v4041 = vld [vmem:[%s4035 + $0x28] sm:$0xff]
      %v4042 = vld [vmem:[%s4035 + $0x30] sm:$0xff]
      %v4043 = vld [vmem:[%s4035 + $0x38] sm:$0xff]
      %v4044 = vld [vmem:[%s4035 + $0x40] sm:$0xff]
      %v4045 = vld [vmem:[%s4035 + $0x48] sm:$0xff]
      %v4046 = vld [vmem:[%s4035 + $0x50] sm:$0xff]
      %v4047 = vld [vmem:[%s4035 + $0x58] sm:$0xff]
      %v4048 = vld [vmem:[%s4035 + $0x60] sm:$0xff]
      %v4049 = vld [vmem:[%s4035 + $0x68] sm:$0xff]
      %v4050 = vld [vmem:[%s4035 + $0x70] sm:$0xff]
      %v4051 = vld [vmem:[%s4035 + $0x78] sm:$0xff]
      %4052 = vmatprep.subr.mxu0 0.0
      %4053 = vmatpush1.msra.mxu0 %v4051
      %4054 = vmatprep.subr.mxu0 0.0
      %4055 = vmatpush1.msra.mxu0 %v4050
      %4056 = vmatprep.subr.mxu0 0.0
      %4057 = vmatpush1.msra.mxu0 %v4049
      %4058 = vmatprep.subr.mxu0 0.0
      %4059 = vmatpush1.msra.mxu0 %v4048
      %4060 = vmatprep.subr.mxu0 0.0
      %4061 = vmatpush1.msra.mxu0 %v4047
      %4062 = vmatprep.subr.mxu0 0.0
      %4063 = vmatpush1.msra.mxu0 %v4046
      %4064 = vmatprep.subr.mxu0 0.0
      %4065 = vmatpush1.msra.mxu0 %v4045
      %4066 = vmatprep.subr.mxu0 0.0
      %4067 = vmatpush1.msra.mxu0 %v4044
      %4068 = vmatprep.subr.mxu0 0.0
      %4069 = vmatpush1.msra.mxu0 %v4043
      %4070 = vmatprep.subr.mxu0 0.0
      %4071 = vmatpush1.msra.mxu0 %v4042
      %4072 = vmatprep.subr.mxu0 0.0
      %4073 = vmatpush1.msra.mxu0 %v4041
      %4074 = vmatprep.subr.mxu0 0.0
      %4075 = vmatpush1.msra.mxu0 %v4040
      %4076 = vmatprep.subr.mxu0 0.0
      %4077 = vmatpush1.msra.mxu0 %v4039
      %4078 = vmatprep.subr.mxu0 0.0
      %4079 = vmatpush1.msra.mxu0 %v4038
      %4080 = vmatprep.subr.mxu0 0.0
      %4081 = vmatpush1.msra.mxu0 %v4037
      %4082 = vmatprep.subr.mxu0 0.0
      %4083 = vmatpush1.msra.mxu0 %v4036
      %4084 = vmatprep.subr.mxu0 0.0
      %4085 = vmatpush2.msra.mxu0 0.0
      %4086 = vmatprep.subr.mxu0 0.0
      %4087 = vmatpush2.msra.mxu0 0.0
      %4088 = vmatprep.subr.mxu0 0.0
      %4089 = vmatpush2.msra.mxu0 0.0
      %4090 = vmatprep.subr.mxu0 0.0
      %4091 = vmatpush2.msra.mxu0 0.0
      %4092 = vmatprep.subr.mxu0 0.0
      %4093 = vmatpush2.msra.mxu0 0.0
      %4094 = vmatprep.subr.mxu0 0.0
      %4095 = vmatpush2.msra.mxu0 0.0
      %4096 = vmatprep.subr.mxu0 0.0
      %4097 = vmatpush2.msra.mxu0 0.0
      %4098 = vmatprep.subr.mxu0 0.0
      %4099 = vmatpush2.msra.mxu0 0.0
      %4100 = vmatprep.subr.mxu0 0.0
      %4101 = vmatpush2.msra.mxu0 0.0
      %4102 = vmatprep.subr.mxu0 0.0
      %4103 = vmatpush2.msra.mxu0 0.0
      %4104 = vmatprep.subr.mxu0 0.0
      %4105 = vmatpush2.msra.mxu0 0.0
      %4106 = vmatprep.subr.mxu0 0.0
      %4107 = vmatpush2.msra.mxu0 0.0
      %4108 = vmatprep.subr.mxu0 0.0
      %4109 = vmatpush2.msra.mxu0 0.0
      %4110 = vmatprep.subr.mxu0 0.0
      %4111 = vmatpush2.msra.mxu0 0.0
      %4112 = vmatprep.subr.mxu0 0.0
      %4113 = vmatpush2.msra.mxu0 0.0
      %4114 = vmatprep.subr.mxu0 0.0
      %4115 = vmatpush2.msra.mxu0 0.0
      %4116 = vmatprep.mubr.f32.mxu0 0.0
      %4117 = vmatmul.mubr.f32.gmra.mxu0 %v4017
      %v4118 = vpop.f32.mrf.mxu0
      %v4119 = vadd.f32 0.0, %v4118
      %v4120 = vpop.f32.mrf.mxu0
      %4121 = vmatprep.mubr.f32.mxu0 0.0
      %4122 = vmatmul.mubr.f32.gmra.mxu0 %v4018
      %v4123 = vpop.f32.mrf.mxu0
      %v4124 = vadd.f32 0.0, %v4123
      %v4125 = vpop.f32.mrf.mxu0
      %4126 = vmatprep.mubr.f32.mxu0 0.0
      %4127 = vmatmul.mubr.f32.gmra.mxu0 %v4019
      %v4128 = vpop.f32.mrf.mxu0
      %v4129 = vadd.f32 0.0, %v4128
      %v4130 = vpop.f32.mrf.mxu0
      %4131 = vmatprep.mubr.f32.mxu0 0.0
      %4132 = vmatmul.mubr.f32.gmra.mxu0 %v4020
      %v4133 = vpop.f32.mrf.mxu0
      %v4134 = vadd.f32 0.0, %v4133
      %v4135 = vpop.f32.mrf.mxu0
      %4136 = vmatprep.mubr.f32.mxu0 0.0
      %4137 = vmatmul.mubr.f32.gmra.mxu0 %v4021
      %v4138 = vpop.f32.mrf.mxu0
      %v4139 = vadd.f32 0.0, %v4138
      %v4140 = vpop.f32.mrf.mxu0
      %4141 = vmatprep.mubr.f32.mxu0 0.0
      %4142 = vmatmul.mubr.f32.gmra.mxu0 %v4022
      %v4143 = vpop.f32.mrf.mxu0
      %v4144 = vadd.f32 0.0, %v4143
      %v4145 = vpop.f32.mrf.mxu0
      %4146 = vmatprep.mubr.f32.mxu0 0.0
      %4147 = vmatmul.mubr.f32.gmra.mxu0 %v4023
      %v4148 = vpop.f32.mrf.mxu0
      %v4149 = vadd.f32 0.0, %v4148
      %v4150 = vpop.f32.mrf.mxu0
      %4151 = vmatprep.mubr.f32.mxu0 0.0
      %4152 = vmatmul.mubr.f32.gmra.mxu0 %v4024
      %v4153 = vpop.f32.mrf.mxu0
      %v4154 = vadd.f32 0.0, %v4153
      %v4155 = vpop.f32.mrf.mxu0
      %4156 = vmatprep.mubr.f32.mxu0 0.0
      %4157 = vmatmul.mubr.f32.gmra.mxu0 %v4025
      %v4158 = vpop.f32.mrf.mxu0
      %v4159 = vadd.f32 0.0, %v4158
      %v4160 = vpop.f32.mrf.mxu0
      %4161 = vmatprep.mubr.f32.mxu0 0.0
      %4162 = vmatmul.mubr.f32.gmra.mxu0 %v4026
      %v4163 = vpop.f32.mrf.mxu0
      %v4164 = vadd.f32 0.0, %v4163
      %v4165 = vpop.f32.mrf.mxu0
      %4166 = vmatprep.mubr.f32.mxu0 0.0
      %4167 = vmatmul.mubr.f32.gmra.mxu0 %v4027
      %v4168 = vpop.f32.mrf.mxu0
      %v4169 = vadd.f32 0.0, %v4168
      %v4170 = vpop.f32.mrf.mxu0
      %4171 = vmatprep.mubr.f32.mxu0 0.0
      %4172 = vmatmul.mubr.f32.gmra.mxu0 %v4028
      %v4173 = vpop.f32.mrf.mxu0
      %v4174 = vadd.f32 0.0, %v4173
      %v4175 = vpop.f32.mrf.mxu0
      %4176 = vmatprep.mubr.f32.mxu0 0.0
      %4177 = vmatmul.mubr.f32.gmra.mxu0 %v4029
      %v4178 = vpop.f32.mrf.mxu0
      %v4179 = vadd.f32 0.0, %v4178
      %v4180 = vpop.f32.mrf.mxu0
      %4181 = vmatprep.mubr.f32.mxu0 0.0
      %4182 = vmatmul.mubr.f32.gmra.mxu0 %v4030
      %v4183 = vpop.f32.mrf.mxu0
      %v4184 = vadd.f32 0.0, %v4183
      %v4185 = vpop.f32.mrf.mxu0
      %4186 = vmatprep.mubr.f32.mxu0 0.0
      %4187 = vmatmul.mubr.f32.gmra.mxu0 %v4031
      %v4188 = vpop.f32.mrf.mxu0
      %v4189 = vadd.f32 0.0, %v4188
      %v4190 = vpop.f32.mrf.mxu0
      %4191 = vmatprep.mubr.f32.mxu0 0.0
      %4192 = vmatmul.mubr.f32.gmra.mxu0 %v4032
      %v4193 = vpop.f32.mrf.mxu0
      %v4194 = vadd.f32 0.0, %v4193
      %v4195 = vpop.f32.mrf.mxu0
      %4196 = vmatprep.mubr.f32.mxu0 0.0
      %4197 = vmatmul.mubr.f32.gmra.mxu0 %v4033
      %v4198 = vpop.f32.mrf.mxu0
      %v4199 = vadd.f32 0.0, %v4198
      %v4200 = vpop.f32.mrf.mxu0
      %4201 = vmatprep.mubr.f32.mxu0 0.0
      %4202 = vmatmul.mubr.f32.gmra.mxu0 %v4034
      %v4203 = vpop.f32.mrf.mxu0
      %v4204 = vadd.f32 0.0, %v4203
      %v4205 = vpop.f32.mrf.mxu0
      %4206 = vdwg.mxu0
      %v4207 = vadd.f32 %v3999, %v4119
      %v4208 = vadd.f32 %v4000, %v4124
      %v4209 = vadd.f32 %v4001, %v4129
      %v4210 = vadd.f32 %v4002, %v4134
      %v4211 = vadd.f32 %v4003, %v4139
      %v4212 = vadd.f32 %v4004, %v4144
      %v4213 = vadd.f32 %v4005, %v4149
      %v4214 = vadd.f32 %v4006, %v4154
      %v4215 = vadd.f32 %v4007, %v4159
      %v4216 = vadd.f32 %v4008, %v4164
      %v4217 = vadd.f32 %v4009, %v4169
      %v4218 = vadd.f32 %v4010, %v4174
      %v4219 = vadd.f32 %v4011, %v4179
      %v4220 = vadd.f32 %v4012, %v4184
      %v4221 = vadd.f32 %v4013, %v4189
      %v4222 = vadd.f32 %v4014, %v4194
      %v4223 = vadd.f32 %v4015, %v4199
      %v4224 = vadd.f32 %v4016, %v4204
      %v4225 = vld [vmem:[#allocation2 + $0x25] sm:$0xff]
      %v4226 = vld [vmem:[#allocation2 + $0x2d] sm:$0xff]
      %v4227 = vld [vmem:[#allocation2 + $0x35] sm:$0xff]
      %v4228 = vld [vmem:[#allocation2 + $0x3d] sm:$0xff]
      %v4229 = vld [vmem:[#allocation2 + $0x45] sm:$0xff]
      %v4230 = vld [vmem:[#allocation2 + $0x4d] sm:$0xff]
      %v4231 = vld [vmem:[#allocation2 + $0x55] sm:$0xff]
      %v4232 = vld [vmem:[#allocation2 + $0x5d] sm:$0xff]
      %v4233 = vld [vmem:[#allocation2 + $0x65] sm:$0xff]
      %v4234 = vld [vmem:[#allocation2 + $0x6d] sm:$0xff]
      %v4235 = vld [vmem:[#allocation2 + $0x75] sm:$0xff]
      %v4236 = vld [vmem:[#allocation2 + $0x7d] sm:$0xff]
      %v4237 = vld [vmem:[#allocation2 + $0x85] sm:$0xff]
      %v4238 = vld [vmem:[#allocation2 + $0x8d] sm:$0xff]
      %v4239 = vld [vmem:[#allocation2 + $0x95] sm:$0xff]
      %v4240 = vld [vmem:[#allocation2 + $0x9d] sm:$0xff]
      %v4241 = vld [vmem:[#allocation2 + $0xa5] sm:$0xff]
      %v4242 = vld [vmem:[#allocation2 + $0xad] sm:$0xff]
      %s4243 = scalar_lea.vmem %s3, 896
      %v4244 = vld [vmem:[%s4243] sm:$0xff]
      %v4245 = vld [vmem:[%s4243 + $0x8] sm:$0xff]
      %v4246 = vld [vmem:[%s4243 + $0x10] sm:$0xff]
      %v4247 = vld [vmem:[%s4243 + $0x18] sm:$0xff]
      %v4248 = vld [vmem:[%s4243 + $0x20] sm:$0xff]
      %v4249 = vld [vmem:[%s4243 + $0x28] sm:$0xff]
      %v4250 = vld [vmem:[%s4243 + $0x30] sm:$0xff]
      %v4251 = vld [vmem:[%s4243 + $0x38] sm:$0xff]
      %v4252 = vld [vmem:[%s4243 + $0x40] sm:$0xff]
      %v4253 = vld [vmem:[%s4243 + $0x48] sm:$0xff]
      %v4254 = vld [vmem:[%s4243 + $0x50] sm:$0xff]
      %v4255 = vld [vmem:[%s4243 + $0x58] sm:$0xff]
      %v4256 = vld [vmem:[%s4243 + $0x60] sm:$0xff]
      %v4257 = vld [vmem:[%s4243 + $0x68] sm:$0xff]
      %v4258 = vld [vmem:[%s4243 + $0x70] sm:$0xff]
      %v4259 = vld [vmem:[%s4243 + $0x78] sm:$0xff]
      %4260 = vmatprep.subr.mxu0 0.0
      %4261 = vmatpush1.msra.mxu0 %v4259
      %4262 = vmatprep.subr.mxu0 0.0
      %4263 = vmatpush1.msra.mxu0 %v4258
      %4264 = vmatprep.subr.mxu0 0.0
      %4265 = vmatpush1.msra.mxu0 %v4257
      %4266 = vmatprep.subr.mxu0 0.0
      %4267 = vmatpush1.msra.mxu0 %v4256
      %4268 = vmatprep.subr.mxu0 0.0
      %4269 = vmatpush1.msra.mxu0 %v4255
      %4270 = vmatprep.subr.mxu0 0.0
      %4271 = vmatpush1.msra.mxu0 %v4254
      %4272 = vmatprep.subr.mxu0 0.0
      %4273 = vmatpush1.msra.mxu0 %v4253
      %4274 = vmatprep.subr.mxu0 0.0
      %4275 = vmatpush1.msra.mxu0 %v4252
      %4276 = vmatprep.subr.mxu0 0.0
      %4277 = vmatpush1.msra.mxu0 %v4251
      %4278 = vmatprep.subr.mxu0 0.0
      %4279 = vmatpush1.msra.mxu0 %v4250
      %4280 = vmatprep.subr.mxu0 0.0
      %4281 = vmatpush1.msra.mxu0 %v4249
      %4282 = vmatprep.subr.mxu0 0.0
      %4283 = vmatpush1.msra.mxu0 %v4248
      %4284 = vmatprep.subr.mxu0 0.0
      %4285 = vmatpush1.msra.mxu0 %v4247
      %4286 = vmatprep.subr.mxu0 0.0
      %4287 = vmatpush1.msra.mxu0 %v4246
      %4288 = vmatprep.subr.mxu0 0.0
      %4289 = vmatpush1.msra.mxu0 %v4245
      %4290 = vmatprep.subr.mxu0 0.0
      %4291 = vmatpush1.msra.mxu0 %v4244
      %4292 = vmatprep.subr.mxu0 0.0
      %4293 = vmatpush2.msra.mxu0 0.0
      %4294 = vmatprep.subr.mxu0 0.0
      %4295 = vmatpush2.msra.mxu0 0.0
      %4296 = vmatprep.subr.mxu0 0.0
      %4297 = vmatpush2.msra.mxu0 0.0
      %4298 = vmatprep.subr.mxu0 0.0
      %4299 = vmatpush2.msra.mxu0 0.0
      %4300 = vmatprep.subr.mxu0 0.0
      %4301 = vmatpush2.msra.mxu0 0.0
      %4302 = vmatprep.subr.mxu0 0.0
      %4303 = vmatpush2.msra.mxu0 0.0
      %4304 = vmatprep.subr.mxu0 0.0
      %4305 = vmatpush2.msra.mxu0 0.0
      %4306 = vmatprep.subr.mxu0 0.0
      %4307 = vmatpush2.msra.mxu0 0.0
      %4308 = vmatprep.subr.mxu0 0.0
      %4309 = vmatpush2.msra.mxu0 0.0
      %4310 = vmatprep.subr.mxu0 0.0
      %4311 = vmatpush2.msra.mxu0 0.0
      %4312 = vmatprep.subr.mxu0 0.0
      %4313 = vmatpush2.msra.mxu0 0.0
      %4314 = vmatprep.subr.mxu0 0.0
      %4315 = vmatpush2.msra.mxu0 0.0
      %4316 = vmatprep.subr.mxu0 0.0
      %4317 = vmatpush2.msra.mxu0 0.0
      %4318 = vmatprep.subr.mxu0 0.0
      %4319 = vmatpush2.msra.mxu0 0.0
      %4320 = vmatprep.subr.mxu0 0.0
      %4321 = vmatpush2.msra.mxu0 0.0
      %4322 = vmatprep.subr.mxu0 0.0
      %4323 = vmatpush2.msra.mxu0 0.0
      %4324 = vmatprep.mubr.f32.mxu0 0.0
      %4325 = vmatmul.mubr.f32.gmra.mxu0 %v4225
      %v4326 = vpop.f32.mrf.mxu0
      %v4327 = vadd.f32 0.0, %v4326
      %v4328 = vpop.f32.mrf.mxu0
      %4329 = vmatprep.mubr.f32.mxu0 0.0
      %4330 = vmatmul.mubr.f32.gmra.mxu0 %v4226
      %v4331 = vpop.f32.mrf.mxu0
      %v4332 = vadd.f32 0.0, %v4331
      %v4333 = vpop.f32.mrf.mxu0
      %4334 = vmatprep.mubr.f32.mxu0 0.0
      %4335 = vmatmul.mubr.f32.gmra.mxu0 %v4227
      %v4336 = vpop.f32.mrf.mxu0
      %v4337 = vadd.f32 0.0, %v4336
      %v4338 = vpop.f32.mrf.mxu0
      %4339 = vmatprep.mubr.f32.mxu0 0.0
      %4340 = vmatmul.mubr.f32.gmra.mxu0 %v4228
      %v4341 = vpop.f32.mrf.mxu0
      %v4342 = vadd.f32 0.0, %v4341
      %v4343 = vpop.f32.mrf.mxu0
      %4344 = vmatprep.mubr.f32.mxu0 0.0
      %4345 = vmatmul.mubr.f32.gmra.mxu0 %v4229
      %v4346 = vpop.f32.mrf.mxu0
      %v4347 = vadd.f32 0.0, %v4346
      %v4348 = vpop.f32.mrf.mxu0
      %4349 = vmatprep.mubr.f32.mxu0 0.0
      %4350 = vmatmul.mubr.f32.gmra.mxu0 %v4230
      %v4351 = vpop.f32.mrf.mxu0
      %v4352 = vadd.f32 0.0, %v4351
      %v4353 = vpop.f32.mrf.mxu0
      %4354 = vmatprep.mubr.f32.mxu0 0.0
      %4355 = vmatmul.mubr.f32.gmra.mxu0 %v4231
      %v4356 = vpop.f32.mrf.mxu0
      %v4357 = vadd.f32 0.0, %v4356
      %v4358 = vpop.f32.mrf.mxu0
      %4359 = vmatprep.mubr.f32.mxu0 0.0
      %4360 = vmatmul.mubr.f32.gmra.mxu0 %v4232
      %v4361 = vpop.f32.mrf.mxu0
      %v4362 = vadd.f32 0.0, %v4361
      %v4363 = vpop.f32.mrf.mxu0
      %4364 = vmatprep.mubr.f32.mxu0 0.0
      %4365 = vmatmul.mubr.f32.gmra.mxu0 %v4233
      %v4366 = vpop.f32.mrf.mxu0
      %v4367 = vadd.f32 0.0, %v4366
      %v4368 = vpop.f32.mrf.mxu0
      %4369 = vmatprep.mubr.f32.mxu0 0.0
      %4370 = vmatmul.mubr.f32.gmra.mxu0 %v4234
      %v4371 = vpop.f32.mrf.mxu0
      %v4372 = vadd.f32 0.0, %v4371
      %v4373 = vpop.f32.mrf.mxu0
      %4374 = vmatprep.mubr.f32.mxu0 0.0
      %4375 = vmatmul.mubr.f32.gmra.mxu0 %v4235
      %v4376 = vpop.f32.mrf.mxu0
      %v4377 = vadd.f32 0.0, %v4376
      %v4378 = vpop.f32.mrf.mxu0
      %4379 = vmatprep.mubr.f32.mxu0 0.0
      %4380 = vmatmul.mubr.f32.gmra.mxu0 %v4236
      %v4381 = vpop.f32.mrf.mxu0
      %v4382 = vadd.f32 0.0, %v4381
      %v4383 = vpop.f32.mrf.mxu0
      %4384 = vmatprep.mubr.f32.mxu0 0.0
      %4385 = vmatmul.mubr.f32.gmra.mxu0 %v4237
      %v4386 = vpop.f32.mrf.mxu0
      %v4387 = vadd.f32 0.0, %v4386
      %v4388 = vpop.f32.mrf.mxu0
      %4389 = vmatprep.mubr.f32.mxu0 0.0
      %4390 = vmatmul.mubr.f32.gmra.mxu0 %v4238
      %v4391 = vpop.f32.mrf.mxu0
      %v4392 = vadd.f32 0.0, %v4391
      %v4393 = vpop.f32.mrf.mxu0
      %4394 = vmatprep.mubr.f32.mxu0 0.0
      %4395 = vmatmul.mubr.f32.gmra.mxu0 %v4239
      %v4396 = vpop.f32.mrf.mxu0
      %v4397 = vadd.f32 0.0, %v4396
      %v4398 = vpop.f32.mrf.mxu0
      %4399 = vmatprep.mubr.f32.mxu0 0.0
      %4400 = vmatmul.mubr.f32.gmra.mxu0 %v4240
      %v4401 = vpop.f32.mrf.mxu0
      %v4402 = vadd.f32 0.0, %v4401
      %v4403 = vpop.f32.mrf.mxu0
      %4404 = vmatprep.mubr.f32.mxu0 0.0
      %4405 = vmatmul.mubr.f32.gmra.mxu0 %v4241
      %v4406 = vpop.f32.mrf.mxu0
      %v4407 = vadd.f32 0.0, %v4406
      %v4408 = vpop.f32.mrf.mxu0
      %4409 = vmatprep.mubr.f32.mxu0 0.0
      %4410 = vmatmul.mubr.f32.gmra.mxu0 %v4242
      %v4411 = vpop.f32.mrf.mxu0
      %v4412 = vadd.f32 0.0, %v4411
      %v4413 = vpop.f32.mrf.mxu0
      %4414 = vdwg.mxu0
      %v4415 = vadd.f32 %v4207, %v4327
      %v4416 = vadd.f32 %v4208, %v4332
      %v4417 = vadd.f32 %v4209, %v4337
      %v4418 = vadd.f32 %v4210, %v4342
      %v4419 = vadd.f32 %v4211, %v4347
      %v4420 = vadd.f32 %v4212, %v4352
      %v4421 = vadd.f32 %v4213, %v4357
      %v4422 = vadd.f32 %v4214, %v4362
      %v4423 = vadd.f32 %v4215, %v4367
      %v4424 = vadd.f32 %v4216, %v4372
      %v4425 = vadd.f32 %v4217, %v4377
      %v4426 = vadd.f32 %v4218, %v4382
      %v4427 = vadd.f32 %v4219, %v4387
      %v4428 = vadd.f32 %v4220, %v4392
      %v4429 = vadd.f32 %v4221, %v4397
      %v4430 = vadd.f32 %v4222, %v4402
      %v4431 = vadd.f32 %v4223, %v4407
      %v4432 = vadd.f32 %v4224, %v4412
      %v4433 = vld [vmem:[#allocation2 + $0x26] sm:$0xff]
      %v4434 = vld [vmem:[#allocation2 + $0x2e] sm:$0xff]
      %v4435 = vld [vmem:[#allocation2 + $0x36] sm:$0xff]
      %v4436 = vld [vmem:[#allocation2 + $0x3e] sm:$0xff]
      %v4437 = vld [vmem:[#allocation2 + $0x46] sm:$0xff]
      %v4438 = vld [vmem:[#allocation2 + $0x4e] sm:$0xff]
      %v4439 = vld [vmem:[#allocation2 + $0x56] sm:$0xff]
      %v4440 = vld [vmem:[#allocation2 + $0x5e] sm:$0xff]
      %v4441 = vld [vmem:[#allocation2 + $0x66] sm:$0xff]
      %v4442 = vld [vmem:[#allocation2 + $0x6e] sm:$0xff]
      %v4443 = vld [vmem:[#allocation2 + $0x76] sm:$0xff]
      %v4444 = vld [vmem:[#allocation2 + $0x7e] sm:$0xff]
      %v4445 = vld [vmem:[#allocation2 + $0x86] sm:$0xff]
      %v4446 = vld [vmem:[#allocation2 + $0x8e] sm:$0xff]
      %v4447 = vld [vmem:[#allocation2 + $0x96] sm:$0xff]
      %v4448 = vld [vmem:[#allocation2 + $0x9e] sm:$0xff]
      %v4449 = vld [vmem:[#allocation2 + $0xa6] sm:$0xff]
      %v4450 = vld [vmem:[#allocation2 + $0xae] sm:$0xff]
      %s4451 = scalar_lea.vmem %s3, 1024
      %v4452 = vld [vmem:[%s4451] sm:$0xff]
      %v4453 = vld [vmem:[%s4451 + $0x8] sm:$0xff]
      %v4454 = vld [vmem:[%s4451 + $0x10] sm:$0xff]
      %v4455 = vld [vmem:[%s4451 + $0x18] sm:$0xff]
      %v4456 = vld [vmem:[%s4451 + $0x20] sm:$0xff]
      %v4457 = vld [vmem:[%s4451 + $0x28] sm:$0xff]
      %v4458 = vld [vmem:[%s4451 + $0x30] sm:$0xff]
      %v4459 = vld [vmem:[%s4451 + $0x38] sm:$0xff]
      %v4460 = vld [vmem:[%s4451 + $0x40] sm:$0xff]
      %v4461 = vld [vmem:[%s4451 + $0x48] sm:$0xff]
      %v4462 = vld [vmem:[%s4451 + $0x50] sm:$0xff]
      %v4463 = vld [vmem:[%s4451 + $0x58] sm:$0xff]
      %v4464 = vld [vmem:[%s4451 + $0x60] sm:$0xff]
      %v4465 = vld [vmem:[%s4451 + $0x68] sm:$0xff]
      %v4466 = vld [vmem:[%s4451 + $0x70] sm:$0xff]
      %v4467 = vld [vmem:[%s4451 + $0x78] sm:$0xff]
      %4468 = vmatprep.subr.mxu0 0.0
      %4469 = vmatpush1.msra.mxu0 %v4467
      %4470 = vmatprep.subr.mxu0 0.0
      %4471 = vmatpush1.msra.mxu0 %v4466
      %4472 = vmatprep.subr.mxu0 0.0
      %4473 = vmatpush1.msra.mxu0 %v4465
      %4474 = vmatprep.subr.mxu0 0.0
      %4475 = vmatpush1.msra.mxu0 %v4464
      %4476 = vmatprep.subr.mxu0 0.0
      %4477 = vmatpush1.msra.mxu0 %v4463
      %4478 = vmatprep.subr.mxu0 0.0
      %4479 = vmatpush1.msra.mxu0 %v4462
      %4480 = vmatprep.subr.mxu0 0.0
      %4481 = vmatpush1.msra.mxu0 %v4461
      %4482 = vmatprep.subr.mxu0 0.0
      %4483 = vmatpush1.msra.mxu0 %v4460
      %4484 = vmatprep.subr.mxu0 0.0
      %4485 = vmatpush1.msra.mxu0 %v4459
      %4486 = vmatprep.subr.mxu0 0.0
      %4487 = vmatpush1.msra.mxu0 %v4458
      %4488 = vmatprep.subr.mxu0 0.0
      %4489 = vmatpush1.msra.mxu0 %v4457
      %4490 = vmatprep.subr.mxu0 0.0
      %4491 = vmatpush1.msra.mxu0 %v4456
      %4492 = vmatprep.subr.mxu0 0.0
      %4493 = vmatpush1.msra.mxu0 %v4455
      %4494 = vmatprep.subr.mxu0 0.0
      %4495 = vmatpush1.msra.mxu0 %v4454
      %4496 = vmatprep.subr.mxu0 0.0
      %4497 = vmatpush1.msra.mxu0 %v4453
      %4498 = vmatprep.subr.mxu0 0.0
      %4499 = vmatpush1.msra.mxu0 %v4452
      %4500 = vmatprep.subr.mxu0 0.0
      %4501 = vmatpush2.msra.mxu0 0.0
      %4502 = vmatprep.subr.mxu0 0.0
      %4503 = vmatpush2.msra.mxu0 0.0
      %4504 = vmatprep.subr.mxu0 0.0
      %4505 = vmatpush2.msra.mxu0 0.0
      %4506 = vmatprep.subr.mxu0 0.0
      %4507 = vmatpush2.msra.mxu0 0.0
      %4508 = vmatprep.subr.mxu0 0.0
      %4509 = vmatpush2.msra.mxu0 0.0
      %4510 = vmatprep.subr.mxu0 0.0
      %4511 = vmatpush2.msra.mxu0 0.0
      %4512 = vmatprep.subr.mxu0 0.0
      %4513 = vmatpush2.msra.mxu0 0.0
      %4514 = vmatprep.subr.mxu0 0.0
      %4515 = vmatpush2.msra.mxu0 0.0
      %4516 = vmatprep.subr.mxu0 0.0
      %4517 = vmatpush2.msra.mxu0 0.0
      %4518 = vmatprep.subr.mxu0 0.0
      %4519 = vmatpush2.msra.mxu0 0.0
      %4520 = vmatprep.subr.mxu0 0.0
      %4521 = vmatpush2.msra.mxu0 0.0
      %4522 = vmatprep.subr.mxu0 0.0
      %4523 = vmatpush2.msra.mxu0 0.0
      %4524 = vmatprep.subr.mxu0 0.0
      %4525 = vmatpush2.msra.mxu0 0.0
      %4526 = vmatprep.subr.mxu0 0.0
      %4527 = vmatpush2.msra.mxu0 0.0
      %4528 = vmatprep.subr.mxu0 0.0
      %4529 = vmatpush2.msra.mxu0 0.0
      %4530 = vmatprep.subr.mxu0 0.0
      %4531 = vmatpush2.msra.mxu0 0.0
      %4532 = vmatprep.mubr.f32.mxu0 0.0
      %4533 = vmatmul.mubr.f32.gmra.mxu0 %v4433
      %v4534 = vpop.f32.mrf.mxu0
      %v4535 = vadd.f32 0.0, %v4534
      %v4536 = vpop.f32.mrf.mxu0
      %4537 = vmatprep.mubr.f32.mxu0 0.0
      %4538 = vmatmul.mubr.f32.gmra.mxu0 %v4434
      %v4539 = vpop.f32.mrf.mxu0
      %v4540 = vadd.f32 0.0, %v4539
      %v4541 = vpop.f32.mrf.mxu0
      %4542 = vmatprep.mubr.f32.mxu0 0.0
      %4543 = vmatmul.mubr.f32.gmra.mxu0 %v4435
      %v4544 = vpop.f32.mrf.mxu0
      %v4545 = vadd.f32 0.0, %v4544
      %v4546 = vpop.f32.mrf.mxu0
      %4547 = vmatprep.mubr.f32.mxu0 0.0
      %4548 = vmatmul.mubr.f32.gmra.mxu0 %v4436
      %v4549 = vpop.f32.mrf.mxu0
      %v4550 = vadd.f32 0.0, %v4549
      %v4551 = vpop.f32.mrf.mxu0
      %4552 = vmatprep.mubr.f32.mxu0 0.0
      %4553 = vmatmul.mubr.f32.gmra.mxu0 %v4437
      %v4554 = vpop.f32.mrf.mxu0
      %v4555 = vadd.f32 0.0, %v4554
      %v4556 = vpop.f32.mrf.mxu0
      %4557 = vmatprep.mubr.f32.mxu0 0.0
      %4558 = vmatmul.mubr.f32.gmra.mxu0 %v4438
      %v4559 = vpop.f32.mrf.mxu0
      %v4560 = vadd.f32 0.0, %v4559
      %v4561 = vpop.f32.mrf.mxu0
      %4562 = vmatprep.mubr.f32.mxu0 0.0
      %4563 = vmatmul.mubr.f32.gmra.mxu0 %v4439
      %v4564 = vpop.f32.mrf.mxu0
      %v4565 = vadd.f32 0.0, %v4564
      %v4566 = vpop.f32.mrf.mxu0
      %4567 = vmatprep.mubr.f32.mxu0 0.0
      %4568 = vmatmul.mubr.f32.gmra.mxu0 %v4440
      %v4569 = vpop.f32.mrf.mxu0
      %v4570 = vadd.f32 0.0, %v4569
      %v4571 = vpop.f32.mrf.mxu0
      %4572 = vmatprep.mubr.f32.mxu0 0.0
      %4573 = vmatmul.mubr.f32.gmra.mxu0 %v4441
      %v4574 = vpop.f32.mrf.mxu0
      %v4575 = vadd.f32 0.0, %v4574
      %v4576 = vpop.f32.mrf.mxu0
      %4577 = vmatprep.mubr.f32.mxu0 0.0
      %4578 = vmatmul.mubr.f32.gmra.mxu0 %v4442
      %v4579 = vpop.f32.mrf.mxu0
      %v4580 = vadd.f32 0.0, %v4579
      %v4581 = vpop.f32.mrf.mxu0
      %4582 = vmatprep.mubr.f32.mxu0 0.0
      %4583 = vmatmul.mubr.f32.gmra.mxu0 %v4443
      %v4584 = vpop.f32.mrf.mxu0
      %v4585 = vadd.f32 0.0, %v4584
      %v4586 = vpop.f32.mrf.mxu0
      %4587 = vmatprep.mubr.f32.mxu0 0.0
      %4588 = vmatmul.mubr.f32.gmra.mxu0 %v4444
      %v4589 = vpop.f32.mrf.mxu0
      %v4590 = vadd.f32 0.0, %v4589
      %v4591 = vpop.f32.mrf.mxu0
      %4592 = vmatprep.mubr.f32.mxu0 0.0
      %4593 = vmatmul.mubr.f32.gmra.mxu0 %v4445
      %v4594 = vpop.f32.mrf.mxu0
      %v4595 = vadd.f32 0.0, %v4594
      %v4596 = vpop.f32.mrf.mxu0
      %4597 = vmatprep.mubr.f32.mxu0 0.0
      %4598 = vmatmul.mubr.f32.gmra.mxu0 %v4446
      %v4599 = vpop.f32.mrf.mxu0
      %v4600 = vadd.f32 0.0, %v4599
      %v4601 = vpop.f32.mrf.mxu0
      %4602 = vmatprep.mubr.f32.mxu0 0.0
      %4603 = vmatmul.mubr.f32.gmra.mxu0 %v4447
      %v4604 = vpop.f32.mrf.mxu0
      %v4605 = vadd.f32 0.0, %v4604
      %v4606 = vpop.f32.mrf.mxu0
      %4607 = vmatprep.mubr.f32.mxu0 0.0
      %4608 = vmatmul.mubr.f32.gmra.mxu0 %v4448
      %v4609 = vpop.f32.mrf.mxu0
      %v4610 = vadd.f32 0.0, %v4609
      %v4611 = vpop.f32.mrf.mxu0
      %4612 = vmatprep.mubr.f32.mxu0 0.0
      %4613 = vmatmul.mubr.f32.gmra.mxu0 %v4449
      %v4614 = vpop.f32.mrf.mxu0
      %v4615 = vadd.f32 0.0, %v4614
      %v4616 = vpop.f32.mrf.mxu0
      %4617 = vmatprep.mubr.f32.mxu0 0.0
      %4618 = vmatmul.mubr.f32.gmra.mxu0 %v4450
      %v4619 = vpop.f32.mrf.mxu0
      %v4620 = vadd.f32 0.0, %v4619
      %v4621 = vpop.f32.mrf.mxu0
      %4622 = vdwg.mxu0
      %v4623 = vadd.f32 %v4415, %v4535
      %v4624 = vadd.f32 %v4416, %v4540
      %v4625 = vadd.f32 %v4417, %v4545
      %v4626 = vadd.f32 %v4418, %v4550
      %v4627 = vadd.f32 %v4419, %v4555
      %v4628 = vadd.f32 %v4420, %v4560
      %v4629 = vadd.f32 %v4421, %v4565
      %v4630 = vadd.f32 %v4422, %v4570
      %v4631 = vadd.f32 %v4423, %v4575
      %v4632 = vadd.f32 %v4424, %v4580
      %v4633 = vadd.f32 %v4425, %v4585
      %v4634 = vadd.f32 %v4426, %v4590
      %v4635 = vadd.f32 %v4427, %v4595
      %v4636 = vadd.f32 %v4428, %v4600
      %v4637 = vadd.f32 %v4429, %v4605
      %v4638 = vadd.f32 %v4430, %v4610
      %v4639 = vadd.f32 %v4431, %v4615
      %v4640 = vadd.f32 %v4432, %v4620
      %v4641 = vld [vmem:[%s394] sm:$0xff]
      %v4642 = vld [vmem:[%s394 + $0x8] sm:$0xff]
      %v4643 = vld [vmem:[%s394 + $0x10] sm:$0xff]
      %v4644 = vld [vmem:[%s394 + $0x18] sm:$0xff]
      %v4645 = vld [vmem:[%s4] sm:$0xff]
      %v4646 = vld [vmem:[%s4 + $0x8] sm:$0xff]
      %v4647 = vld [vmem:[%s4 + $0x10] sm:$0xff]
      %v4648 = vld [vmem:[%s4 + $0x18] sm:$0xff]
      %v4649 = vld [vmem:[%s4 + $0x20] sm:$0xff]
      %v4650 = vld [vmem:[%s4 + $0x28] sm:$0xff]
      %v4651 = vld [vmem:[%s4 + $0x30] sm:$0xff]
      %v4652 = vld [vmem:[%s4 + $0x38] sm:$0xff]
      %v4653 = vld [vmem:[%s4 + $0x40] sm:$0xff]
      %v4654 = vld [vmem:[%s4 + $0x48] sm:$0xff]
      %v4655 = vld [vmem:[%s4 + $0x50] sm:$0xff]
      %v4656 = vld [vmem:[%s4 + $0x58] sm:$0xff]
      %v4657 = vld [vmem:[%s4 + $0x60] sm:$0xff]
      %v4658 = vld [vmem:[%s4 + $0x68] sm:$0xff]
      %v4659 = vld [vmem:[%s4 + $0x70] sm:$0xff]
      %v4660 = vld [vmem:[%s4 + $0x78] sm:$0xff]
      %4661 = vmatprep.subr.mxu0 0.0
      %4662 = vmatpush1.msra.mxu0 %v4660
      %4663 = vmatprep.subr.mxu0 0.0
      %4664 = vmatpush1.msra.mxu0 %v4659
      %4665 = vmatprep.subr.mxu0 0.0
      %4666 = vmatpush1.msra.mxu0 %v4658
      %4667 = vmatprep.subr.mxu0 0.0
      %4668 = vmatpush1.msra.mxu0 %v4657
      %4669 = vmatprep.subr.mxu0 0.0
      %4670 = vmatpush1.msra.mxu0 %v4656
      %4671 = vmatprep.subr.mxu0 0.0
      %4672 = vmatpush1.msra.mxu0 %v4655
      %4673 = vmatprep.subr.mxu0 0.0
      %4674 = vmatpush1.msra.mxu0 %v4654
      %4675 = vmatprep.subr.mxu0 0.0
      %4676 = vmatpush1.msra.mxu0 %v4653
      %4677 = vmatprep.subr.mxu0 0.0
      %4678 = vmatpush1.msra.mxu0 %v4652
      %4679 = vmatprep.subr.mxu0 0.0
      %4680 = vmatpush1.msra.mxu0 %v4651
      %4681 = vmatprep.subr.mxu0 0.0
      %4682 = vmatpush1.msra.mxu0 %v4650
      %4683 = vmatprep.subr.mxu0 0.0
      %4684 = vmatpush1.msra.mxu0 %v4649
      %4685 = vmatprep.subr.mxu0 0.0
      %4686 = vmatpush1.msra.mxu0 %v4648
      %4687 = vmatprep.subr.mxu0 0.0
      %4688 = vmatpush1.msra.mxu0 %v4647
      %4689 = vmatprep.subr.mxu0 0.0
      %4690 = vmatpush1.msra.mxu0 %v4646
      %4691 = vmatprep.subr.mxu0 0.0
      %4692 = vmatpush1.msra.mxu0 %v4645
      %4693 = vmatprep.subr.mxu0 0.0
      %4694 = vmatpush2.msra.mxu0 0.0
      %4695 = vmatprep.subr.mxu0 0.0
      %4696 = vmatpush2.msra.mxu0 0.0
      %4697 = vmatprep.subr.mxu0 0.0
      %4698 = vmatpush2.msra.mxu0 0.0
      %4699 = vmatprep.subr.mxu0 0.0
      %4700 = vmatpush2.msra.mxu0 0.0
      %4701 = vmatprep.subr.mxu0 0.0
      %4702 = vmatpush2.msra.mxu0 0.0
      %4703 = vmatprep.subr.mxu0 0.0
      %4704 = vmatpush2.msra.mxu0 0.0
      %4705 = vmatprep.subr.mxu0 0.0
      %4706 = vmatpush2.msra.mxu0 0.0
      %4707 = vmatprep.subr.mxu0 0.0
      %4708 = vmatpush2.msra.mxu0 0.0
      %4709 = vmatprep.subr.mxu0 0.0
      %4710 = vmatpush2.msra.mxu0 0.0
      %4711 = vmatprep.subr.mxu0 0.0
      %4712 = vmatpush2.msra.mxu0 0.0
      %4713 = vmatprep.subr.mxu0 0.0
      %4714 = vmatpush2.msra.mxu0 0.0
      %4715 = vmatprep.subr.mxu0 0.0
      %4716 = vmatpush2.msra.mxu0 0.0
      %4717 = vmatprep.subr.mxu0 0.0
      %4718 = vmatpush2.msra.mxu0 0.0
      %4719 = vmatprep.subr.mxu0 0.0
      %4720 = vmatpush2.msra.mxu0 0.0
      %4721 = vmatprep.subr.mxu0 0.0
      %4722 = vmatpush2.msra.mxu0 0.0
      %4723 = vmatprep.subr.mxu0 0.0
      %4724 = vmatpush2.msra.mxu0 0.0
      %4725 = vmatprep.mubr.f32.mxu0 0.0
      %4726 = vmatmul.mubr.f32.gmra.mxu0 %v4641
      %v4727 = vpop.f32.mrf.mxu0
      %v4728 = vadd.f32 0.0, %v4727
      %v4729 = vpop.f32.mrf.mxu0
      %4730 = vmatprep.mubr.f32.mxu0 0.0
      %4731 = vmatmul.mubr.f32.gmra.mxu0 %v4642
      %v4732 = vpop.f32.mrf.mxu0
      %v4733 = vadd.f32 0.0, %v4732
      %v4734 = vpop.f32.mrf.mxu0
      %4735 = vmatprep.mubr.f32.mxu0 0.0
      %4736 = vmatmul.mubr.f32.gmra.mxu0 %v4643
      %v4737 = vpop.f32.mrf.mxu0
      %v4738 = vadd.f32 0.0, %v4737
      %v4739 = vpop.f32.mrf.mxu0
      %4740 = vmatprep.mubr.f32.mxu0 0.0
      %4741 = vmatmul.mubr.f32.gmra.mxu0 %v4644
      %v4742 = vpop.f32.mrf.mxu0
      %v4743 = vadd.f32 0.0, %v4742
      %v4744 = vpop.f32.mrf.mxu0
      %4745 = vdwg.mxu0
      %vm4746 = vcmask 130048
      %v4748 = vsel %vm4746, %v2799, 0
      %v4751 = vsel %vm4746, %v2801, 0
      %v4754 = vsel %vm4746, %v2803, 0
      %v4757 = vsel %vm4746, %v2805, 0
      %4759 = vmatprep.subr.mxu0 0.0
      %4760 = vmatpush1.msra.mxu0 %v4638
      %4761 = vmatprep.subr.mxu0 0.0
      %4762 = vmatpush1.msra.mxu0 %v4637
      %4763 = vmatprep.subr.mxu0 0.0
      %4764 = vmatpush1.msra.mxu0 %v4636
      %4765 = vmatprep.subr.mxu0 0.0
      %4766 = vmatpush1.msra.mxu0 %v4635
      %4767 = vmatprep.subr.mxu0 0.0
      %4768 = vmatpush1.msra.mxu0 %v4634
      %4769 = vmatprep.subr.mxu0 0.0
      %4770 = vmatpush1.msra.mxu0 %v4633
      %4771 = vmatprep.subr.mxu0 0.0
      %4772 = vmatpush1.msra.mxu0 %v4632
      %4773 = vmatprep.subr.mxu0 0.0
      %4774 = vmatpush1.msra.mxu0 %v4631
      %4775 = vmatprep.subr.mxu0 0.0
      %4776 = vmatpush1.msra.mxu0 %v4630
      %4777 = vmatprep.subr.mxu0 0.0
      %4778 = vmatpush1.msra.mxu0 %v4629
      %4779 = vmatprep.subr.mxu0 0.0
      %4780 = vmatpush1.msra.mxu0 %v4628
      %4781 = vmatprep.subr.mxu0 0.0
      %4782 = vmatpush1.msra.mxu0 %v4627
      %4783 = vmatprep.subr.mxu0 0.0
      %4784 = vmatpush1.msra.mxu0 %v4626
      %4785 = vmatprep.subr.mxu0 0.0
      %4786 = vmatpush1.msra.mxu0 %v4625
      %4787 = vmatprep.subr.mxu0 0.0
      %4788 = vmatpush1.msra.mxu0 %v4624
      %4789 = vmatprep.subr.mxu0 0.0
      %4790 = vmatpush1.msra.mxu0 %v4623
      %4791 = vmatprep.subr.mxu0 0.0
      %4792 = vmatpush2.msra.mxu0 0.0
      %4793 = vmatprep.subr.mxu0 0.0
      %4794 = vmatpush2.msra.mxu0 0.0
      %4795 = vmatprep.subr.mxu0 0.0
      %4796 = vmatpush2.msra.mxu0 0.0
      %4797 = vmatprep.subr.mxu0 0.0
      %4798 = vmatpush2.msra.mxu0 0.0
      %4799 = vmatprep.subr.mxu0 0.0
      %4800 = vmatpush2.msra.mxu0 0.0
      %4801 = vmatprep.subr.mxu0 0.0
      %4802 = vmatpush2.msra.mxu0 0.0
      %4803 = vmatprep.subr.mxu0 0.0
      %4804 = vmatpush2.msra.mxu0 0.0
      %4805 = vmatprep.subr.mxu0 0.0
      %4806 = vmatpush2.msra.mxu0 0.0
      %4807 = vmatprep.subr.mxu0 0.0
      %4808 = vmatpush2.msra.mxu0 0.0
      %4809 = vmatprep.subr.mxu0 0.0
      %4810 = vmatpush2.msra.mxu0 0.0
      %4811 = vmatprep.subr.mxu0 0.0
      %4812 = vmatpush2.msra.mxu0 0.0
      %4813 = vmatprep.subr.mxu0 0.0
      %4814 = vmatpush2.msra.mxu0 0.0
      %4815 = vmatprep.subr.mxu0 0.0
      %4816 = vmatpush2.msra.mxu0 0.0
      %4817 = vmatprep.subr.mxu0 0.0
      %4818 = vmatpush2.msra.mxu0 0.0
      %4819 = vmatprep.subr.mxu0 0.0
      %4820 = vmatpush2.msra.mxu0 %v4640
      %4821 = vmatprep.subr.mxu0 0.0
      %4822 = vmatpush2.msra.mxu0 %v4639
      %4823 = vmatprep.mubr.f32.mxu0 %v4748
      %4824 = vmatmul.mubr.f32.gmra.mxu0 %v2798
      %v4825 = vpop.f32.mrf.mxu0
      %v4826 = vadd.f32 %v4728, %v4825
      %v4827 = vpop.f32.mrf.mxu0
      %4828 = vmatprep.mubr.f32.mxu0 %v4751
      %4829 = vmatmul.mubr.f32.gmra.mxu0 %v2800
      %v4830 = vpop.f32.mrf.mxu0
      %v4831 = vadd.f32 %v4733, %v4830
      %v4832 = vpop.f32.mrf.mxu0
      %4833 = vmatprep.mubr.f32.mxu0 %v4754
      %4834 = vmatmul.mubr.f32.gmra.mxu0 %v2802
      %v4835 = vpop.f32.mrf.mxu0
      %v4836 = vadd.f32 %v4738, %v4835
      %v4837 = vpop.f32.mrf.mxu0
      %4838 = vmatprep.mubr.f32.mxu0 %v4757
      %4839 = vmatmul.mubr.f32.gmra.mxu0 %v2804
      %v4840 = vpop.f32.mrf.mxu0
      %v4841 = vadd.f32 %v4743, %v4840
      %v4842 = vpop.f32.mrf.mxu0
      %4843 = vdwg.mxu0
      %v4844 = vld [vmem:[%s6] sm:$0x1]
      %v4846 = vlaneseq
      %v4847 = vshrl.u32 %v4846, 7
      %v4848 = vsub.s32 0, %v4847
      %v4849 = vrot.slane %v4844, %v4848
      %v4851 = vadd.f32 %v4826, %v4849
      %v4852 = vadd.f32 %v4831, %v4849
      %v4853 = vadd.f32 %v4836, %v4849
      %v4854 = vadd.f32 %v4841, %v4849
      %4855 = vst [vmem:[%s404] sm:$0xff] %v4851
      %4856 = vst [vmem:[%s404 + $0x8] sm:$0xff] %v4852
      %4857 = vst [vmem:[%s404 + $0x10] sm:$0xff] %v4853
      %4858 = vst [vmem:[%s404 + $0x18] sm:$0xff] %v4854
      %s4859 = smul.u32 4, %s25
      %p4860 = scmp.lt.s32.totalorder %s24, 1
      %s4861 = scalar_select %p4860, %s24, 1
      %p4862 = scmp.lt.s32.totalorder %s4859, 7
      %s4863 = scalar_select %p4862, %s4859, 7
      %s4864 = smul.addr %s4861, 8
      %s4865 = sadd.s32 %s4863, %s4864
      %s4866 = smul.addr %s4865, 8
      %s4867 = scalar_lea.vmem %s9, %s4866
      // Predicated region
      $region65: #{basic_block_discriminator_forward.1} parent=55 // pred_check
        %p4868 = pneg %p255
      $region66: #{basic_block_discriminator_forward.1} parent=55 // pred_check_branch
        %4870 = sbr.rel (%p4868) target = $region68
      $region67: #{basic_block_discriminator_forward.1} parent=55 // pred_region
        %s4871 = smul.u32 4, %s25
      $region68: #{basic_block_discriminator_forward.1} parent=55 // pred_fallthru
        _
    $region56: #{basic_block_discriminator_forward.1} parent=5 // pred_fallthru
      _
    %p4872 = scmp.le.s32.totalorder 2, %s15
    // Predicated region
    $region69: #{basic_block_discriminator_forward.1} parent=5 // pred_check
      %p4873 = pneg %p4872
    $region70: #{basic_block_discriminator_forward.1} parent=5 // pred_check_branch
      %4875 = sbr.rel (%p4873) target = $region72
    $region71: #{basic_block_discriminator_forward.1} parent=5 // pred_region
      %s4876 = ssub.s32 %s15, 2
      // Predicated region
      $region73: #{basic_block_discriminator_forward.1} parent=71 // pred_check
        %p4877 = pneg %p261
      $region74: #{basic_block_discriminator_forward.1} parent=71 // pred_check_branch
        %4879 = sbr.rel (%p4877) target = $region76
      $region75: #{basic_block_discriminator_forward.1} parent=71 // pred_region
        %s4880 = smul.u32 4, %s27
        %p4881 = scmp.lt.s32.totalorder %s26, 1
        %s4882 = scalar_select %p4881, %s26, 1
        %p4883 = scmp.lt.s32.totalorder %s4880, 7
        %s4884 = scalar_select %p4883, %s4880, 7
        %s4885 = smul.addr %s4882, 8
        %s4886 = sadd.s32 %s4884, %s4885
        %s4887 = smul.addr %s4886, 8
        %s4888 = scalar_lea.vmem %s9, %s4887
      $region76: #{basic_block_discriminator_forward.1} parent=71 // pred_fallthru
        _
    $region72: #{basic_block_discriminator_forward.1} parent=5 // pred_fallthru
      _
  $region6: #{basic_block_discriminator_forward.1} parent=0 // loop_footer
    %s19 = sadd.s32 1, %s15
  $region7: #{basic_block_discriminator_forward.1} parent=0 // loop_footer_branch
    %14 = sbr.rel target = $region3
  $region8: #{basic_block_discriminator_forward.1} parent=0 // loop_exit
    _

</llo_original>
